<compile_context>
chip_gen: v7x
topology: tpu7x:2x2x1
jax: 0.10.0
libtpu: 0.0.40
codegen_flags: <defaults>
</compile_context>

<pallas_src>
import functools

import jax
import jax.numpy as jnp
import numpy as np
from jax.experimental import pallas as pl
from jax.experimental.pallas import tpu as pltpu


def _convlstm_kernel(gx_ref, wh_ref, mask_ref, h_ref, c_ref, hz_sc,
                     *, W, C, PAD, MC):
    """One (batch, time) grid step of the ConvLSTM recurrence.

    gx_ref  : (P_pad, 4C) f32   precomputed conv(x_t, W_x) + bias (padded-flat rows)
    wh_ref  : (3, 3C, 4C) bf16  recurrent weight, kW folded into the contraction dim
    mask_ref: (P_pad, C)  f32   1.0 at interior rows, 0.0 at halo / pad rows
    h_ref   : (P_pad, C)  f32   h output (block constant in t -> stays VMEM resident)
    c_ref   : (P_pad, C)  f32   c output, doubles as the c carry across t
    hz_sc   : (P_pad + 2*PAD, C) f32 scratch: zero-haloed h_{t-1} with PAD slack rows
              above/below so all shifted windows are in-bounds static slices.
    """
    t = pl.program_id(1)                       # time axis (sequential / "arbitrary")
    P_pad = gx_ref.shape[0]
    Wp2 = W + 2

    @pl.when(t == 0)
    def _():
        hz_sc[...] = jnp.zeros_like(hz_sc)     # h_{-1} = 0 (halo & slack rows stay 0)
        c_ref[...] = jnp.zeros_like(c_ref)     # c_{-1} = 0

    # Shifted windows of h_{t-1}: for each dy, concatenate the 3 dx-shifts along the
    # channel (lane) dim -> (P_pad, 3C) bf16 patch.  Shifts are pure sublane-row
    # offsets of the flat scratch buffer.  All hz_sc reads happen before any write
    # below, so every chunk sees a consistent h_{t-1}.
    patches = []
    for dy in range(3):
        base = PAD + (dy - 1) * Wp2 - 1
        cols = [hz_sc[base + dx: base + dx + P_pad, :] for dx in range(3)]
        patches.append(jnp.concatenate(cols, axis=-1).astype(jnp.bfloat16))
    w_dy = [wh_ref[d] for d in range(3)]       # (3C, 4C) bf16, hoisted loads

    # M-chunked gate accumulation + state update (keeps the f32 accumulator in vregs).
    for r0 in range(0, P_pad, MC):
        p_chunk = [patches[d][r0:r0 + MC, :] for d in range(3)]
        g = gx_ref[r0:r0 + MC, :]
        g = g + jnp.dot(p_chunk[0], w_dy[0], preferred_element_type=jnp.float32)
        g = g + jnp.dot(p_chunk[1], w_dy[1], preferred_element_type=jnp.float32)
        g = g + jnp.dot(p_chunk[2], w_dy[2], preferred_element_type=jnp.float32)

        i = jax.nn.sigmoid(g[:, 0 * C:1 * C])
        f = jax.nn.sigmoid(g[:, 1 * C:2 * C])
        o = jax.nn.sigmoid(g[:, 2 * C:3 * C])
        gg = jnp.tanh(g[:, 3 * C:4 * C])

        c_new = f * c_ref[r0:r0 + MC, :] + i * gg
        h_new = o * jnp.tanh(c_new)

        c_ref[r0:r0 + MC, :] = c_new
        h_ref[r0:r0 + MC, :] = h_new
        # Masked h feeds the next step's conv: halo & pad rows forced back to zero.
        hz_sc[PAD + r0: PAD + r0 + MC, :] = h_new * mask_ref[r0:r0 + MC, :]


def conv_lstm_forward(x_btchw, w_oihw, bias):
    """ConvLSTM forward (batch_first=True, return_sequences=False).

    x_btchw : (B, T, Cin, H, W) float32   (PyTorch layout)
    w_oihw  : (4*Chid, Cin+Chid, 3, 3)    (PyTorch Conv2d weight)
    bias    : (4*Chid,)
    Returns (h_last, (h_last, c_last)), each shaped (B, Chid, H, W).
    """
    B, T, Cin, H, W = x_btchw.shape
    C4, Ctot, kH, kW = w_oihw.shape
    C = C4 // 4
    assert Ctot == Cin + C and kH == 3 and kW == 3

    P = (H + 2) * (W + 2)                    # padded-flat rows per batch element
    MC = 128                                 # M-chunk rows inside the kernel
    P_pad = ((P + MC - 1) // MC) * MC        # row count padded to a chunk multiple
    PAD = -(-(W + 3) // 8) * 8               # slack rows (>= W+3, multiple of 8)
    ROWS = P_pad + 2 * PAD

    x_f32 = x_btchw.astype(jnp.float32)
    w_f32 = w_oihw.astype(jnp.float32)
    b_f32 = bias.astype(jnp.float32)

    # ---- hoisted, fully parallel input projection: conv(x_t, W_x) + bias for all T.
    w_x_hwio = jnp.transpose(w_f32[:, :Cin], (2, 3, 1, 0))            # (3,3,Cin,4C)
    xs = jnp.transpose(x_f32, (0, 1, 3, 4, 2)).reshape(B * T, H, W, Cin)
    gx = jax.lax.conv_general_dilated(
        xs, w_x_hwio, (1, 1), "SAME",
        dimension_numbers=("NHWC", "HWIO", "NHWC")) + b_f32           # (B*T,H,W,4C)
    gx = gx.reshape(B, T, H, W, 4 * C)
    gx = jnp.pad(gx, ((0, 0), (0, 0), (1, 1), (1, 1), (0, 0)))        # spatial halo
    gx = gx.reshape(B, T, P, 4 * C)
    gx = jnp.pad(gx, ((0, 0), (0, 0), (0, P_pad - P), (0, 0)))        # row padding
    gx = jnp.transpose(gx, (1, 0, 2, 3))                              # (T,B,P_pad,4C)

    # ---- recurrent weight with kW folded into K; bf16 MXU operand.
    #      w_h[dy, dx*C + c, o] = w_oihw[o, Cin + c, dy, dx]
    w_h = jnp.transpose(w_f32[:, Cin:], (2, 3, 1, 0))                 # (3,3,C,4C)
    w_h = w_h.reshape(3, 3 * C, 4 * C).astype(jnp.bfloat16)

    # ---- interior mask in the padded-flat layout (constant over batch & time).
    yy = jax.lax.broadcasted_iota(jnp.int32, (H + 2, W + 2), 0)
    xx = jax.lax.broadcasted_iota(jnp.int32, (H + 2, W + 2), 1)
    interior = ((yy >= 1) & (yy <= H) & (xx >= 1) & (xx <= W)).astype(jnp.float32)
    mask = jnp.broadcast_to(interior.reshape(P, 1), (P, C))
    mask = jnp.pad(mask, ((0, P_pad - P), (0, 0)))                    # (P_pad, C)

    kernel = functools.partial(_convlstm_kernel, W=W, C=C, PAD=PAD, MC=MC)

    grid_spec = pltpu.PrefetchScalarGridSpec(
        num_scalar_prefetch=0,
        grid=(B, T),       # batch is parallel (v7x megacore), time is sequential
        in_specs=[
            pl.BlockSpec((None, None, P_pad, 4 * C), lambda b, t: (t, b, 0, 0)),
            pl.BlockSpec((3, 3 * C, 4 * C), lambda b, t: (0, 0, 0)),
            pl.BlockSpec((P_pad, C), lambda b, t: (0, 0)),
        ],
        out_specs=[
            pl.BlockSpec((None, P_pad, C), lambda b, t: (b, 0, 0)),
            pl.BlockSpec((None, P_pad, C), lambda b, t: (b, 0, 0)),
        ],
        scratch_shapes=[pltpu.VMEM((ROWS, C), jnp.float32)],
    )

    h_full, c_full = pl.pallas_call(
        kernel,
        out_shape=(
            jax.ShapeDtypeStruct((B, P_pad, C), jnp.float32),
            jax.ShapeDtypeStruct((B, P_pad, C), jnp.float32),
        ),
        grid_spec=grid_spec,
        compiler_params=pltpu.CompilerParams(
            dimension_semantics=("parallel", "arbitrary")),
    )(gx, w_h, mask)

    def unpack(a):
        a = a[:, :P, :].reshape(B, H + 2, W + 2, C)[:, 1:H + 1, 1:W + 1, :]
        return jnp.transpose(a, (0, 3, 1, 2))                         # NCHW

    h_nchw = unpack(h_full)
    c_nchw = unpack(c_full)
    return h_nchw, (h_nchw, c_nchw)


def _reference_forward(x_btchw, w_oihw, bias):
    """Pure-JAX f32 reference matching the PyTorch module semantics."""
    B, T, Cin, H, W = x_btchw.shape
    Chid = w_oihw.shape[0] // 4
    w_hwio = jnp.transpose(w_oihw, (2, 3, 1, 0))
    h = jnp.zeros((B, H, W, Chid), jnp.float32)
    c = jnp.zeros((B, H, W, Chid), jnp.float32)
    for t in range(T):
        x_t = jnp.transpose(x_btchw[:, t], (0, 2, 3, 1))
        comb = jnp.concatenate([x_t, h], axis=-1)
        gates = jax.lax.conv_general_dilated(
            comb, w_hwio, (1, 1), "SAME",
            dimension_numbers=("NHWC", "HWIO", "NHWC"),
            precision=jax.lax.Precision.HIGHEST) + bias
        i = jax.nn.sigmoid(gates[..., 0 * Chid:1 * Chid])
        f = jax.nn.sigmoid(gates[..., 1 * Chid:2 * Chid])
        o = jax.nn.sigmoid(gates[..., 2 * Chid:3 * Chid])
        g = jnp.tanh(gates[..., 3 * Chid:4 * Chid])
        c = f * c + i * g
        h = o * jnp.tanh(c)
    return jnp.transpose(h, (0, 3, 1, 2)), jnp.transpose(c, (0, 3, 1, 2))


if __name__ == "__main__":
    # ConvLSTM(input_dim=4, hidden_dim=32), batch=2, spatial=16x16, seq=8.
    B, T, Cin, H, W, Chid = 2, 8, 4, 16, 16, 32

    key = jax.random.PRNGKey(0)
    kx, kw, kb = jax.random.split(key, 3)
    x = jax.random.normal(kx, (B, T, Cin, H, W), dtype=jnp.float32)
    fan_in = (Cin + Chid) * 3 * 3
    bound = 1.0 / np.sqrt(fan_in)
    w = jax.random.uniform(kw, (4 * Chid, Cin + Chid, 3, 3),
                           minval=-bound, maxval=bound, dtype=jnp.float32)
    b = jax.random.uniform(kb, (4 * Chid,),
                           minval=-bound, maxval=bound, dtype=jnp.float32)

    fwd = jax.jit(conv_lstm_forward)
    h_out, (h_state, c_state) = fwd(x, w, b)
    jax.block_until_ready((h_out, h_state, c_state))

    h_exp, c_exp = _reference_forward(x, w, b)
    # Tolerance covers bf16 MXU operands (f32 accumulation) vs. the f32 reference.
    np.testing.assert_allclose(np.asarray(h_out), np.asarray(h_exp),
                               atol=3e-2, rtol=3e-2)
    np.testing.assert_allclose(np.asarray(c_state), np.asarray(c_exp),
                               atol=3e-2, rtol=3e-2)

    print("KERNEL_OK")
</pallas_src>

<mosaic_0001>
module attributes {stable_mosaic.version = 11 : i64} {
  func.func @_convlstm_kernel(%arg0: i32, %arg1: i32, %arg2: memref<1x1x384x128xf32, #tpu.memory_space<vmem>>, %arg3: memref<3x96x128xbf16, #tpu.memory_space<vmem>>, %arg4: memref<384x32xf32, #tpu.memory_space<vmem>>, %arg5: memref<1x384x32xf32, #tpu.memory_space<vmem>>, %arg6: memref<1x384x32xf32, #tpu.memory_space<vmem>>, %arg7: memref<432x32xf32, #tpu.memory_space<vmem>>) attributes {dimension_semantics = [#tpu.dimension_semantics<parallel>, #tpu.dimension_semantics<arbitrary>], iteration_bounds = array<i64: 2, 8>, scalar_prefetch = 0 : i64, scratch_operands = 1 : i64, tpu.core_type = #tpu.core_type<tc>, window_params = [{transform_indices = @transform_0, window_bounds = array<i64: 1, 1, 384, 128>}, {pipeline_mode = #tpu.pipeline_mode<synchronous>, transform_indices = @transform_1, window_bounds = array<i64: 3, 96, 128>}, {pipeline_mode = #tpu.pipeline_mode<synchronous>, transform_indices = @transform_2, window_bounds = array<i64: 384, 32>}, {transform_indices = @transform_3, window_bounds = array<i64: 1, 384, 32>}, {transform_indices = @transform_4, window_bounds = array<i64: 1, 384, 32>}]} {
    %c0_i32 = arith.constant 0 : i32
    %0 = arith.cmpi eq, %arg1, %c0_i32 : i32
    %1 = arith.extui %0 : i1 to i32
    %c0_i32_0 = arith.constant 0 : i32
    %2 = arith.cmpi ne, %1, %c0_i32_0 : i32
    scf.if %2 {
      %cst_80 = arith.constant 0.000000e+00 : f32
      %165 = vector.broadcast %cst_80 : f32 to vector<432x32xf32>
      %c0_81 = arith.constant 0 : index
      %c0_82 = arith.constant 0 : index
      %166 = vector.load %arg7[%c0_81, %c0_82] : memref<432x32xf32, #tpu.memory_space<vmem>>, vector<432x32xf32>
      tpu.vector_store %arg7[%c0_81, %c0_82], %165 {strides = array<i32>} : memref<432x32xf32, #tpu.memory_space<vmem>>, vector<432x32xf32>,
      %cst_83 = arith.constant 0.000000e+00 : f32
      %167 = vector.broadcast %cst_83 : f32 to vector<384x32xf32>
      %c0_84 = arith.constant 0 : index
      %c0_85 = arith.constant 0 : index
      %c0_86 = arith.constant 0 : index
      %168 = vector.load %arg6[%c0_84, %c0_85, %c0_86] : memref<1x384x32xf32, #tpu.memory_space<vmem>>, vector<1x384x32xf32>
      %169 = vector.shape_cast %168 : vector<1x384x32xf32> to vector<384x32xf32>
      %170 = vector.shape_cast %167 : vector<384x32xf32> to vector<1x384x32xf32>
      tpu.vector_store %arg6[%c0_84, %c0_85, %c0_86], %170 {strides = array<i32>} : memref<1x384x32xf32, #tpu.memory_space<vmem>>, vector<1x384x32xf32>,
    } else {
    }
    %c5 = arith.constant 5 : index
    %c0 = arith.constant 0 : index
    %3 = vector.load %arg7[%c5, %c0] : memref<432x32xf32, #tpu.memory_space<vmem>>, vector<384x32xf32>
    %c6 = arith.constant 6 : index
    %c0_1 = arith.constant 0 : index
    %4 = vector.load %arg7[%c6, %c0_1] : memref<432x32xf32, #tpu.memory_space<vmem>>, vector<384x32xf32>
    %c7 = arith.constant 7 : index
    %c0_2 = arith.constant 0 : index
    %5 = vector.load %arg7[%c7, %c0_2] : memref<432x32xf32, #tpu.memory_space<vmem>>, vector<384x32xf32>
    %6 = tpu.concatenate %3, %4, %5 in 1 : vector<384x32xf32>, vector<384x32xf32>, vector<384x32xf32> -> vector<384x96xf32>
    %7 = arith.truncf %6 : vector<384x96xf32> to vector<384x96xbf16>
    %c23 = arith.constant 23 : index
    %c0_3 = arith.constant 0 : index
    %8 = vector.load %arg7[%c23, %c0_3] : memref<432x32xf32, #tpu.memory_space<vmem>>, vector<384x32xf32>
    %c24 = arith.constant 24 : index
    %c0_4 = arith.constant 0 : index
    %9 = vector.load %arg7[%c24, %c0_4] : memref<432x32xf32, #tpu.memory_space<vmem>>, vector<384x32xf32>
    %c25 = arith.constant 25 : index
    %c0_5 = arith.constant 0 : index
    %10 = vector.load %arg7[%c25, %c0_5] : memref<432x32xf32, #tpu.memory_space<vmem>>, vector<384x32xf32>
    %11 = tpu.concatenate %8, %9, %10 in 1 : vector<384x32xf32>, vector<384x32xf32>, vector<384x32xf32> -> vector<384x96xf32>
    %12 = arith.truncf %11 : vector<384x96xf32> to vector<384x96xbf16>
    %c41 = arith.constant 41 : index
    %c0_6 = arith.constant 0 : index
    %13 = vector.load %arg7[%c41, %c0_6] : memref<432x32xf32, #tpu.memory_space<vmem>>, vector<384x32xf32>
    %c42 = arith.constant 42 : index
    %c0_7 = arith.constant 0 : index
    %14 = vector.load %arg7[%c42, %c0_7] : memref<432x32xf32, #tpu.memory_space<vmem>>, vector<384x32xf32>
    %c43 = arith.constant 43 : index
    %c0_8 = arith.constant 0 : index
    %15 = vector.load %arg7[%c43, %c0_8] : memref<432x32xf32, #tpu.memory_space<vmem>>, vector<384x32xf32>
    %16 = tpu.concatenate %13, %14, %15 in 1 : vector<384x32xf32>, vector<384x32xf32>, vector<384x32xf32> -> vector<384x96xf32>
    %17 = arith.truncf %16 : vector<384x96xf32> to vector<384x96xbf16>
    %c0_9 = arith.constant 0 : index
    %c0_10 = arith.constant 0 : index
    %c0_11 = arith.constant 0 : index
    %18 = vector.load %arg3[%c0_9, %c0_10, %c0_11] : memref<3x96x128xbf16, #tpu.memory_space<vmem>>, vector<1x96x128xbf16>
    %19 = vector.shape_cast %18 : vector<1x96x128xbf16> to vector<96x128xbf16>
    %c1 = arith.constant 1 : index
    %c0_12 = arith.constant 0 : index
    %c0_13 = arith.constant 0 : index
    %20 = vector.load %arg3[%c1, %c0_12, %c0_13] : memref<3x96x128xbf16, #tpu.memory_space<vmem>>, vector<1x96x128xbf16>
    %21 = vector.shape_cast %20 : vector<1x96x128xbf16> to vector<96x128xbf16>
    %c2 = arith.constant 2 : index
    %c0_14 = arith.constant 0 : index
    %c0_15 = arith.constant 0 : index
    %22 = vector.load %arg3[%c2, %c0_14, %c0_15] : memref<3x96x128xbf16, #tpu.memory_space<vmem>>, vector<1x96x128xbf16>
    %23 = vector.shape_cast %22 : vector<1x96x128xbf16> to vector<96x128xbf16>
    %24 = vector.extract_strided_slice %7 {offsets = [0, 0], sizes = [128, 96], strides = [1, 1]} : vector<384x96xbf16> to vector<128x96xbf16>
    %25 = vector.extract_strided_slice %12 {offsets = [0, 0], sizes = [128, 96], strides = [1, 1]} : vector<384x96xbf16> to vector<128x96xbf16>
    %26 = vector.extract_strided_slice %17 {offsets = [0, 0], sizes = [128, 96], strides = [1, 1]} : vector<384x96xbf16> to vector<128x96xbf16>
    %c0_16 = arith.constant 0 : index
    %c0_17 = arith.constant 0 : index
    %c0_18 = arith.constant 0 : index
    %c0_19 = arith.constant 0 : index
    %27 = vector.load %arg2[%c0_16, %c0_17, %c0_18, %c0_19] : memref<1x1x384x128xf32, #tpu.memory_space<vmem>>, vector<1x1x128x128xf32>
    %28 = vector.shape_cast %27 : vector<1x1x128x128xf32> to vector<128x128xf32>
    %cst = arith.constant dense<0.000000e+00> : vector<128x128xf32>
    %29 = tpu.matmul %24, %19, %cst {dimension_numbers = #tpu.dot_dimension_numbers<[1], [0], [0], [1], [0, 0, 1, 1], [], []>} : vector<128x96xbf16>, vector<96x128xbf16>, vector<128x128xf32> -> vector<128x128xf32>
    %30 = arith.addf %28, %29 : vector<128x128xf32>
    %cst_20 = arith.constant dense<0.000000e+00> : vector<128x128xf32>
    %31 = tpu.matmul %25, %21, %cst_20 {dimension_numbers = #tpu.dot_dimension_numbers<[1], [0], [0], [1], [0, 0, 1, 1], [], []>} : vector<128x96xbf16>, vector<96x128xbf16>, vector<128x128xf32> -> vector<128x128xf32>
    %32 = arith.addf %30, %31 : vector<128x128xf32>
    %cst_21 = arith.constant dense<0.000000e+00> : vector<128x128xf32>
    %33 = tpu.matmul %26, %23, %cst_21 {dimension_numbers = #tpu.dot_dimension_numbers<[1], [0], [0], [1], [0, 0, 1, 1], [], []>} : vector<128x96xbf16>, vector<96x128xbf16>, vector<128x128xf32> -> vector<128x128xf32>
    %34 = arith.addf %32, %33 : vector<128x128xf32>
    %35 = vector.extract_strided_slice %34 {offsets = [0, 0], sizes = [128, 32], strides = [1, 1]} : vector<128x128xf32> to vector<128x32xf32>
    %36 = arith.negf %35 : vector<128x32xf32>
    %37 = math.exp %36 : vector<128x32xf32>
    %cst_22 = arith.constant 1.000000e+00 : f32
    %38 = vector.broadcast %cst_22 : f32 to vector<128x32xf32>
    %39 = arith.addf %38, %37 : vector<128x32xf32>
    %40 = arith.divf %38, %39 : vector<128x32xf32>
    %41 = vector.extract_strided_slice %34 {offsets = [0, 32], sizes = [128, 32], strides = [1, 1]} : vector<128x128xf32> to vector<128x32xf32>
    %42 = arith.negf %41 : vector<128x32xf32>
    %43 = math.exp %42 : vector<128x32xf32>
    %cst_23 = arith.constant 1.000000e+00 : f32
    %44 = vector.broadcast %cst_23 : f32 to vector<128x32xf32>
    %45 = arith.addf %44, %43 : vector<128x32xf32>
    %46 = arith.divf %44, %45 : vector<128x32xf32>
    %47 = vector.extract_strided_slice %34 {offsets = [0, 64], sizes = [128, 32], strides = [1, 1]} : vector<128x128xf32> to vector<128x32xf32>
    %48 = arith.negf %47 : vector<128x32xf32>
    %49 = math.exp %48 : vector<128x32xf32>
    %cst_24 = arith.constant 1.000000e+00 : f32
    %50 = vector.broadcast %cst_24 : f32 to vector<128x32xf32>
    %51 = arith.addf %50, %49 : vector<128x32xf32>
    %52 = arith.divf %50, %51 : vector<128x32xf32>
    %53 = vector.extract_strided_slice %34 {offsets = [0, 96], sizes = [128, 32], strides = [1, 1]} : vector<128x128xf32> to vector<128x32xf32>
    %54 = math.tanh %53 : vector<128x32xf32>
    %c0_25 = arith.constant 0 : index
    %c0_26 = arith.constant 0 : index
    %c0_27 = arith.constant 0 : index
    %55 = vector.load %arg6[%c0_25, %c0_26, %c0_27] : memref<1x384x32xf32, #tpu.memory_space<vmem>>, vector<1x128x32xf32>
    %56 = vector.shape_cast %55 : vector<1x128x32xf32> to vector<128x32xf32>
    %57 = arith.mulf %46, %56 : vector<128x32xf32>
    %58 = arith.mulf %40, %54 : vector<128x32xf32>
    %59 = arith.addf %57, %58 : vector<128x32xf32>
    %60 = math.tanh %59 : vector<128x32xf32>
    %61 = arith.mulf %52, %60 : vector<128x32xf32>
    %c0_28 = arith.constant 0 : index
    %c0_29 = arith.constant 0 : index
    %c0_30 = arith.constant 0 : index
    %62 = vector.load %arg6[%c0_28, %c0_29, %c0_30] : memref<1x384x32xf32, #tpu.memory_space<vmem>>, vector<1x128x32xf32>
    %63 = vector.shape_cast %62 : vector<1x128x32xf32> to vector<128x32xf32>
    %64 = vector.shape_cast %59 : vector<128x32xf32> to vector<1x128x32xf32>
    tpu.vector_store %arg6[%c0_28, %c0_29, %c0_30], %64 {strides = array<i32>} : memref<1x384x32xf32, #tpu.memory_space<vmem>>, vector<1x128x32xf32>,
    %c0_31 = arith.constant 0 : index
    %c0_32 = arith.constant 0 : index
    %c0_33 = arith.constant 0 : index
    %65 = vector.load %arg5[%c0_31, %c0_32, %c0_33] : memref<1x384x32xf32, #tpu.memory_space<vmem>>, vector<1x128x32xf32>
    %66 = vector.shape_cast %65 : vector<1x128x32xf32> to vector<128x32xf32>
    %67 = vector.shape_cast %61 : vector<128x32xf32> to vector<1x128x32xf32>
    tpu.vector_store %arg5[%c0_31, %c0_32, %c0_33], %67 {strides = array<i32>} : memref<1x384x32xf32, #tpu.memory_space<vmem>>, vector<1x128x32xf32>,
    %c0_34 = arith.constant 0 : index
    %c0_35 = arith.constant 0 : index
    %68 = vector.load %arg4[%c0_34, %c0_35] : memref<384x32xf32, #tpu.memory_space<vmem>>, vector<128x32xf32>
    %69 = arith.mulf %61, %68 : vector<128x32xf32>
    %c24_36 = arith.constant 24 : index
    %c0_37 = arith.constant 0 : index
    %70 = vector.load %arg7[%c24_36, %c0_37] : memref<432x32xf32, #tpu.memory_space<vmem>>, vector<128x32xf32>
    tpu.vector_store %arg7[%c24_36, %c0_37], %69 {strides = array<i32>} : memref<432x32xf32, #tpu.memory_space<vmem>>, vector<128x32xf32>,
    %71 = vector.extract_strided_slice %7 {offsets = [128, 0], sizes = [128, 96], strides = [1, 1]} : vector<384x96xbf16> to vector<128x96xbf16>
    %72 = vector.extract_strided_slice %12 {offsets = [128, 0], sizes = [128, 96], strides = [1, 1]} : vector<384x96xbf16> to vector<128x96xbf16>
    %73 = vector.extract_strided_slice %17 {offsets = [128, 0], sizes = [128, 96], strides = [1, 1]} : vector<384x96xbf16> to vector<128x96xbf16>
    %c0_38 = arith.constant 0 : index
    %c0_39 = arith.constant 0 : index
    %c128 = arith.constant 128 : index
    %c0_40 = arith.constant 0 : index
    %74 = vector.load %arg2[%c0_38, %c0_39, %c128, %c0_40] : memref<1x1x384x128xf32, #tpu.memory_space<vmem>>, vector<1x1x128x128xf32>
    %75 = vector.shape_cast %74 : vector<1x1x128x128xf32> to vector<128x128xf32>
    %cst_41 = arith.constant dense<0.000000e+00> : vector<128x128xf32>
    %76 = tpu.matmul %71, %19, %cst_41 {dimension_numbers = #tpu.dot_dimension_numbers<[1], [0], [0], [1], [0, 0, 1, 1], [], []>} : vector<128x96xbf16>, vector<96x128xbf16>, vector<128x128xf32> -> vector<128x128xf32>
    %77 = arith.addf %75, %76 : vector<128x128xf32>
    %cst_42 = arith.constant dense<0.000000e+00> : vector<128x128xf32>
    %78 = tpu.matmul %72, %21, %cst_42 {dimension_numbers = #tpu.dot_dimension_numbers<[1], [0], [0], [1], [0, 0, 1, 1], [], []>} : vector<128x96xbf16>, vector<96x128xbf16>, vector<128x128xf32> -> vector<128x128xf32>
    %79 = arith.addf %77, %78 : vector<128x128xf32>
    %cst_43 = arith.constant dense<0.000000e+00> : vector<128x128xf32>
    %80 = tpu.matmul %73, %23, %cst_43 {dimension_numbers = #tpu.dot_dimension_numbers<[1], [0], [0], [1], [0, 0, 1, 1], [], []>} : vector<128x96xbf16>, vector<96x128xbf16>, vector<128x128xf32> -> vector<128x128xf32>
    %81 = arith.addf %79, %80 : vector<128x128xf32>
    %82 = vector.extract_strided_slice %81 {offsets = [0, 0], sizes = [128, 32], strides = [1, 1]} : vector<128x128xf32> to vector<128x32xf32>
    %83 = arith.negf %82 : vector<128x32xf32>
    %84 = math.exp %83 : vector<128x32xf32>
    %cst_44 = arith.constant 1.000000e+00 : f32
    %85 = vector.broadcast %cst_44 : f32 to vector<128x32xf32>
    %86 = arith.addf %85, %84 : vector<128x32xf32>
    %87 = arith.divf %85, %86 : vector<128x32xf32>
    %88 = vector.extract_strided_slice %81 {offsets = [0, 32], sizes = [128, 32], strides = [1, 1]} : vector<128x128xf32> to vector<128x32xf32>
    %89 = arith.negf %88 : vector<128x32xf32>
    %90 = math.exp %89 : vector<128x32xf32>
    %cst_45 = arith.constant 1.000000e+00 : f32
    %91 = vector.broadcast %cst_45 : f32 to vector<128x32xf32>
    %92 = arith.addf %91, %90 : vector<128x32xf32>
    %93 = arith.divf %91, %92 : vector<128x32xf32>
    %94 = vector.extract_strided_slice %81 {offsets = [0, 64], sizes = [128, 32], strides = [1, 1]} : vector<128x128xf32> to vector<128x32xf32>
    %95 = arith.negf %94 : vector<128x32xf32>
    %96 = math.exp %95 : vector<128x32xf32>
    %cst_46 = arith.constant 1.000000e+00 : f32
    %97 = vector.broadcast %cst_46 : f32 to vector<128x32xf32>
    %98 = arith.addf %97, %96 : vector<128x32xf32>
    %99 = arith.divf %97, %98 : vector<128x32xf32>
    %100 = vector.extract_strided_slice %81 {offsets = [0, 96], sizes = [128, 32], strides = [1, 1]} : vector<128x128xf32> to vector<128x32xf32>
    %101 = math.tanh %100 : vector<128x32xf32>
    %c0_47 = arith.constant 0 : index
    %c128_48 = arith.constant 128 : index
    %c0_49 = arith.constant 0 : index
    %102 = vector.load %arg6[%c0_47, %c128_48, %c0_49] : memref<1x384x32xf32, #tpu.memory_space<vmem>>, vector<1x128x32xf32>
    %103 = vector.shape_cast %102 : vector<1x128x32xf32> to vector<128x32xf32>
    %104 = arith.mulf %93, %103 : vector<128x32xf32>
    %105 = arith.mulf %87, %101 : vector<128x32xf32>
    %106 = arith.addf %104, %105 : vector<128x32xf32>
    %107 = math.tanh %106 : vector<128x32xf32>
    %108 = arith.mulf %99, %107 : vector<128x32xf32>
    %c0_50 = arith.constant 0 : index
    %c128_51 = arith.constant 128 : index
    %c0_52 = arith.constant 0 : index
    %109 = vector.load %arg6[%c0_50, %c128_51, %c0_52] : memref<1x384x32xf32, #tpu.memory_space<vmem>>, vector<1x128x32xf32>
    %110 = vector.shape_cast %109 : vector<1x128x32xf32> to vector<128x32xf32>
    %111 = vector.shape_cast %106 : vector<128x32xf32> to vector<1x128x32xf32>
    tpu.vector_store %arg6[%c0_50, %c128_51, %c0_52], %111 {strides = array<i32>} : memref<1x384x32xf32, #tpu.memory_space<vmem>>, vector<1x128x32xf32>,
    %c0_53 = arith.constant 0 : index
    %c128_54 = arith.constant 128 : index
    %c0_55 = arith.constant 0 : index
    %112 = vector.load %arg5[%c0_53, %c128_54, %c0_55] : memref<1x384x32xf32, #tpu.memory_space<vmem>>, vector<1x128x32xf32>
    %113 = vector.shape_cast %112 : vector<1x128x32xf32> to vector<128x32xf32>
    %114 = vector.shape_cast %108 : vector<128x32xf32> to vector<1x128x32xf32>
    tpu.vector_store %arg5[%c0_53, %c128_54, %c0_55], %114 {strides = array<i32>} : memref<1x384x32xf32, #tpu.memory_space<vmem>>, vector<1x128x32xf32>,
    %c128_56 = arith.constant 128 : index
    %c0_57 = arith.constant 0 : index
    %115 = vector.load %arg4[%c128_56, %c0_57] : memref<384x32xf32, #tpu.memory_space<vmem>>, vector<128x32xf32>
    %116 = arith.mulf %108, %115 : vector<128x32xf32>
    %c152 = arith.constant 152 : index
    %c0_58 = arith.constant 0 : index
    %117 = vector.load %arg7[%c152, %c0_58] : memref<432x32xf32, #tpu.memory_space<vmem>>, vector<128x32xf32>
    tpu.vector_store %arg7[%c152, %c0_58], %116 {strides = array<i32>} : memref<432x32xf32, #tpu.memory_space<vmem>>, vector<128x32xf32>,
    %118 = vector.extract_strided_slice %7 {offsets = [256, 0], sizes = [128, 96], strides = [1, 1]} : vector<384x96xbf16> to vector<128x96xbf16>
    %119 = vector.extract_strided_slice %12 {offsets = [256, 0], sizes = [128, 96], strides = [1, 1]} : vector<384x96xbf16> to vector<128x96xbf16>
    %120 = vector.extract_strided_slice %17 {offsets = [256, 0], sizes = [128, 96], strides = [1, 1]} : vector<384x96xbf16> to vector<128x96xbf16>
    %c0_59 = arith.constant 0 : index
    %c0_60 = arith.constant 0 : index
    %c256 = arith.constant 256 : index
    %c0_61 = arith.constant 0 : index
    %121 = vector.load %arg2[%c0_59, %c0_60, %c256, %c0_61] : memref<1x1x384x128xf32, #tpu.memory_space<vmem>>, vector<1x1x128x128xf32>
    %122 = vector.shape_cast %121 : vector<1x1x128x128xf32> to vector<128x128xf32>
    %cst_62 = arith.constant dense<0.000000e+00> : vector<128x128xf32>
    %123 = tpu.matmul %118, %19, %cst_62 {dimension_numbers = #tpu.dot_dimension_numbers<[1], [0], [0], [1], [0, 0, 1, 1], [], []>} : vector<128x96xbf16>, vector<96x128xbf16>, vector<128x128xf32> -> vector<128x128xf32>
    %124 = arith.addf %122, %123 : vector<128x128xf32>
    %cst_63 = arith.constant dense<0.000000e+00> : vector<128x128xf32>
    %125 = tpu.matmul %119, %21, %cst_63 {dimension_numbers = #tpu.dot_dimension_numbers<[1], [0], [0], [1], [0, 0, 1, 1], [], []>} : vector<128x96xbf16>, vector<96x128xbf16>, vector<128x128xf32> -> vector<128x128xf32>
    %126 = arith.addf %124, %125 : vector<128x128xf32>
    %cst_64 = arith.constant dense<0.000000e+00> : vector<128x128xf32>
    %127 = tpu.matmul %120, %23, %cst_64 {dimension_numbers = #tpu.dot_dimension_numbers<[1], [0], [0], [1], [0, 0, 1, 1], [], []>} : vector<128x96xbf16>, vector<96x128xbf16>, vector<128x128xf32> -> vector<128x128xf32>
    %128 = arith.addf %126, %127 : vector<128x128xf32>
    %129 = vector.extract_strided_slice %128 {offsets = [0, 0], sizes = [128, 32], strides = [1, 1]} : vector<128x128xf32> to vector<128x32xf32>
    %130 = arith.negf %129 : vector<128x32xf32>
    %131 = math.exp %130 : vector<128x32xf32>
    %cst_65 = arith.constant 1.000000e+00 : f32
    %132 = vector.broadcast %cst_65 : f32 to vector<128x32xf32>
    %133 = arith.addf %132, %131 : vector<128x32xf32>
    %134 = arith.divf %132, %133 : vector<128x32xf32>
    %135 = vector.extract_strided_slice %128 {offsets = [0, 32], sizes = [128, 32], strides = [1, 1]} : vector<128x128xf32> to vector<128x32xf32>
    %136 = arith.negf %135 : vector<128x32xf32>
    %137 = math.exp %136 : vector<128x32xf32>
    %cst_66 = arith.constant 1.000000e+00 : f32
    %138 = vector.broadcast %cst_66 : f32 to vector<128x32xf32>
    %139 = arith.addf %138, %137 : vector<128x32xf32>
    %140 = arith.divf %138, %139 : vector<128x32xf32>
    %141 = vector.extract_strided_slice %128 {offsets = [0, 64], sizes = [128, 32], strides = [1, 1]} : vector<128x128xf32> to vector<128x32xf32>
    %142 = arith.negf %141 : vector<128x32xf32>
    %143 = math.exp %142 : vector<128x32xf32>
    %cst_67 = arith.constant 1.000000e+00 : f32
    %144 = vector.broadcast %cst_67 : f32 to vector<128x32xf32>
    %145 = arith.addf %144, %143 : vector<128x32xf32>
    %146 = arith.divf %144, %145 : vector<128x32xf32>
    %147 = vector.extract_strided_slice %128 {offsets = [0, 96], sizes = [128, 32], strides = [1, 1]} : vector<128x128xf32> to vector<128x32xf32>
    %148 = math.tanh %147 : vector<128x32xf32>
    %c0_68 = arith.constant 0 : index
    %c256_69 = arith.constant 256 : index
    %c0_70 = arith.constant 0 : index
    %149 = vector.load %arg6[%c0_68, %c256_69, %c0_70] : memref<1x384x32xf32, #tpu.memory_space<vmem>>, vector<1x128x32xf32>
    %150 = vector.shape_cast %149 : vector<1x128x32xf32> to vector<128x32xf32>
    %151 = arith.mulf %140, %150 : vector<128x32xf32>
    %152 = arith.mulf %134, %148 : vector<128x32xf32>
    %153 = arith.addf %151, %152 : vector<128x32xf32>
    %154 = math.tanh %153 : vector<128x32xf32>
    %155 = arith.mulf %146, %154 : vector<128x32xf32>
    %c0_71 = arith.constant 0 : index
    %c256_72 = arith.constant 256 : index
    %c0_73 = arith.constant 0 : index
    %156 = vector.load %arg6[%c0_71, %c256_72, %c0_73] : memref<1x384x32xf32, #tpu.memory_space<vmem>>, vector<1x128x32xf32>
    %157 = vector.shape_cast %156 : vector<1x128x32xf32> to vector<128x32xf32>
    %158 = vector.shape_cast %153 : vector<128x32xf32> to vector<1x128x32xf32>
    tpu.vector_store %arg6[%c0_71, %c256_72, %c0_73], %158 {strides = array<i32>} : memref<1x384x32xf32, #tpu.memory_space<vmem>>, vector<1x128x32xf32>,
    %c0_74 = arith.constant 0 : index
    %c256_75 = arith.constant 256 : index
    %c0_76 = arith.constant 0 : index
    %159 = vector.load %arg5[%c0_74, %c256_75, %c0_76] : memref<1x384x32xf32, #tpu.memory_space<vmem>>, vector<1x128x32xf32>
    %160 = vector.shape_cast %159 : vector<1x128x32xf32> to vector<128x32xf32>
    %161 = vector.shape_cast %155 : vector<128x32xf32> to vector<1x128x32xf32>
    tpu.vector_store %arg5[%c0_74, %c256_75, %c0_76], %161 {strides = array<i32>} : memref<1x384x32xf32, #tpu.memory_space<vmem>>, vector<1x128x32xf32>,
    %c256_77 = arith.constant 256 : index
    %c0_78 = arith.constant 0 : index
    %162 = vector.load %arg4[%c256_77, %c0_78] : memref<384x32xf32, #tpu.memory_space<vmem>>, vector<128x32xf32>
    %163 = arith.mulf %155, %162 : vector<128x32xf32>
    %c280 = arith.constant 280 : index
    %c0_79 = arith.constant 0 : index
    %164 = vector.load %arg7[%c280, %c0_79] : memref<432x32xf32, #tpu.memory_space<vmem>>, vector<128x32xf32>
    tpu.vector_store %arg7[%c280, %c0_79], %163 {strides = array<i32>} : memref<432x32xf32, #tpu.memory_space<vmem>>, vector<128x32xf32>,
    return
  }
  func.func @transform_0(%arg0: i32, %arg1: i32) -> (i32, i32, i32, i32) {
    %c0_i32 = arith.constant 0 : i32
    %c0_i32_0 = arith.constant 0 : i32
    %c0_i32_1 = arith.constant 0 : i32
    return %arg1, %arg0, %c0_i32, %c0_i32_0 : i32, i32, i32, i32
  }
  func.func @transform_1(%arg0: i32, %arg1: i32) -> (i32, i32, i32) {
    %c0_i32 = arith.constant 0 : i32
    %c0_i32_0 = arith.constant 0 : i32
    %c0_i32_1 = arith.constant 0 : i32
    %c0_i32_2 = arith.constant 0 : i32
    return %c0_i32, %c0_i32_0, %c0_i32_1 : i32, i32, i32
  }
  func.func @transform_2(%arg0: i32, %arg1: i32) -> (i32, i32) {
    %c0_i32 = arith.constant 0 : i32
    %c0_i32_0 = arith.constant 0 : i32
    %c0_i32_1 = arith.constant 0 : i32
    return %c0_i32, %c0_i32_0 : i32, i32
  }
  func.func @transform_3(%arg0: i32, %arg1: i32) -> (i32, i32, i32) {
    %c0_i32 = arith.constant 0 : i32
    %c0_i32_0 = arith.constant 0 : i32
    %c0_i32_1 = arith.constant 0 : i32
    return %arg0, %c0_i32, %c0_i32_0 : i32, i32, i32
  }
  func.func @transform_4(%arg0: i32, %arg1: i32) -> (i32, i32, i32) {
    %c0_i32 = arith.constant 0 : i32
    %c0_i32_0 = arith.constant 0 : i32
    %c0_i32_1 = arith.constant 0 : i32
    return %arg0, %c0_i32, %c0_i32_0 : i32, i32, i32
  }
}

</mosaic_0001>

<llo_original>
// kernel: conv_lstm_forward.1
$region0: #{conv_lstm_forward.1}
  #allocation0 [shape = 'u32[]', space=smem, size = 0x4, offset = 0x4, fixed_abs, tag = 'smem constant byte address 0x4 - core index']
  #allocation1 [shape = 'u32[144,128]{1,0:T(1,128)}', space=vmem, size = 0x12000, scoped, tag = 'internal scratch']
  #allocation2 [shape = 'f32[432,32]{1,0:T(8,128)}', space=vmem, size = 0x36000, scoped, tag = 'scratch operand']
  %s0 = inlined_call_operand.vmem [shape: f32[8,2,384,128], index: 0, kind: input, shape index: {}]
  %s1 = inlined_call_operand.vmem [shape: bf16[3,96,128], index: 1, kind: input, shape index: {}]
  %s2 = inlined_call_operand.vmem [shape: f32[384,32], index: 2, kind: input, shape index: {}]
  %s3 = inlined_call_operand.vmem [shape: f32[2,384,32], index: 3, kind: output, shape index: {0}]
  %s4 = inlined_call_operand.vmem [shape: f32[2,384,32], index: 4, kind: output, shape index: {1}]
  %5 = xla_tuple %s3, %s4
  %s6 = sld [smem:[#allocation0]]
  $region57: #{conv_lstm_forward.1} parent=0
    _
  %s8 = ssub.s32 1, %s6
  %s9 = scalar_select 0, %s8, %s6
  loop: start=0, step=1, limit=18
  $region2: #{conv_lstm_forward.1} parent=0 // loop_pre_header
    _
  $region3: #{conv_lstm_forward.1} parent=0 // loop_header
    %s11 = sphi 0, %s15
    %p12 = scmp.ge.s32.totalorder %s11, 18
    %s18 = sphi 0, %s30
    %s19 = sphi 0, %s26
    %s20 = sphi 0, %s18
    %s21 = sphi 0, %s19
    %s22 = sphi 0, %s20
    %s23 = sphi 0, %s21
    %s35 = sphi 0, %s37
    %s38 = sphi 0, %s35
    %s39 = sphi 0, %s38
    %s55 = sphi 0, %s39
    %s59 = sphi 0, %s59
    %s61 = sphi 0, %s59
    %s62 = sphi 0, %s61
    %s76 = sphi 0, %s62
    %s80 = sphi 0, %s80
    %s82 = sphi 0, %s80
    %s83 = sphi 0, %s82
    %s97 = sphi 0, %s83
    %s103 = sphi 0, %s105
    %s106 = sphi 0, %s103
    %s107 = sphi 0, %s106
    %s123 = sphi 0, %s107
    %s129 = sphi 0, %s131
    %s132 = sphi 0, %s129
    %s133 = sphi 0, %s132
    %s149 = sphi 0, %s133
  $region4: #{conv_lstm_forward.1} parent=0 // loop_header_branch
    %14 = sbr.rel (%p12) target = $region8
  $region5: #{conv_lstm_forward.1} parent=0 // loop_body
    %s16 = ssub.s32 %s11, 1
    %s17 = ssub.s32 %s11, 2
    %s24 = sadd.s32 1, %s19
    %p25 = scmp.ge.s32.totalorder %s24, 8
    %s26 = scalar_select %p25, 0, %s24
    %s27 = sadd.s32 1, %s18
    %s28 = scalar_select %p25, %s27, %s18
    %p29 = scmp.ge.s32.totalorder %s28, 2
    %s30 = scalar_select %p29, 0, %s28
    %s31 = ssub.s32 %s19, %s26
    %s32 = ssub.s32 %s18, %s30
    %s33 = sor.u32 %s31, %s32
    %p34 = scmp.eq.s32.totalorder %s33, 0
    %s36 = sadd.s32 %s35, 1
    %s37 = scalar_select %p34, %s35, %s36
    %p40 = pneg %p34
    %p41 = scmp.eq.s32.totalorder %s11, 15
    %p42 = por %p40, %p41
    %p43 = scmp.ne.s32.totalorder %s35, %s38
    %p44 = scmp.eq.s32.totalorder %s11, 0
    %p45 = por %p43, %p44
    %p46 = scmp.ne.s32.totalorder %s35, %s38
    %p47 = scmp.eq.s32.totalorder %s16, 15
    %p48 = por %p46, %p47
    %p49 = scmp.ne.s32.totalorder %s38, %s39
    %p50 = scmp.eq.s32.totalorder %s16, 0
    %p51 = por %p49, %p50
    %p52 = scmp.ne.s32.totalorder %s38, %s39
    %p53 = scmp.eq.s32.totalorder %s17, 15
    %p54 = por %p52, %p53
    %p56 = scmp.ne.s32.totalorder %s39, %s55
    %p57 = scmp.eq.s32.totalorder %s17, 0
    %p58 = por %p56, %p57
    %s60 = sadd.s32 %s59, 1
    %p63 = scmp.eq.s32.totalorder %s11, 15
    %p64 = scmp.ne.s32.totalorder %s59, %s61
    %p65 = scmp.eq.s32.totalorder %s11, 0
    %p66 = por %p64, %p65
    %p67 = scmp.ne.s32.totalorder %s59, %s61
    %p68 = scmp.eq.s32.totalorder %s16, 15
    %p69 = por %p67, %p68
    %p70 = scmp.ne.s32.totalorder %s61, %s62
    %p71 = scmp.eq.s32.totalorder %s16, 0
    %p72 = por %p70, %p71
    %p73 = scmp.ne.s32.totalorder %s61, %s62
    %p74 = scmp.eq.s32.totalorder %s17, 15
    %p75 = por %p73, %p74
    %p77 = scmp.ne.s32.totalorder %s62, %s76
    %p78 = scmp.eq.s32.totalorder %s17, 0
    %p79 = por %p77, %p78
    %s81 = sadd.s32 %s80, 1
    %p84 = scmp.eq.s32.totalorder %s11, 15
    %p85 = scmp.ne.s32.totalorder %s80, %s82
    %p86 = scmp.eq.s32.totalorder %s11, 0
    %p87 = por %p85, %p86
    %p88 = scmp.ne.s32.totalorder %s80, %s82
    %p89 = scmp.eq.s32.totalorder %s16, 15
    %p90 = por %p88, %p89
    %p91 = scmp.ne.s32.totalorder %s82, %s83
    %p92 = scmp.eq.s32.totalorder %s16, 0
    %p93 = por %p91, %p92
    %p94 = scmp.ne.s32.totalorder %s82, %s83
    %p95 = scmp.eq.s32.totalorder %s17, 15
    %p96 = por %p94, %p95
    %p98 = scmp.ne.s32.totalorder %s83, %s97
    %p99 = scmp.eq.s32.totalorder %s17, 0
    %p100 = por %p98, %p99
    %s101 = ssub.s32 %s18, %s30
    %p102 = scmp.eq.s32.totalorder %s101, 0
    %s104 = sadd.s32 %s103, 1
    %s105 = scalar_select %p102, %s103, %s104
    %p108 = pneg %p102
    %p109 = scmp.eq.s32.totalorder %s11, 15
    %p110 = por %p108, %p109
    %p111 = scmp.ne.s32.totalorder %s103, %s106
    %p112 = scmp.eq.s32.totalorder %s11, 0
    %p113 = por %p111, %p112
    %p114 = scmp.ne.s32.totalorder %s103, %s106
    %p115 = scmp.eq.s32.totalorder %s16, 15
    %p116 = por %p114, %p115
    %p117 = scmp.ne.s32.totalorder %s106, %s107
    %p118 = scmp.eq.s32.totalorder %s16, 0
    %p119 = por %p117, %p118
    %p120 = scmp.ne.s32.totalorder %s106, %s107
    %p121 = scmp.eq.s32.totalorder %s17, 15
    %p122 = por %p120, %p121
    %p124 = scmp.ne.s32.totalorder %s107, %s123
    %p125 = scmp.eq.s32.totalorder %s17, 0
    %p126 = por %p124, %p125
    %s127 = ssub.s32 %s18, %s30
    %p128 = scmp.eq.s32.totalorder %s127, 0
    %s130 = sadd.s32 %s129, 1
    %s131 = scalar_select %p128, %s129, %s130
    %p134 = pneg %p128
    %p135 = scmp.eq.s32.totalorder %s11, 15
    %p136 = por %p134, %p135
    %p137 = scmp.ne.s32.totalorder %s129, %s132
    %p138 = scmp.eq.s32.totalorder %s11, 0
    %p139 = por %p137, %p138
    %p140 = scmp.ne.s32.totalorder %s129, %s132
    %p141 = scmp.eq.s32.totalorder %s16, 15
    %p142 = por %p140, %p141
    %p143 = scmp.ne.s32.totalorder %s132, %s133
    %p144 = scmp.eq.s32.totalorder %s16, 0
    %p145 = por %p143, %p144
    %p146 = scmp.ne.s32.totalorder %s132, %s133
    %p147 = scmp.eq.s32.totalorder %s17, 15
    %p148 = por %p146, %p147
    %p150 = scmp.ne.s32.totalorder %s133, %s149
    %p151 = scmp.eq.s32.totalorder %s17, 0
    %p152 = por %p150, %p151
    %p153 = scmp.le.s32.totalorder 1, %s11
    %p154 = scmp.lt.s32.totalorder %s11, 17
    %p155 = pnand %p153, %p154
    %p156 = pneg %p155
    // Predicated region
    $region9: #{conv_lstm_forward.1} parent=5 // pred_check
      _
    $region10: #{conv_lstm_forward.1} parent=5 // pred_check_branch
      %158 = sbr.rel (%p155) target = $region12
    $region11: #{conv_lstm_forward.1} parent=5 // pred_region
      %s159 = ssub.s32 %s11, 1
      // Predicated region
      $region13: #{conv_lstm_forward.1} parent=11 // pred_check
        %p160 = pneg %p72
      $region14: #{conv_lstm_forward.1} parent=11 // pred_check_branch
        %162 = sbr.rel (%p160) target = $region16
      $region15: #{conv_lstm_forward.1} parent=11 // pred_region
        _
      $region16: #{conv_lstm_forward.1} parent=11 // pred_fallthru
        _
      // Predicated region
      $region17: #{conv_lstm_forward.1} parent=11 // pred_check
        %p163 = pneg %p93
      $region18: #{conv_lstm_forward.1} parent=11 // pred_check_branch
        %165 = sbr.rel (%p163) target = $region20
      $region19: #{conv_lstm_forward.1} parent=11 // pred_region
        _
      $region20: #{conv_lstm_forward.1} parent=11 // pred_fallthru
        _
    $region12: #{conv_lstm_forward.1} parent=5 // pred_fallthru
      _
    %p166 = scmp.lt.s32.totalorder %s11, 16
    // Predicated region
    $region21: #{conv_lstm_forward.1} parent=5 // pred_check
      %p167 = pneg %p166
    $region22: #{conv_lstm_forward.1} parent=5 // pred_check_branch
      %169 = sbr.rel (%p167) target = $region24
    $region23: #{conv_lstm_forward.1} parent=5 // pred_region
      // Predicated region
      $region25: #{conv_lstm_forward.1} parent=23 // pred_check
        %p170 = pneg %p45
      $region26: #{conv_lstm_forward.1} parent=23 // pred_check_branch
        %172 = sbr.rel (%p170) target = $region28
      $region27: #{conv_lstm_forward.1} parent=23 // pred_region
        %p173 = scmp.lt.s32.totalorder %s19, 7
        %s174 = scalar_select %p173, %s19, 7
        %p175 = scmp.lt.s32.totalorder %s18, 1
        %s176 = scalar_select %p175, %s18, 1
        %s177 = smul.addr %s176, 48
        %s178 = smul.addr %s174, 96
        %s179 = sadd.s32 %s177, %s178
        %s180 = smul.addr %s179, 8
        %s181 = scalar_lea.vmem %s0, %s180
      $region28: #{conv_lstm_forward.1} parent=23 // pred_fallthru
        _
    $region24: #{conv_lstm_forward.1} parent=5 // pred_fallthru
      _
    %p182 = scmp.le.s32.totalorder 1, %s11
    %p183 = scmp.lt.s32.totalorder %s11, 17
    %p184 = pnand %p182, %p183
    %p185 = pneg %p184
    // Predicated region
    $region29: #{conv_lstm_forward.1} parent=5 // pred_check
      _
    $region30: #{conv_lstm_forward.1} parent=5 // pred_check_branch
      %187 = sbr.rel (%p184) target = $region32
    $region31: #{conv_lstm_forward.1} parent=5 // pred_region
      %s188 = ssub.s32 %s11, 1
      %p189 = scmp.lt.s32.totalorder %s21, 7
      %s190 = scalar_select %p189, %s21, 7
      %p191 = scmp.lt.s32.totalorder %s20, 1
      %s192 = scalar_select %p191, %s20, 1
      %s193 = smul.addr %s192, 48
      %s194 = smul.addr %s190, 96
      %s195 = sadd.s32 %s193, %s194
      %s196 = smul.addr %s195, 8
      %s197 = scalar_lea.vmem %s0, %s196
      %p198 = pneg %p51
      %p199 = pneg %p48
      %p200 = pneg %p72
      %p201 = pneg %p69
      %p202 = pneg %p93
      %p203 = pneg %p90
      %p204 = pneg %p119
      %p205 = pneg %p116
      %p206 = scmp.lt.s32.totalorder %s20, 1
      %s207 = scalar_select %p206, %s20, 1
      %s208 = smul.addr %s207, 48
      %s209 = smul.addr %s208, 8
      %s210 = scalar_lea.vmem %s3, %s209
      %p211 = pneg %p145
      %p212 = pneg %p142
      %p213 = scmp.lt.s32.totalorder %s20, 1
      %s214 = scalar_select %p213, %s20, 1
      %s215 = smul.addr %s214, 48
      %s216 = smul.addr %s215, 8
      %s217 = scalar_lea.vmem %s4, %s216
      %p218 = scmp.lt.s32.totalorder %s21, 7
      %s219 = scalar_select %p218, %s21, 7
      %p220 = scmp.lt.s32.totalorder %s20, 1
      %s221 = scalar_select %p220, %s20, 1
      %s222 = smul.addr %s221, 48
      %s223 = smul.addr %s219, 96
      %s224 = sadd.s32 %s222, %s223
      %s225 = smul.addr %s224, 8
      %s226 = scalar_lea.vmem %s0, %s225
      %p227 = scmp.lt.s32.totalorder %s20, 1
      %s228 = scalar_select %p227, %s20, 1
      %s229 = smul.addr %s228, 48
      %s230 = smul.addr %s229, 8
      %s231 = scalar_lea.vmem %s3, %s230
      %p232 = scmp.lt.s32.totalorder %s20, 1
      %s233 = scalar_select %p232, %s20, 1
      %s234 = smul.addr %s233, 48
      %s235 = smul.addr %s234, 8
      %s236 = scalar_lea.vmem %s4, %s235
      %p238 = scmp.eq.s32.totalorder %s21, 0
      // Predicated region
      $region33: #{conv_lstm_forward.1} parent=31 // pred_check
        %p239 = pneg %p238
      $region34: #{conv_lstm_forward.1} parent=31 // pred_check_branch
        %241 = sbr.rel (%p239) target = $region36
      $region35: #{conv_lstm_forward.1} parent=31 // pred_region
        %vm242 = vcmask 261120
        %243 = vst.msk [vmem:[#allocation2] sm:$0xff] %vm242, 0.0
        %244 = vst.msk [vmem:[#allocation2 + $0x8] sm:$0xff] %vm242, 0.0
        %245 = vst.msk [vmem:[#allocation2 + $0x10] sm:$0xff] %vm242, 0.0
        %246 = vst.msk [vmem:[#allocation2 + $0x18] sm:$0xff] %vm242, 0.0
        %247 = vst.msk [vmem:[#allocation2 + $0x20] sm:$0xff] %vm242, 0.0
        %248 = vst.msk [vmem:[#allocation2 + $0x28] sm:$0xff] %vm242, 0.0
        %249 = vst.msk [vmem:[#allocation2 + $0x30] sm:$0xff] %vm242, 0.0
        %250 = vst.msk [vmem:[#allocation2 + $0x38] sm:$0xff] %vm242, 0.0
        %251 = vst.msk [vmem:[#allocation2 + $0x40] sm:$0xff] %vm242, 0.0
        %252 = vst.msk [vmem:[#allocation2 + $0x48] sm:$0xff] %vm242, 0.0
        %253 = vst.msk [vmem:[#allocation2 + $0x50] sm:$0xff] %vm242, 0.0
        %254 = vst.msk [vmem:[#allocation2 + $0x58] sm:$0xff] %vm242, 0.0
        %255 = vst.msk [vmem:[#allocation2 + $0x60] sm:$0xff] %vm242, 0.0
        %256 = vst.msk [vmem:[#allocation2 + $0x68] sm:$0xff] %vm242, 0.0
        %257 = vst.msk [vmem:[#allocation2 + $0x70] sm:$0xff] %vm242, 0.0
        %258 = vst.msk [vmem:[#allocation2 + $0x78] sm:$0xff] %vm242, 0.0
        %259 = vst.msk [vmem:[#allocation2 + $0x80] sm:$0xff] %vm242, 0.0
        %260 = vst.msk [vmem:[#allocation2 + $0x88] sm:$0xff] %vm242, 0.0
        %261 = vst.msk [vmem:[#allocation2 + $0x90] sm:$0xff] %vm242, 0.0
        %262 = vst.msk [vmem:[#allocation2 + $0x98] sm:$0xff] %vm242, 0.0
        %263 = vst.msk [vmem:[#allocation2 + $0xa0] sm:$0xff] %vm242, 0.0
        %264 = vst.msk [vmem:[#allocation2 + $0xa8] sm:$0xff] %vm242, 0.0
        %265 = vst.msk [vmem:[#allocation2 + $0xb0] sm:$0xff] %vm242, 0.0
        %266 = vst.msk [vmem:[#allocation2 + $0xb8] sm:$0xff] %vm242, 0.0
        %267 = vst.msk [vmem:[#allocation2 + $0xc0] sm:$0xff] %vm242, 0.0
        %268 = vst.msk [vmem:[#allocation2 + $0xc8] sm:$0xff] %vm242, 0.0
        %269 = vst.msk [vmem:[#allocation2 + $0xd0] sm:$0xff] %vm242, 0.0
        %270 = vst.msk [vmem:[#allocation2 + $0xd8] sm:$0xff] %vm242, 0.0
        %271 = vst.msk [vmem:[#allocation2 + $0xe0] sm:$0xff] %vm242, 0.0
        %272 = vst.msk [vmem:[#allocation2 + $0xe8] sm:$0xff] %vm242, 0.0
        %273 = vst.msk [vmem:[#allocation2 + $0xf0] sm:$0xff] %vm242, 0.0
        %274 = vst.msk [vmem:[#allocation2 + $0xf8] sm:$0xff] %vm242, 0.0
        %275 = vst.msk [vmem:[#allocation2 + $0x100] sm:$0xff] %vm242, 0.0
        %276 = vst.msk [vmem:[#allocation2 + $0x108] sm:$0xff] %vm242, 0.0
        %277 = vst.msk [vmem:[#allocation2 + $0x110] sm:$0xff] %vm242, 0.0
        %278 = vst.msk [vmem:[#allocation2 + $0x118] sm:$0xff] %vm242, 0.0
        %279 = vst.msk [vmem:[#allocation2 + $0x120] sm:$0xff] %vm242, 0.0
        %280 = vst.msk [vmem:[#allocation2 + $0x128] sm:$0xff] %vm242, 0.0
        %281 = vst.msk [vmem:[#allocation2 + $0x130] sm:$0xff] %vm242, 0.0
        %282 = vst.msk [vmem:[#allocation2 + $0x138] sm:$0xff] %vm242, 0.0
        %283 = vst.msk [vmem:[#allocation2 + $0x140] sm:$0xff] %vm242, 0.0
        %284 = vst.msk [vmem:[#allocation2 + $0x148] sm:$0xff] %vm242, 0.0
        %285 = vst.msk [vmem:[#allocation2 + $0x150] sm:$0xff] %vm242, 0.0
        %286 = vst.msk [vmem:[#allocation2 + $0x158] sm:$0xff] %vm242, 0.0
        %287 = vst.msk [vmem:[#allocation2 + $0x160] sm:$0xff] %vm242, 0.0
        %288 = vst.msk [vmem:[#allocation2 + $0x168] sm:$0xff] %vm242, 0.0
        %289 = vst.msk [vmem:[#allocation2 + $0x170] sm:$0xff] %vm242, 0.0
        %290 = vst.msk [vmem:[#allocation2 + $0x178] sm:$0xff] %vm242, 0.0
        %291 = vst.msk [vmem:[#allocation2 + $0x180] sm:$0xff] %vm242, 0.0
        %292 = vst.msk [vmem:[#allocation2 + $0x188] sm:$0xff] %vm242, 0.0
        %293 = vst.msk [vmem:[#allocation2 + $0x190] sm:$0xff] %vm242, 0.0
        %294 = vst.msk [vmem:[#allocation2 + $0x198] sm:$0xff] %vm242, 0.0
        %295 = vst.msk [vmem:[#allocation2 + $0x1a0] sm:$0xff] %vm242, 0.0
        %296 = vst.msk [vmem:[#allocation2 + $0x1a8] sm:$0xff] %vm242, 0.0
        %297 = vst.msk [vmem:[%s236] sm:$0xff] %vm242, 0.0
        %298 = vst.msk [vmem:[%s236 + $0x8] sm:$0xff] %vm242, 0.0
        %299 = vst.msk [vmem:[%s236 + $0x10] sm:$0xff] %vm242, 0.0
        %300 = vst.msk [vmem:[%s236 + $0x18] sm:$0xff] %vm242, 0.0
        %301 = vst.msk [vmem:[%s236 + $0x20] sm:$0xff] %vm242, 0.0
        %302 = vst.msk [vmem:[%s236 + $0x28] sm:$0xff] %vm242, 0.0
        %303 = vst.msk [vmem:[%s236 + $0x30] sm:$0xff] %vm242, 0.0
        %304 = vst.msk [vmem:[%s236 + $0x38] sm:$0xff] %vm242, 0.0
        %305 = vst.msk [vmem:[%s236 + $0x40] sm:$0xff] %vm242, 0.0
        %306 = vst.msk [vmem:[%s236 + $0x48] sm:$0xff] %vm242, 0.0
        %307 = vst.msk [vmem:[%s236 + $0x50] sm:$0xff] %vm242, 0.0
        %308 = vst.msk [vmem:[%s236 + $0x58] sm:$0xff] %vm242, 0.0
        %309 = vst.msk [vmem:[%s236 + $0x60] sm:$0xff] %vm242, 0.0
        %310 = vst.msk [vmem:[%s236 + $0x68] sm:$0xff] %vm242, 0.0
        %311 = vst.msk [vmem:[%s236 + $0x70] sm:$0xff] %vm242, 0.0
        %312 = vst.msk [vmem:[%s236 + $0x78] sm:$0xff] %vm242, 0.0
        %313 = vst.msk [vmem:[%s236 + $0x80] sm:$0xff] %vm242, 0.0
        %314 = vst.msk [vmem:[%s236 + $0x88] sm:$0xff] %vm242, 0.0
        %315 = vst.msk [vmem:[%s236 + $0x90] sm:$0xff] %vm242, 0.0
        %316 = vst.msk [vmem:[%s236 + $0x98] sm:$0xff] %vm242, 0.0
        %317 = vst.msk [vmem:[%s236 + $0xa0] sm:$0xff] %vm242, 0.0
        %318 = vst.msk [vmem:[%s236 + $0xa8] sm:$0xff] %vm242, 0.0
        %319 = vst.msk [vmem:[%s236 + $0xb0] sm:$0xff] %vm242, 0.0
        %320 = vst.msk [vmem:[%s236 + $0xb8] sm:$0xff] %vm242, 0.0
        %321 = vst.msk [vmem:[%s236 + $0xc0] sm:$0xff] %vm242, 0.0
        %322 = vst.msk [vmem:[%s236 + $0xc8] sm:$0xff] %vm242, 0.0
        %323 = vst.msk [vmem:[%s236 + $0xd0] sm:$0xff] %vm242, 0.0
        %324 = vst.msk [vmem:[%s236 + $0xd8] sm:$0xff] %vm242, 0.0
        %325 = vst.msk [vmem:[%s236 + $0xe0] sm:$0xff] %vm242, 0.0
        %326 = vst.msk [vmem:[%s236 + $0xe8] sm:$0xff] %vm242, 0.0
        %327 = vst.msk [vmem:[%s236 + $0xf0] sm:$0xff] %vm242, 0.0
        %328 = vst.msk [vmem:[%s236 + $0xf8] sm:$0xff] %vm242, 0.0
        %329 = vst.msk [vmem:[%s236 + $0x100] sm:$0xff] %vm242, 0.0
        %330 = vst.msk [vmem:[%s236 + $0x108] sm:$0xff] %vm242, 0.0
        %331 = vst.msk [vmem:[%s236 + $0x110] sm:$0xff] %vm242, 0.0
        %332 = vst.msk [vmem:[%s236 + $0x118] sm:$0xff] %vm242, 0.0
        %333 = vst.msk [vmem:[%s236 + $0x120] sm:$0xff] %vm242, 0.0
        %334 = vst.msk [vmem:[%s236 + $0x128] sm:$0xff] %vm242, 0.0
        %335 = vst.msk [vmem:[%s236 + $0x130] sm:$0xff] %vm242, 0.0
        %336 = vst.msk [vmem:[%s236 + $0x138] sm:$0xff] %vm242, 0.0
        %337 = vst.msk [vmem:[%s236 + $0x140] sm:$0xff] %vm242, 0.0
        %338 = vst.msk [vmem:[%s236 + $0x148] sm:$0xff] %vm242, 0.0
        %339 = vst.msk [vmem:[%s236 + $0x150] sm:$0xff] %vm242, 0.0
        %340 = vst.msk [vmem:[%s236 + $0x158] sm:$0xff] %vm242, 0.0
        %341 = vst.msk [vmem:[%s236 + $0x160] sm:$0xff] %vm242, 0.0
        %342 = vst.msk [vmem:[%s236 + $0x168] sm:$0xff] %vm242, 0.0
        %343 = vst.msk [vmem:[%s236 + $0x170] sm:$0xff] %vm242, 0.0
        %344 = vst.msk [vmem:[%s236 + $0x178] sm:$0xff] %vm242, 0.0
      $region36: #{conv_lstm_forward.1} parent=31 // pred_fallthru
        _
      %v345 = vld [vmem:[#allocation2 + $0x5] sm:$0xff]
      %v346 = vld [vmem:[#allocation2 + $0xd] sm:$0xff]
      %v347 = vld [vmem:[#allocation2 + $0x15] sm:$0xff]
      %v348 = vld [vmem:[#allocation2 + $0x1d] sm:$0xff]
      %v349 = vld [vmem:[#allocation2 + $0x25] sm:$0xff]
      %v350 = vld [vmem:[#allocation2 + $0x2d] sm:$0xff]
      %v351 = vld [vmem:[#allocation2 + $0x35] sm:$0xff]
      %v352 = vld [vmem:[#allocation2 + $0x3d] sm:$0xff]
      %v353 = vld [vmem:[#allocation2 + $0x45] sm:$0xff]
      %v354 = vld [vmem:[#allocation2 + $0x4d] sm:$0xff]
      %v355 = vld [vmem:[#allocation2 + $0x55] sm:$0xff]
      %v356 = vld [vmem:[#allocation2 + $0x5d] sm:$0xff]
      %v357 = vld [vmem:[#allocation2 + $0x65] sm:$0xff]
      %v358 = vld [vmem:[#allocation2 + $0x6d] sm:$0xff]
      %v359 = vld [vmem:[#allocation2 + $0x75] sm:$0xff]
      %v360 = vld [vmem:[#allocation2 + $0x7d] sm:$0xff]
      %v361 = vld [vmem:[#allocation2 + $0x85] sm:$0xff]
      %v362 = vld [vmem:[#allocation2 + $0x8d] sm:$0xff]
      %v363 = vld [vmem:[#allocation2 + $0x95] sm:$0xff]
      %v364 = vld [vmem:[#allocation2 + $0x9d] sm:$0xff]
      %v365 = vld [vmem:[#allocation2 + $0xa5] sm:$0xff]
      %v366 = vld [vmem:[#allocation2 + $0xad] sm:$0xff]
      %v367 = vld [vmem:[#allocation2 + $0xb5] sm:$0xff]
      %v368 = vld [vmem:[#allocation2 + $0xbd] sm:$0xff]
      %v369 = vld [vmem:[#allocation2 + $0xc5] sm:$0xff]
      %v370 = vld [vmem:[#allocation2 + $0xcd] sm:$0xff]
      %v371 = vld [vmem:[#allocation2 + $0xd5] sm:$0xff]
      %v372 = vld [vmem:[#allocation2 + $0xdd] sm:$0xff]
      %v373 = vld [vmem:[#allocation2 + $0xe5] sm:$0xff]
      %v374 = vld [vmem:[#allocation2 + $0xed] sm:$0xff]
      %v375 = vld [vmem:[#allocation2 + $0xf5] sm:$0xff]
      %v376 = vld [vmem:[#allocation2 + $0xfd] sm:$0xff]
      %v377 = vld [vmem:[#allocation2 + $0x105] sm:$0xff]
      %v378 = vld [vmem:[#allocation2 + $0x10d] sm:$0xff]
      %v379 = vld [vmem:[#allocation2 + $0x115] sm:$0xff]
      %v380 = vld [vmem:[#allocation2 + $0x11d] sm:$0xff]
      %v381 = vld [vmem:[#allocation2 + $0x125] sm:$0xff]
      %v382 = vld [vmem:[#allocation2 + $0x12d] sm:$0xff]
      %v383 = vld [vmem:[#allocation2 + $0x135] sm:$0xff]
      %v384 = vld [vmem:[#allocation2 + $0x13d] sm:$0xff]
      %v385 = vld [vmem:[#allocation2 + $0x145] sm:$0xff]
      %v386 = vld [vmem:[#allocation2 + $0x14d] sm:$0xff]
      %v387 = vld [vmem:[#allocation2 + $0x155] sm:$0xff]
      %v388 = vld [vmem:[#allocation2 + $0x15d] sm:$0xff]
      %v389 = vld [vmem:[#allocation2 + $0x165] sm:$0xff]
      %v390 = vld [vmem:[#allocation2 + $0x16d] sm:$0xff]
      %v391 = vld [vmem:[#allocation2 + $0x175] sm:$0xff]
      %v392 = vld [vmem:[#allocation2 + $0x17d] sm:$0xff]
      %v393 = vld [vmem:[#allocation2 + $0x6] sm:$0xff]
      %v394 = vld [vmem:[#allocation2 + $0xe] sm:$0xff]
      %v395 = vld [vmem:[#allocation2 + $0x16] sm:$0xff]
      %v396 = vld [vmem:[#allocation2 + $0x1e] sm:$0xff]
      %v397 = vld [vmem:[#allocation2 + $0x26] sm:$0xff]
      %v398 = vld [vmem:[#allocation2 + $0x2e] sm:$0xff]
      %v399 = vld [vmem:[#allocation2 + $0x36] sm:$0xff]
      %v400 = vld [vmem:[#allocation2 + $0x3e] sm:$0xff]
      %v401 = vld [vmem:[#allocation2 + $0x46] sm:$0xff]
      %v402 = vld [vmem:[#allocation2 + $0x4e] sm:$0xff]
      %v403 = vld [vmem:[#allocation2 + $0x56] sm:$0xff]
      %v404 = vld [vmem:[#allocation2 + $0x5e] sm:$0xff]
      %v405 = vld [vmem:[#allocation2 + $0x66] sm:$0xff]
      %v406 = vld [vmem:[#allocation2 + $0x6e] sm:$0xff]
      %v407 = vld [vmem:[#allocation2 + $0x76] sm:$0xff]
      %v408 = vld [vmem:[#allocation2 + $0x7e] sm:$0xff]
      %v409 = vld [vmem:[#allocation2 + $0x86] sm:$0xff]
      %v410 = vld [vmem:[#allocation2 + $0x8e] sm:$0xff]
      %v411 = vld [vmem:[#allocation2 + $0x96] sm:$0xff]
      %v412 = vld [vmem:[#allocation2 + $0x9e] sm:$0xff]
      %v413 = vld [vmem:[#allocation2 + $0xa6] sm:$0xff]
      %v414 = vld [vmem:[#allocation2 + $0xae] sm:$0xff]
      %v415 = vld [vmem:[#allocation2 + $0xb6] sm:$0xff]
      %v416 = vld [vmem:[#allocation2 + $0xbe] sm:$0xff]
      %v417 = vld [vmem:[#allocation2 + $0xc6] sm:$0xff]
      %v418 = vld [vmem:[#allocation2 + $0xce] sm:$0xff]
      %v419 = vld [vmem:[#allocation2 + $0xd6] sm:$0xff]
      %v420 = vld [vmem:[#allocation2 + $0xde] sm:$0xff]
      %v421 = vld [vmem:[#allocation2 + $0xe6] sm:$0xff]
      %v422 = vld [vmem:[#allocation2 + $0xee] sm:$0xff]
      %v423 = vld [vmem:[#allocation2 + $0xf6] sm:$0xff]
      %v424 = vld [vmem:[#allocation2 + $0xfe] sm:$0xff]
      %v425 = vld [vmem:[#allocation2 + $0x106] sm:$0xff]
      %v426 = vld [vmem:[#allocation2 + $0x10e] sm:$0xff]
      %v427 = vld [vmem:[#allocation2 + $0x116] sm:$0xff]
      %v428 = vld [vmem:[#allocation2 + $0x11e] sm:$0xff]
      %v429 = vld [vmem:[#allocation2 + $0x126] sm:$0xff]
      %v430 = vld [vmem:[#allocation2 + $0x12e] sm:$0xff]
      %v431 = vld [vmem:[#allocation2 + $0x136] sm:$0xff]
      %v432 = vld [vmem:[#allocation2 + $0x13e] sm:$0xff]
      %v433 = vld [vmem:[#allocation2 + $0x146] sm:$0xff]
      %v434 = vld [vmem:[#allocation2 + $0x14e] sm:$0xff]
      %v435 = vld [vmem:[#allocation2 + $0x156] sm:$0xff]
      %v436 = vld [vmem:[#allocation2 + $0x15e] sm:$0xff]
      %v437 = vld [vmem:[#allocation2 + $0x166] sm:$0xff]
      %v438 = vld [vmem:[#allocation2 + $0x16e] sm:$0xff]
      %v439 = vld [vmem:[#allocation2 + $0x176] sm:$0xff]
      %v440 = vld [vmem:[#allocation2 + $0x17e] sm:$0xff]
      %v441 = vld [vmem:[#allocation2 + $0x7] sm:$0xff]
      %v442 = vld [vmem:[#allocation2 + $0xf] sm:$0xff]
      %v443 = vld [vmem:[#allocation2 + $0x17] sm:$0xff]
      %v444 = vld [vmem:[#allocation2 + $0x1f] sm:$0xff]
      %v445 = vld [vmem:[#allocation2 + $0x27] sm:$0xff]
      %v446 = vld [vmem:[#allocation2 + $0x2f] sm:$0xff]
      %v447 = vld [vmem:[#allocation2 + $0x37] sm:$0xff]
      %v448 = vld [vmem:[#allocation2 + $0x3f] sm:$0xff]
      %v449 = vld [vmem:[#allocation2 + $0x47] sm:$0xff]
      %v450 = vld [vmem:[#allocation2 + $0x4f] sm:$0xff]
      %v451 = vld [vmem:[#allocation2 + $0x57] sm:$0xff]
      %v452 = vld [vmem:[#allocation2 + $0x5f] sm:$0xff]
      %v453 = vld [vmem:[#allocation2 + $0x67] sm:$0xff]
      %v454 = vld [vmem:[#allocation2 + $0x6f] sm:$0xff]
      %v455 = vld [vmem:[#allocation2 + $0x77] sm:$0xff]
      %v456 = vld [vmem:[#allocation2 + $0x7f] sm:$0xff]
      %v457 = vld [vmem:[#allocation2 + $0x87] sm:$0xff]
      %v458 = vld [vmem:[#allocation2 + $0x8f] sm:$0xff]
      %v459 = vld [vmem:[#allocation2 + $0x97] sm:$0xff]
      %v460 = vld [vmem:[#allocation2 + $0x9f] sm:$0xff]
      %v461 = vld [vmem:[#allocation2 + $0xa7] sm:$0xff]
      %v462 = vld [vmem:[#allocation2 + $0xaf] sm:$0xff]
      %v463 = vld [vmem:[#allocation2 + $0xb7] sm:$0xff]
      %v464 = vld [vmem:[#allocation2 + $0xbf] sm:$0xff]
      %v465 = vld [vmem:[#allocation2 + $0xc7] sm:$0xff]
      %v466 = vld [vmem:[#allocation2 + $0xcf] sm:$0xff]
      %v467 = vld [vmem:[#allocation2 + $0xd7] sm:$0xff]
      %v468 = vld [vmem:[#allocation2 + $0xdf] sm:$0xff]
      %v469 = vld [vmem:[#allocation2 + $0xe7] sm:$0xff]
      %v470 = vld [vmem:[#allocation2 + $0xef] sm:$0xff]
      %v471 = vld [vmem:[#allocation2 + $0xf7] sm:$0xff]
      %v472 = vld [vmem:[#allocation2 + $0xff] sm:$0xff]
      %v473 = vld [vmem:[#allocation2 + $0x107] sm:$0xff]
      %v474 = vld [vmem:[#allocation2 + $0x10f] sm:$0xff]
      %v475 = vld [vmem:[#allocation2 + $0x117] sm:$0xff]
      %v476 = vld [vmem:[#allocation2 + $0x11f] sm:$0xff]
      %v477 = vld [vmem:[#allocation2 + $0x127] sm:$0xff]
      %v478 = vld [vmem:[#allocation2 + $0x12f] sm:$0xff]
      %v479 = vld [vmem:[#allocation2 + $0x137] sm:$0xff]
      %v480 = vld [vmem:[#allocation2 + $0x13f] sm:$0xff]
      %v481 = vld [vmem:[#allocation2 + $0x147] sm:$0xff]
      %v482 = vld [vmem:[#allocation2 + $0x14f] sm:$0xff]
      %v483 = vld [vmem:[#allocation2 + $0x157] sm:$0xff]
      %v484 = vld [vmem:[#allocation2 + $0x15f] sm:$0xff]
      %v485 = vld [vmem:[#allocation2 + $0x167] sm:$0xff]
      %v486 = vld [vmem:[#allocation2 + $0x16f] sm:$0xff]
      %v487 = vld [vmem:[#allocation2 + $0x177] sm:$0xff]
      %v488 = vld [vmem:[#allocation2 + $0x17f] sm:$0xff]
      %537 = vrot.lane.b32.xlu0 %v393, 32
      %v538 = vpop.permute.xlu0 %537
      %539 = vrot.lane.b32.xlu0 %v394, 32
      %v540 = vpop.permute.xlu0 %539
      %541 = vrot.lane.b32.xlu0 %v395, 32
      %v542 = vpop.permute.xlu0 %541
      %543 = vrot.lane.b32.xlu0 %v396, 32
      %v544 = vpop.permute.xlu0 %543
      %545 = vrot.lane.b32.xlu0 %v397, 32
      %v546 = vpop.permute.xlu0 %545
      %547 = vrot.lane.b32.xlu0 %v398, 32
      %v548 = vpop.permute.xlu0 %547
      %549 = vrot.lane.b32.xlu0 %v399, 32
      %v550 = vpop.permute.xlu0 %549
      %551 = vrot.lane.b32.xlu0 %v400, 32
      %v552 = vpop.permute.xlu0 %551
      %553 = vrot.lane.b32.xlu0 %v401, 32
      %v554 = vpop.permute.xlu0 %553
      %555 = vrot.lane.b32.xlu0 %v402, 32
      %v556 = vpop.permute.xlu0 %555
      %557 = vrot.lane.b32.xlu0 %v403, 32
      %v558 = vpop.permute.xlu0 %557
      %559 = vrot.lane.b32.xlu0 %v404, 32
      %v560 = vpop.permute.xlu0 %559
      %561 = vrot.lane.b32.xlu0 %v405, 32
      %v562 = vpop.permute.xlu0 %561
      %563 = vrot.lane.b32.xlu0 %v406, 32
      %v564 = vpop.permute.xlu0 %563
      %565 = vrot.lane.b32.xlu0 %v407, 32
      %v566 = vpop.permute.xlu0 %565
      %567 = vrot.lane.b32.xlu0 %v408, 32
      %v568 = vpop.permute.xlu0 %567
      %569 = vrot.lane.b32.xlu0 %v409, 32
      %v570 = vpop.permute.xlu0 %569
      %571 = vrot.lane.b32.xlu0 %v410, 32
      %v572 = vpop.permute.xlu0 %571
      %573 = vrot.lane.b32.xlu0 %v411, 32
      %v574 = vpop.permute.xlu0 %573
      %575 = vrot.lane.b32.xlu0 %v412, 32
      %v576 = vpop.permute.xlu0 %575
      %577 = vrot.lane.b32.xlu0 %v413, 32
      %v578 = vpop.permute.xlu0 %577
      %579 = vrot.lane.b32.xlu0 %v414, 32
      %v580 = vpop.permute.xlu0 %579
      %581 = vrot.lane.b32.xlu0 %v415, 32
      %v582 = vpop.permute.xlu0 %581
      %583 = vrot.lane.b32.xlu0 %v416, 32
      %v584 = vpop.permute.xlu0 %583
      %585 = vrot.lane.b32.xlu0 %v417, 32
      %v586 = vpop.permute.xlu0 %585
      %587 = vrot.lane.b32.xlu0 %v418, 32
      %v588 = vpop.permute.xlu0 %587
      %589 = vrot.lane.b32.xlu0 %v419, 32
      %v590 = vpop.permute.xlu0 %589
      %591 = vrot.lane.b32.xlu0 %v420, 32
      %v592 = vpop.permute.xlu0 %591
      %593 = vrot.lane.b32.xlu0 %v421, 32
      %v594 = vpop.permute.xlu0 %593
      %595 = vrot.lane.b32.xlu0 %v422, 32
      %v596 = vpop.permute.xlu0 %595
      %597 = vrot.lane.b32.xlu0 %v423, 32
      %v598 = vpop.permute.xlu0 %597
      %599 = vrot.lane.b32.xlu0 %v424, 32
      %v600 = vpop.permute.xlu0 %599
      %601 = vrot.lane.b32.xlu0 %v425, 32
      %v602 = vpop.permute.xlu0 %601
      %603 = vrot.lane.b32.xlu0 %v426, 32
      %v604 = vpop.permute.xlu0 %603
      %605 = vrot.lane.b32.xlu0 %v427, 32
      %v606 = vpop.permute.xlu0 %605
      %607 = vrot.lane.b32.xlu0 %v428, 32
      %v608 = vpop.permute.xlu0 %607
      %609 = vrot.lane.b32.xlu0 %v429, 32
      %v610 = vpop.permute.xlu0 %609
      %611 = vrot.lane.b32.xlu0 %v430, 32
      %v612 = vpop.permute.xlu0 %611
      %613 = vrot.lane.b32.xlu0 %v431, 32
      %v614 = vpop.permute.xlu0 %613
      %615 = vrot.lane.b32.xlu0 %v432, 32
      %v616 = vpop.permute.xlu0 %615
      %617 = vrot.lane.b32.xlu0 %v433, 32
      %v618 = vpop.permute.xlu0 %617
      %619 = vrot.lane.b32.xlu0 %v434, 32
      %v620 = vpop.permute.xlu0 %619
      %621 = vrot.lane.b32.xlu0 %v435, 32
      %v622 = vpop.permute.xlu0 %621
      %623 = vrot.lane.b32.xlu0 %v436, 32
      %v624 = vpop.permute.xlu0 %623
      %625 = vrot.lane.b32.xlu0 %v437, 32
      %v626 = vpop.permute.xlu0 %625
      %627 = vrot.lane.b32.xlu0 %v438, 32
      %v628 = vpop.permute.xlu0 %627
      %629 = vrot.lane.b32.xlu0 %v439, 32
      %v630 = vpop.permute.xlu0 %629
      %631 = vrot.lane.b32.xlu0 %v440, 32
      %v632 = vpop.permute.xlu0 %631
      %729 = vrot.lane.b32.xlu0 %v441, 64
      %v730 = vpop.permute.xlu0 %729
      %731 = vrot.lane.b32.xlu0 %v442, 64
      %v732 = vpop.permute.xlu0 %731
      %733 = vrot.lane.b32.xlu0 %v443, 64
      %v734 = vpop.permute.xlu0 %733
      %735 = vrot.lane.b32.xlu0 %v444, 64
      %v736 = vpop.permute.xlu0 %735
      %737 = vrot.lane.b32.xlu0 %v445, 64
      %v738 = vpop.permute.xlu0 %737
      %739 = vrot.lane.b32.xlu0 %v446, 64
      %v740 = vpop.permute.xlu0 %739
      %741 = vrot.lane.b32.xlu0 %v447, 64
      %v742 = vpop.permute.xlu0 %741
      %743 = vrot.lane.b32.xlu0 %v448, 64
      %v744 = vpop.permute.xlu0 %743
      %745 = vrot.lane.b32.xlu0 %v449, 64
      %v746 = vpop.permute.xlu0 %745
      %747 = vrot.lane.b32.xlu0 %v450, 64
      %v748 = vpop.permute.xlu0 %747
      %749 = vrot.lane.b32.xlu0 %v451, 64
      %v750 = vpop.permute.xlu0 %749
      %751 = vrot.lane.b32.xlu0 %v452, 64
      %v752 = vpop.permute.xlu0 %751
      %753 = vrot.lane.b32.xlu0 %v453, 64
      %v754 = vpop.permute.xlu0 %753
      %755 = vrot.lane.b32.xlu0 %v454, 64
      %v756 = vpop.permute.xlu0 %755
      %757 = vrot.lane.b32.xlu0 %v455, 64
      %v758 = vpop.permute.xlu0 %757
      %759 = vrot.lane.b32.xlu0 %v456, 64
      %v760 = vpop.permute.xlu0 %759
      %761 = vrot.lane.b32.xlu0 %v457, 64
      %v762 = vpop.permute.xlu0 %761
      %763 = vrot.lane.b32.xlu0 %v458, 64
      %v764 = vpop.permute.xlu0 %763
      %765 = vrot.lane.b32.xlu0 %v459, 64
      %v766 = vpop.permute.xlu0 %765
      %767 = vrot.lane.b32.xlu0 %v460, 64
      %v768 = vpop.permute.xlu0 %767
      %769 = vrot.lane.b32.xlu0 %v461, 64
      %v770 = vpop.permute.xlu0 %769
      %771 = vrot.lane.b32.xlu0 %v462, 64
      %v772 = vpop.permute.xlu0 %771
      %773 = vrot.lane.b32.xlu0 %v463, 64
      %v774 = vpop.permute.xlu0 %773
      %775 = vrot.lane.b32.xlu0 %v464, 64
      %v776 = vpop.permute.xlu0 %775
      %777 = vrot.lane.b32.xlu0 %v465, 64
      %v778 = vpop.permute.xlu0 %777
      %779 = vrot.lane.b32.xlu0 %v466, 64
      %v780 = vpop.permute.xlu0 %779
      %781 = vrot.lane.b32.xlu0 %v467, 64
      %v782 = vpop.permute.xlu0 %781
      %783 = vrot.lane.b32.xlu0 %v468, 64
      %v784 = vpop.permute.xlu0 %783
      %785 = vrot.lane.b32.xlu0 %v469, 64
      %v786 = vpop.permute.xlu0 %785
      %787 = vrot.lane.b32.xlu0 %v470, 64
      %v788 = vpop.permute.xlu0 %787
      %789 = vrot.lane.b32.xlu0 %v471, 64
      %v790 = vpop.permute.xlu0 %789
      %791 = vrot.lane.b32.xlu0 %v472, 64
      %v792 = vpop.permute.xlu0 %791
      %793 = vrot.lane.b32.xlu0 %v473, 64
      %v794 = vpop.permute.xlu0 %793
      %795 = vrot.lane.b32.xlu0 %v474, 64
      %v796 = vpop.permute.xlu0 %795
      %797 = vrot.lane.b32.xlu0 %v475, 64
      %v798 = vpop.permute.xlu0 %797
      %799 = vrot.lane.b32.xlu0 %v476, 64
      %v800 = vpop.permute.xlu0 %799
      %801 = vrot.lane.b32.xlu0 %v477, 64
      %v802 = vpop.permute.xlu0 %801
      %803 = vrot.lane.b32.xlu0 %v478, 64
      %v804 = vpop.permute.xlu0 %803
      %805 = vrot.lane.b32.xlu0 %v479, 64
      %v806 = vpop.permute.xlu0 %805
      %807 = vrot.lane.b32.xlu0 %v480, 64
      %v808 = vpop.permute.xlu0 %807
      %809 = vrot.lane.b32.xlu0 %v481, 64
      %v810 = vpop.permute.xlu0 %809
      %811 = vrot.lane.b32.xlu0 %v482, 64
      %v812 = vpop.permute.xlu0 %811
      %813 = vrot.lane.b32.xlu0 %v483, 64
      %v814 = vpop.permute.xlu0 %813
      %815 = vrot.lane.b32.xlu0 %v484, 64
      %v816 = vpop.permute.xlu0 %815
      %817 = vrot.lane.b32.xlu0 %v485, 64
      %v818 = vpop.permute.xlu0 %817
      %819 = vrot.lane.b32.xlu0 %v486, 64
      %v820 = vpop.permute.xlu0 %819
      %821 = vrot.lane.b32.xlu0 %v487, 64
      %v822 = vpop.permute.xlu0 %821
      %823 = vrot.lane.b32.xlu0 %v488, 64
      %v824 = vpop.permute.xlu0 %823
      %vm873 = vcmask 261120
      %v874 = vsel %vm873, %v345, %v538
      %v875 = vsel %vm873, %v346, %v540
      %v876 = vsel %vm873, %v347, %v542
      %v877 = vsel %vm873, %v348, %v544
      %v878 = vsel %vm873, %v349, %v546
      %v879 = vsel %vm873, %v350, %v548
      %v880 = vsel %vm873, %v351, %v550
      %v881 = vsel %vm873, %v352, %v552
      %v882 = vsel %vm873, %v353, %v554
      %v883 = vsel %vm873, %v354, %v556
      %v884 = vsel %vm873, %v355, %v558
      %v885 = vsel %vm873, %v356, %v560
      %v886 = vsel %vm873, %v357, %v562
      %v887 = vsel %vm873, %v358, %v564
      %v888 = vsel %vm873, %v359, %v566
      %v889 = vsel %vm873, %v360, %v568
      %v890 = vsel %vm873, %v361, %v570
      %v891 = vsel %vm873, %v362, %v572
      %v892 = vsel %vm873, %v363, %v574
      %v893 = vsel %vm873, %v364, %v576
      %v894 = vsel %vm873, %v365, %v578
      %v895 = vsel %vm873, %v366, %v580
      %v896 = vsel %vm873, %v367, %v582
      %v897 = vsel %vm873, %v368, %v584
      %v898 = vsel %vm873, %v369, %v586
      %v899 = vsel %vm873, %v370, %v588
      %v900 = vsel %vm873, %v371, %v590
      %v901 = vsel %vm873, %v372, %v592
      %v902 = vsel %vm873, %v373, %v594
      %v903 = vsel %vm873, %v374, %v596
      %v904 = vsel %vm873, %v375, %v598
      %v905 = vsel %vm873, %v376, %v600
      %v906 = vsel %vm873, %v377, %v602
      %v907 = vsel %vm873, %v378, %v604
      %v908 = vsel %vm873, %v379, %v606
      %v909 = vsel %vm873, %v380, %v608
      %v910 = vsel %vm873, %v381, %v610
      %v911 = vsel %vm873, %v382, %v612
      %v912 = vsel %vm873, %v383, %v614
      %v913 = vsel %vm873, %v384, %v616
      %v914 = vsel %vm873, %v385, %v618
      %v915 = vsel %vm873, %v386, %v620
      %v916 = vsel %vm873, %v387, %v622
      %v917 = vsel %vm873, %v388, %v624
      %v918 = vsel %vm873, %v389, %v626
      %v919 = vsel %vm873, %v390, %v628
      %v920 = vsel %vm873, %v391, %v630
      %v921 = vsel %vm873, %v392, %v632
      %vm922 = vcmask 523264
      %v923 = vsel %vm922, %v874, %v730
      %v924 = vsel %vm922, %v875, %v732
      %v925 = vsel %vm922, %v876, %v734
      %v926 = vsel %vm922, %v877, %v736
      %v927 = vsel %vm922, %v878, %v738
      %v928 = vsel %vm922, %v879, %v740
      %v929 = vsel %vm922, %v880, %v742
      %v930 = vsel %vm922, %v881, %v744
      %v931 = vsel %vm922, %v882, %v746
      %v932 = vsel %vm922, %v883, %v748
      %v933 = vsel %vm922, %v884, %v750
      %v934 = vsel %vm922, %v885, %v752
      %v935 = vsel %vm922, %v886, %v754
      %v936 = vsel %vm922, %v887, %v756
      %v937 = vsel %vm922, %v888, %v758
      %v938 = vsel %vm922, %v889, %v760
      %v939 = vsel %vm922, %v890, %v762
      %v940 = vsel %vm922, %v891, %v764
      %v941 = vsel %vm922, %v892, %v766
      %v942 = vsel %vm922, %v893, %v768
      %v943 = vsel %vm922, %v894, %v770
      %v944 = vsel %vm922, %v895, %v772
      %v945 = vsel %vm922, %v896, %v774
      %v946 = vsel %vm922, %v897, %v776
      %v947 = vsel %vm922, %v898, %v778
      %v948 = vsel %vm922, %v899, %v780
      %v949 = vsel %vm922, %v900, %v782
      %v950 = vsel %vm922, %v901, %v784
      %v951 = vsel %vm922, %v902, %v786
      %v952 = vsel %vm922, %v903, %v788
      %v953 = vsel %vm922, %v904, %v790
      %v954 = vsel %vm922, %v905, %v792
      %v955 = vsel %vm922, %v906, %v794
      %v956 = vsel %vm922, %v907, %v796
      %v957 = vsel %vm922, %v908, %v798
      %v958 = vsel %vm922, %v909, %v800
      %v959 = vsel %vm922, %v910, %v802
      %v960 = vsel %vm922, %v911, %v804
      %v961 = vsel %vm922, %v912, %v806
      %v962 = vsel %vm922, %v913, %v808
      %v963 = vsel %vm922, %v914, %v810
      %v964 = vsel %vm922, %v915, %v812
      %v965 = vsel %vm922, %v916, %v814
      %v966 = vsel %vm922, %v917, %v816
      %v967 = vsel %vm922, %v918, %v818
      %v968 = vsel %vm922, %v919, %v820
      %v969 = vsel %vm922, %v920, %v822
      %v970 = vsel %vm922, %v921, %v824
      %v971 = vpack.c.bf16 %v924, %v923
      %v972 = vpack.c.bf16 %v926, %v925
      %v973 = vpack.c.bf16 %v928, %v927
      %v974 = vpack.c.bf16 %v930, %v929
      %v975 = vpack.c.bf16 %v932, %v931
      %v976 = vpack.c.bf16 %v934, %v933
      %v977 = vpack.c.bf16 %v936, %v935
      %v978 = vpack.c.bf16 %v938, %v937
      %v979 = vpack.c.bf16 %v940, %v939
      %v980 = vpack.c.bf16 %v942, %v941
      %v981 = vpack.c.bf16 %v944, %v943
      %v982 = vpack.c.bf16 %v946, %v945
      %v983 = vpack.c.bf16 %v948, %v947
      %v984 = vpack.c.bf16 %v950, %v949
      %v985 = vpack.c.bf16 %v952, %v951
      %v986 = vpack.c.bf16 %v954, %v953
      %v987 = vpack.c.bf16 %v956, %v955
      %v988 = vpack.c.bf16 %v958, %v957
      %v989 = vpack.c.bf16 %v960, %v959
      %v990 = vpack.c.bf16 %v962, %v961
      %v991 = vpack.c.bf16 %v964, %v963
      %v992 = vpack.c.bf16 %v966, %v965
      %v993 = vpack.c.bf16 %v968, %v967
      %v994 = vpack.c.bf16 %v970, %v969
      %v995 = vld [vmem:[#allocation2 + $0x187] sm:$0xff]
      %v996 = vld [vmem:[#allocation2 + $0x18f] sm:$0xff]
      %v997 = vld [vmem:[#allocation2 + $0x18] sm:$0xff]
      %v998 = vld [vmem:[#allocation2 + $0x20] sm:$0xff]
      %v999 = vld [vmem:[#allocation2 + $0x28] sm:$0xff]
      %v1000 = vld [vmem:[#allocation2 + $0x30] sm:$0xff]
      %v1001 = vld [vmem:[#allocation2 + $0x38] sm:$0xff]
      %v1002 = vld [vmem:[#allocation2 + $0x40] sm:$0xff]
      %v1003 = vld [vmem:[#allocation2 + $0x48] sm:$0xff]
      %v1004 = vld [vmem:[#allocation2 + $0x50] sm:$0xff]
      %v1005 = vld [vmem:[#allocation2 + $0x58] sm:$0xff]
      %v1006 = vld [vmem:[#allocation2 + $0x60] sm:$0xff]
      %v1007 = vld [vmem:[#allocation2 + $0x68] sm:$0xff]
      %v1008 = vld [vmem:[#allocation2 + $0x70] sm:$0xff]
      %v1009 = vld [vmem:[#allocation2 + $0x78] sm:$0xff]
      %v1010 = vld [vmem:[#allocation2 + $0x80] sm:$0xff]
      %v1011 = vld [vmem:[#allocation2 + $0x88] sm:$0xff]
      %v1012 = vld [vmem:[#allocation2 + $0x90] sm:$0xff]
      %v1013 = vld [vmem:[#allocation2 + $0x98] sm:$0xff]
      %v1014 = vld [vmem:[#allocation2 + $0xa0] sm:$0xff]
      %v1015 = vld [vmem:[#allocation2 + $0xa8] sm:$0xff]
      %v1016 = vld [vmem:[#allocation2 + $0xb0] sm:$0xff]
      %v1017 = vld [vmem:[#allocation2 + $0xb8] sm:$0xff]
      %v1018 = vld [vmem:[#allocation2 + $0xc0] sm:$0xff]
      %v1019 = vld [vmem:[#allocation2 + $0xc8] sm:$0xff]
      %v1020 = vld [vmem:[#allocation2 + $0xd0] sm:$0xff]
      %v1021 = vld [vmem:[#allocation2 + $0xd8] sm:$0xff]
      %v1022 = vld [vmem:[#allocation2 + $0xe0] sm:$0xff]
      %v1023 = vld [vmem:[#allocation2 + $0xe8] sm:$0xff]
      %v1024 = vld [vmem:[#allocation2 + $0xf0] sm:$0xff]
      %v1025 = vld [vmem:[#allocation2 + $0xf8] sm:$0xff]
      %v1026 = vld [vmem:[#allocation2 + $0x100] sm:$0xff]
      %v1027 = vld [vmem:[#allocation2 + $0x108] sm:$0xff]
      %v1028 = vld [vmem:[#allocation2 + $0x110] sm:$0xff]
      %v1029 = vld [vmem:[#allocation2 + $0x118] sm:$0xff]
      %v1030 = vld [vmem:[#allocation2 + $0x120] sm:$0xff]
      %v1031 = vld [vmem:[#allocation2 + $0x128] sm:$0xff]
      %v1032 = vld [vmem:[#allocation2 + $0x130] sm:$0xff]
      %v1033 = vld [vmem:[#allocation2 + $0x138] sm:$0xff]
      %v1034 = vld [vmem:[#allocation2 + $0x140] sm:$0xff]
      %v1035 = vld [vmem:[#allocation2 + $0x148] sm:$0xff]
      %v1036 = vld [vmem:[#allocation2 + $0x150] sm:$0xff]
      %v1037 = vld [vmem:[#allocation2 + $0x158] sm:$0xff]
      %v1038 = vld [vmem:[#allocation2 + $0x160] sm:$0xff]
      %v1039 = vld [vmem:[#allocation2 + $0x168] sm:$0xff]
      %v1040 = vld [vmem:[#allocation2 + $0x170] sm:$0xff]
      %v1041 = vld [vmem:[#allocation2 + $0x178] sm:$0xff]
      %v1042 = vld [vmem:[#allocation2 + $0x180] sm:$0xff]
      %v1043 = vld [vmem:[#allocation2 + $0x188] sm:$0xff]
      %v1044 = vld [vmem:[#allocation2 + $0x190] sm:$0xff]
      %v1045 = vld [vmem:[#allocation2 + $0x19] sm:$0xff]
      %v1046 = vld [vmem:[#allocation2 + $0x21] sm:$0xff]
      %v1047 = vld [vmem:[#allocation2 + $0x29] sm:$0xff]
      %v1048 = vld [vmem:[#allocation2 + $0x31] sm:$0xff]
      %v1049 = vld [vmem:[#allocation2 + $0x39] sm:$0xff]
      %v1050 = vld [vmem:[#allocation2 + $0x41] sm:$0xff]
      %v1051 = vld [vmem:[#allocation2 + $0x49] sm:$0xff]
      %v1052 = vld [vmem:[#allocation2 + $0x51] sm:$0xff]
      %v1053 = vld [vmem:[#allocation2 + $0x59] sm:$0xff]
      %v1054 = vld [vmem:[#allocation2 + $0x61] sm:$0xff]
      %v1055 = vld [vmem:[#allocation2 + $0x69] sm:$0xff]
      %v1056 = vld [vmem:[#allocation2 + $0x71] sm:$0xff]
      %v1057 = vld [vmem:[#allocation2 + $0x79] sm:$0xff]
      %v1058 = vld [vmem:[#allocation2 + $0x81] sm:$0xff]
      %v1059 = vld [vmem:[#allocation2 + $0x89] sm:$0xff]
      %v1060 = vld [vmem:[#allocation2 + $0x91] sm:$0xff]
      %v1061 = vld [vmem:[#allocation2 + $0x99] sm:$0xff]
      %v1062 = vld [vmem:[#allocation2 + $0xa1] sm:$0xff]
      %v1063 = vld [vmem:[#allocation2 + $0xa9] sm:$0xff]
      %v1064 = vld [vmem:[#allocation2 + $0xb1] sm:$0xff]
      %v1065 = vld [vmem:[#allocation2 + $0xb9] sm:$0xff]
      %v1066 = vld [vmem:[#allocation2 + $0xc1] sm:$0xff]
      %v1067 = vld [vmem:[#allocation2 + $0xc9] sm:$0xff]
      %v1068 = vld [vmem:[#allocation2 + $0xd1] sm:$0xff]
      %v1069 = vld [vmem:[#allocation2 + $0xd9] sm:$0xff]
      %v1070 = vld [vmem:[#allocation2 + $0xe1] sm:$0xff]
      %v1071 = vld [vmem:[#allocation2 + $0xe9] sm:$0xff]
      %v1072 = vld [vmem:[#allocation2 + $0xf1] sm:$0xff]
      %v1073 = vld [vmem:[#allocation2 + $0xf9] sm:$0xff]
      %v1074 = vld [vmem:[#allocation2 + $0x101] sm:$0xff]
      %v1075 = vld [vmem:[#allocation2 + $0x109] sm:$0xff]
      %v1076 = vld [vmem:[#allocation2 + $0x111] sm:$0xff]
      %v1077 = vld [vmem:[#allocation2 + $0x119] sm:$0xff]
      %v1078 = vld [vmem:[#allocation2 + $0x121] sm:$0xff]
      %v1079 = vld [vmem:[#allocation2 + $0x129] sm:$0xff]
      %v1080 = vld [vmem:[#allocation2 + $0x131] sm:$0xff]
      %v1081 = vld [vmem:[#allocation2 + $0x139] sm:$0xff]
      %v1082 = vld [vmem:[#allocation2 + $0x141] sm:$0xff]
      %v1083 = vld [vmem:[#allocation2 + $0x149] sm:$0xff]
      %v1084 = vld [vmem:[#allocation2 + $0x151] sm:$0xff]
      %v1085 = vld [vmem:[#allocation2 + $0x159] sm:$0xff]
      %v1086 = vld [vmem:[#allocation2 + $0x161] sm:$0xff]
      %v1087 = vld [vmem:[#allocation2 + $0x169] sm:$0xff]
      %v1088 = vld [vmem:[#allocation2 + $0x171] sm:$0xff]
      %v1089 = vld [vmem:[#allocation2 + $0x179] sm:$0xff]
      %v1090 = vld [vmem:[#allocation2 + $0x181] sm:$0xff]
      %v1091 = vld [vmem:[#allocation2 + $0x189] sm:$0xff]
      %v1092 = vld [vmem:[#allocation2 + $0x191] sm:$0xff]
      %1141 = vrot.lane.b32.xlu0 %v997, 32
      %v1142 = vpop.permute.xlu0 %1141
      %1143 = vrot.lane.b32.xlu0 %v998, 32
      %v1144 = vpop.permute.xlu0 %1143
      %1145 = vrot.lane.b32.xlu0 %v999, 32
      %v1146 = vpop.permute.xlu0 %1145
      %1147 = vrot.lane.b32.xlu0 %v1000, 32
      %v1148 = vpop.permute.xlu0 %1147
      %1149 = vrot.lane.b32.xlu0 %v1001, 32
      %v1150 = vpop.permute.xlu0 %1149
      %1151 = vrot.lane.b32.xlu0 %v1002, 32
      %v1152 = vpop.permute.xlu0 %1151
      %1153 = vrot.lane.b32.xlu0 %v1003, 32
      %v1154 = vpop.permute.xlu0 %1153
      %1155 = vrot.lane.b32.xlu0 %v1004, 32
      %v1156 = vpop.permute.xlu0 %1155
      %1157 = vrot.lane.b32.xlu0 %v1005, 32
      %v1158 = vpop.permute.xlu0 %1157
      %1159 = vrot.lane.b32.xlu0 %v1006, 32
      %v1160 = vpop.permute.xlu0 %1159
      %1161 = vrot.lane.b32.xlu0 %v1007, 32
      %v1162 = vpop.permute.xlu0 %1161
      %1163 = vrot.lane.b32.xlu0 %v1008, 32
      %v1164 = vpop.permute.xlu0 %1163
      %1165 = vrot.lane.b32.xlu0 %v1009, 32
      %v1166 = vpop.permute.xlu0 %1165
      %1167 = vrot.lane.b32.xlu0 %v1010, 32
      %v1168 = vpop.permute.xlu0 %1167
      %1169 = vrot.lane.b32.xlu0 %v1011, 32
      %v1170 = vpop.permute.xlu0 %1169
      %1171 = vrot.lane.b32.xlu0 %v1012, 32
      %v1172 = vpop.permute.xlu0 %1171
      %1173 = vrot.lane.b32.xlu0 %v1013, 32
      %v1174 = vpop.permute.xlu0 %1173
      %1175 = vrot.lane.b32.xlu0 %v1014, 32
      %v1176 = vpop.permute.xlu0 %1175
      %1177 = vrot.lane.b32.xlu0 %v1015, 32
      %v1178 = vpop.permute.xlu0 %1177
      %1179 = vrot.lane.b32.xlu0 %v1016, 32
      %v1180 = vpop.permute.xlu0 %1179
      %1181 = vrot.lane.b32.xlu0 %v1017, 32
      %v1182 = vpop.permute.xlu0 %1181
      %1183 = vrot.lane.b32.xlu0 %v1018, 32
      %v1184 = vpop.permute.xlu0 %1183
      %1185 = vrot.lane.b32.xlu0 %v1019, 32
      %v1186 = vpop.permute.xlu0 %1185
      %1187 = vrot.lane.b32.xlu0 %v1020, 32
      %v1188 = vpop.permute.xlu0 %1187
      %1189 = vrot.lane.b32.xlu0 %v1021, 32
      %v1190 = vpop.permute.xlu0 %1189
      %1191 = vrot.lane.b32.xlu0 %v1022, 32
      %v1192 = vpop.permute.xlu0 %1191
      %1193 = vrot.lane.b32.xlu0 %v1023, 32
      %v1194 = vpop.permute.xlu0 %1193
      %1195 = vrot.lane.b32.xlu0 %v1024, 32
      %v1196 = vpop.permute.xlu0 %1195
      %1197 = vrot.lane.b32.xlu0 %v1025, 32
      %v1198 = vpop.permute.xlu0 %1197
      %1199 = vrot.lane.b32.xlu0 %v1026, 32
      %v1200 = vpop.permute.xlu0 %1199
      %1201 = vrot.lane.b32.xlu0 %v1027, 32
      %v1202 = vpop.permute.xlu0 %1201
      %1203 = vrot.lane.b32.xlu0 %v1028, 32
      %v1204 = vpop.permute.xlu0 %1203
      %1205 = vrot.lane.b32.xlu0 %v1029, 32
      %v1206 = vpop.permute.xlu0 %1205
      %1207 = vrot.lane.b32.xlu0 %v1030, 32
      %v1208 = vpop.permute.xlu0 %1207
      %1209 = vrot.lane.b32.xlu0 %v1031, 32
      %v1210 = vpop.permute.xlu0 %1209
      %1211 = vrot.lane.b32.xlu0 %v1032, 32
      %v1212 = vpop.permute.xlu0 %1211
      %1213 = vrot.lane.b32.xlu0 %v1033, 32
      %v1214 = vpop.permute.xlu0 %1213
      %1215 = vrot.lane.b32.xlu0 %v1034, 32
      %v1216 = vpop.permute.xlu0 %1215
      %1217 = vrot.lane.b32.xlu0 %v1035, 32
      %v1218 = vpop.permute.xlu0 %1217
      %1219 = vrot.lane.b32.xlu0 %v1036, 32
      %v1220 = vpop.permute.xlu0 %1219
      %1221 = vrot.lane.b32.xlu0 %v1037, 32
      %v1222 = vpop.permute.xlu0 %1221
      %1223 = vrot.lane.b32.xlu0 %v1038, 32
      %v1224 = vpop.permute.xlu0 %1223
      %1225 = vrot.lane.b32.xlu0 %v1039, 32
      %v1226 = vpop.permute.xlu0 %1225
      %1227 = vrot.lane.b32.xlu0 %v1040, 32
      %v1228 = vpop.permute.xlu0 %1227
      %1229 = vrot.lane.b32.xlu0 %v1041, 32
      %v1230 = vpop.permute.xlu0 %1229
      %1231 = vrot.lane.b32.xlu0 %v1042, 32
      %v1232 = vpop.permute.xlu0 %1231
      %1233 = vrot.lane.b32.xlu0 %v1043, 32
      %v1234 = vpop.permute.xlu0 %1233
      %1235 = vrot.lane.b32.xlu0 %v1044, 32
      %v1236 = vpop.permute.xlu0 %1235
      %1333 = vrot.lane.b32.xlu0 %v1045, 64
      %v1334 = vpop.permute.xlu0 %1333
      %1335 = vrot.lane.b32.xlu0 %v1046, 64
      %v1336 = vpop.permute.xlu0 %1335
      %1337 = vrot.lane.b32.xlu0 %v1047, 64
      %v1338 = vpop.permute.xlu0 %1337
      %1339 = vrot.lane.b32.xlu0 %v1048, 64
      %v1340 = vpop.permute.xlu0 %1339
      %1341 = vrot.lane.b32.xlu0 %v1049, 64
      %v1342 = vpop.permute.xlu0 %1341
      %1343 = vrot.lane.b32.xlu0 %v1050, 64
      %v1344 = vpop.permute.xlu0 %1343
      %1345 = vrot.lane.b32.xlu0 %v1051, 64
      %v1346 = vpop.permute.xlu0 %1345
      %1347 = vrot.lane.b32.xlu0 %v1052, 64
      %v1348 = vpop.permute.xlu0 %1347
      %1349 = vrot.lane.b32.xlu0 %v1053, 64
      %v1350 = vpop.permute.xlu0 %1349
      %1351 = vrot.lane.b32.xlu0 %v1054, 64
      %v1352 = vpop.permute.xlu0 %1351
      %1353 = vrot.lane.b32.xlu0 %v1055, 64
      %v1354 = vpop.permute.xlu0 %1353
      %1355 = vrot.lane.b32.xlu0 %v1056, 64
      %v1356 = vpop.permute.xlu0 %1355
      %1357 = vrot.lane.b32.xlu0 %v1057, 64
      %v1358 = vpop.permute.xlu0 %1357
      %1359 = vrot.lane.b32.xlu0 %v1058, 64
      %v1360 = vpop.permute.xlu0 %1359
      %1361 = vrot.lane.b32.xlu0 %v1059, 64
      %v1362 = vpop.permute.xlu0 %1361
      %1363 = vrot.lane.b32.xlu0 %v1060, 64
      %v1364 = vpop.permute.xlu0 %1363
      %1365 = vrot.lane.b32.xlu0 %v1061, 64
      %v1366 = vpop.permute.xlu0 %1365
      %1367 = vrot.lane.b32.xlu0 %v1062, 64
      %v1368 = vpop.permute.xlu0 %1367
      %1369 = vrot.lane.b32.xlu0 %v1063, 64
      %v1370 = vpop.permute.xlu0 %1369
      %1371 = vrot.lane.b32.xlu0 %v1064, 64
      %v1372 = vpop.permute.xlu0 %1371
      %1373 = vrot.lane.b32.xlu0 %v1065, 64
      %v1374 = vpop.permute.xlu0 %1373
      %1375 = vrot.lane.b32.xlu0 %v1066, 64
      %v1376 = vpop.permute.xlu0 %1375
      %1377 = vrot.lane.b32.xlu0 %v1067, 64
      %v1378 = vpop.permute.xlu0 %1377
      %1379 = vrot.lane.b32.xlu0 %v1068, 64
      %v1380 = vpop.permute.xlu0 %1379
      %1381 = vrot.lane.b32.xlu0 %v1069, 64
      %v1382 = vpop.permute.xlu0 %1381
      %1383 = vrot.lane.b32.xlu0 %v1070, 64
      %v1384 = vpop.permute.xlu0 %1383
      %1385 = vrot.lane.b32.xlu0 %v1071, 64
      %v1386 = vpop.permute.xlu0 %1385
      %1387 = vrot.lane.b32.xlu0 %v1072, 64
      %v1388 = vpop.permute.xlu0 %1387
      %1389 = vrot.lane.b32.xlu0 %v1073, 64
      %v1390 = vpop.permute.xlu0 %1389
      %1391 = vrot.lane.b32.xlu0 %v1074, 64
      %v1392 = vpop.permute.xlu0 %1391
      %1393 = vrot.lane.b32.xlu0 %v1075, 64
      %v1394 = vpop.permute.xlu0 %1393
      %1395 = vrot.lane.b32.xlu0 %v1076, 64
      %v1396 = vpop.permute.xlu0 %1395
      %1397 = vrot.lane.b32.xlu0 %v1077, 64
      %v1398 = vpop.permute.xlu0 %1397
      %1399 = vrot.lane.b32.xlu0 %v1078, 64
      %v1400 = vpop.permute.xlu0 %1399
      %1401 = vrot.lane.b32.xlu0 %v1079, 64
      %v1402 = vpop.permute.xlu0 %1401
      %1403 = vrot.lane.b32.xlu0 %v1080, 64
      %v1404 = vpop.permute.xlu0 %1403
      %1405 = vrot.lane.b32.xlu0 %v1081, 64
      %v1406 = vpop.permute.xlu0 %1405
      %1407 = vrot.lane.b32.xlu0 %v1082, 64
      %v1408 = vpop.permute.xlu0 %1407
      %1409 = vrot.lane.b32.xlu0 %v1083, 64
      %v1410 = vpop.permute.xlu0 %1409
      %1411 = vrot.lane.b32.xlu0 %v1084, 64
      %v1412 = vpop.permute.xlu0 %1411
      %1413 = vrot.lane.b32.xlu0 %v1085, 64
      %v1414 = vpop.permute.xlu0 %1413
      %1415 = vrot.lane.b32.xlu0 %v1086, 64
      %v1416 = vpop.permute.xlu0 %1415
      %1417 = vrot.lane.b32.xlu0 %v1087, 64
      %v1418 = vpop.permute.xlu0 %1417
      %1419 = vrot.lane.b32.xlu0 %v1088, 64
      %v1420 = vpop.permute.xlu0 %1419
      %1421 = vrot.lane.b32.xlu0 %v1089, 64
      %v1422 = vpop.permute.xlu0 %1421
      %1423 = vrot.lane.b32.xlu0 %v1090, 64
      %v1424 = vpop.permute.xlu0 %1423
      %1425 = vrot.lane.b32.xlu0 %v1091, 64
      %v1426 = vpop.permute.xlu0 %1425
      %1427 = vrot.lane.b32.xlu0 %v1092, 64
      %v1428 = vpop.permute.xlu0 %1427
      %v1477 = vsel %vm873, %v443, %v1142
      %v1478 = vsel %vm873, %v444, %v1144
      %v1479 = vsel %vm873, %v445, %v1146
      %v1480 = vsel %vm873, %v446, %v1148
      %v1481 = vsel %vm873, %v447, %v1150
      %v1482 = vsel %vm873, %v448, %v1152
      %v1483 = vsel %vm873, %v449, %v1154
      %v1484 = vsel %vm873, %v450, %v1156
      %v1485 = vsel %vm873, %v451, %v1158
      %v1486 = vsel %vm873, %v452, %v1160
      %v1487 = vsel %vm873, %v453, %v1162
      %v1488 = vsel %vm873, %v454, %v1164
      %v1489 = vsel %vm873, %v455, %v1166
      %v1490 = vsel %vm873, %v456, %v1168
      %v1491 = vsel %vm873, %v457, %v1170
      %v1492 = vsel %vm873, %v458, %v1172
      %v1493 = vsel %vm873, %v459, %v1174
      %v1494 = vsel %vm873, %v460, %v1176
      %v1495 = vsel %vm873, %v461, %v1178
      %v1496 = vsel %vm873, %v462, %v1180
      %v1497 = vsel %vm873, %v463, %v1182
      %v1498 = vsel %vm873, %v464, %v1184
      %v1499 = vsel %vm873, %v465, %v1186
      %v1500 = vsel %vm873, %v466, %v1188
      %v1501 = vsel %vm873, %v467, %v1190
      %v1502 = vsel %vm873, %v468, %v1192
      %v1503 = vsel %vm873, %v469, %v1194
      %v1504 = vsel %vm873, %v470, %v1196
      %v1505 = vsel %vm873, %v471, %v1198
      %v1506 = vsel %vm873, %v472, %v1200
      %v1507 = vsel %vm873, %v473, %v1202
      %v1508 = vsel %vm873, %v474, %v1204
      %v1509 = vsel %vm873, %v475, %v1206
      %v1510 = vsel %vm873, %v476, %v1208
      %v1511 = vsel %vm873, %v477, %v1210
      %v1512 = vsel %vm873, %v478, %v1212
      %v1513 = vsel %vm873, %v479, %v1214
      %v1514 = vsel %vm873, %v480, %v1216
      %v1515 = vsel %vm873, %v481, %v1218
      %v1516 = vsel %vm873, %v482, %v1220
      %v1517 = vsel %vm873, %v483, %v1222
      %v1518 = vsel %vm873, %v484, %v1224
      %v1519 = vsel %vm873, %v485, %v1226
      %v1520 = vsel %vm873, %v486, %v1228
      %v1521 = vsel %vm873, %v487, %v1230
      %v1522 = vsel %vm873, %v488, %v1232
      %v1523 = vsel %vm873, %v995, %v1234
      %v1524 = vsel %vm873, %v996, %v1236
      %v1525 = vsel %vm922, %v1477, %v1334
      %v1526 = vsel %vm922, %v1478, %v1336
      %v1527 = vsel %vm922, %v1479, %v1338
      %v1528 = vsel %vm922, %v1480, %v1340
      %v1529 = vsel %vm922, %v1481, %v1342
      %v1530 = vsel %vm922, %v1482, %v1344
      %v1531 = vsel %vm922, %v1483, %v1346
      %v1532 = vsel %vm922, %v1484, %v1348
      %v1533 = vsel %vm922, %v1485, %v1350
      %v1534 = vsel %vm922, %v1486, %v1352
      %v1535 = vsel %vm922, %v1487, %v1354
      %v1536 = vsel %vm922, %v1488, %v1356
      %v1537 = vsel %vm922, %v1489, %v1358
      %v1538 = vsel %vm922, %v1490, %v1360
      %v1539 = vsel %vm922, %v1491, %v1362
      %v1540 = vsel %vm922, %v1492, %v1364
      %v1541 = vsel %vm922, %v1493, %v1366
      %v1542 = vsel %vm922, %v1494, %v1368
      %v1543 = vsel %vm922, %v1495, %v1370
      %v1544 = vsel %vm922, %v1496, %v1372
      %v1545 = vsel %vm922, %v1497, %v1374
      %v1546 = vsel %vm922, %v1498, %v1376
      %v1547 = vsel %vm922, %v1499, %v1378
      %v1548 = vsel %vm922, %v1500, %v1380
      %v1549 = vsel %vm922, %v1501, %v1382
      %v1550 = vsel %vm922, %v1502, %v1384
      %v1551 = vsel %vm922, %v1503, %v1386
      %v1552 = vsel %vm922, %v1504, %v1388
      %v1553 = vsel %vm922, %v1505, %v1390
      %v1554 = vsel %vm922, %v1506, %v1392
      %v1555 = vsel %vm922, %v1507, %v1394
      %v1556 = vsel %vm922, %v1508, %v1396
      %v1557 = vsel %vm922, %v1509, %v1398
      %v1558 = vsel %vm922, %v1510, %v1400
      %v1559 = vsel %vm922, %v1511, %v1402
      %v1560 = vsel %vm922, %v1512, %v1404
      %v1561 = vsel %vm922, %v1513, %v1406
      %v1562 = vsel %vm922, %v1514, %v1408
      %v1563 = vsel %vm922, %v1515, %v1410
      %v1564 = vsel %vm922, %v1516, %v1412
      %v1565 = vsel %vm922, %v1517, %v1414
      %v1566 = vsel %vm922, %v1518, %v1416
      %v1567 = vsel %vm922, %v1519, %v1418
      %v1568 = vsel %vm922, %v1520, %v1420
      %v1569 = vsel %vm922, %v1521, %v1422
      %v1570 = vsel %vm922, %v1522, %v1424
      %v1571 = vsel %vm922, %v1523, %v1426
      %v1572 = vsel %vm922, %v1524, %v1428
      %v1573 = vpack.c.bf16 %v1526, %v1525
      %v1574 = vpack.c.bf16 %v1528, %v1527
      %v1575 = vpack.c.bf16 %v1530, %v1529
      %v1576 = vpack.c.bf16 %v1532, %v1531
      %v1577 = vpack.c.bf16 %v1534, %v1533
      %v1578 = vpack.c.bf16 %v1536, %v1535
      %v1579 = vpack.c.bf16 %v1538, %v1537
      %v1580 = vpack.c.bf16 %v1540, %v1539
      %v1581 = vpack.c.bf16 %v1542, %v1541
      %v1582 = vpack.c.bf16 %v1544, %v1543
      %v1583 = vpack.c.bf16 %v1546, %v1545
      %v1584 = vpack.c.bf16 %v1548, %v1547
      %v1585 = vpack.c.bf16 %v1550, %v1549
      %v1586 = vpack.c.bf16 %v1552, %v1551
      %v1587 = vpack.c.bf16 %v1554, %v1553
      %v1588 = vpack.c.bf16 %v1556, %v1555
      %v1589 = vpack.c.bf16 %v1558, %v1557
      %v1590 = vpack.c.bf16 %v1560, %v1559
      %v1591 = vpack.c.bf16 %v1562, %v1561
      %v1592 = vpack.c.bf16 %v1564, %v1563
      %v1593 = vpack.c.bf16 %v1566, %v1565
      %v1594 = vpack.c.bf16 %v1568, %v1567
      %v1595 = vpack.c.bf16 %v1570, %v1569
      %v1596 = vpack.c.bf16 %v1572, %v1571
      %v1597 = vld [vmem:[#allocation2 + $0x199] sm:$0xff]
      %v1598 = vld [vmem:[#allocation2 + $0x1a1] sm:$0xff]
      %v1599 = vld [vmem:[#allocation2 + $0x2a] sm:$0xff]
      %v1600 = vld [vmem:[#allocation2 + $0x32] sm:$0xff]
      %v1601 = vld [vmem:[#allocation2 + $0x3a] sm:$0xff]
      %v1602 = vld [vmem:[#allocation2 + $0x42] sm:$0xff]
      %v1603 = vld [vmem:[#allocation2 + $0x4a] sm:$0xff]
      %v1604 = vld [vmem:[#allocation2 + $0x52] sm:$0xff]
      %v1605 = vld [vmem:[#allocation2 + $0x5a] sm:$0xff]
      %v1606 = vld [vmem:[#allocation2 + $0x62] sm:$0xff]
      %v1607 = vld [vmem:[#allocation2 + $0x6a] sm:$0xff]
      %v1608 = vld [vmem:[#allocation2 + $0x72] sm:$0xff]
      %v1609 = vld [vmem:[#allocation2 + $0x7a] sm:$0xff]
      %v1610 = vld [vmem:[#allocation2 + $0x82] sm:$0xff]
      %v1611 = vld [vmem:[#allocation2 + $0x8a] sm:$0xff]
      %v1612 = vld [vmem:[#allocation2 + $0x92] sm:$0xff]
      %v1613 = vld [vmem:[#allocation2 + $0x9a] sm:$0xff]
      %v1614 = vld [vmem:[#allocation2 + $0xa2] sm:$0xff]
      %v1615 = vld [vmem:[#allocation2 + $0xaa] sm:$0xff]
      %v1616 = vld [vmem:[#allocation2 + $0xb2] sm:$0xff]
      %v1617 = vld [vmem:[#allocation2 + $0xba] sm:$0xff]
      %v1618 = vld [vmem:[#allocation2 + $0xc2] sm:$0xff]
      %v1619 = vld [vmem:[#allocation2 + $0xca] sm:$0xff]
      %v1620 = vld [vmem:[#allocation2 + $0xd2] sm:$0xff]
      %v1621 = vld [vmem:[#allocation2 + $0xda] sm:$0xff]
      %v1622 = vld [vmem:[#allocation2 + $0xe2] sm:$0xff]
      %v1623 = vld [vmem:[#allocation2 + $0xea] sm:$0xff]
      %v1624 = vld [vmem:[#allocation2 + $0xf2] sm:$0xff]
      %v1625 = vld [vmem:[#allocation2 + $0xfa] sm:$0xff]
      %v1626 = vld [vmem:[#allocation2 + $0x102] sm:$0xff]
      %v1627 = vld [vmem:[#allocation2 + $0x10a] sm:$0xff]
      %v1628 = vld [vmem:[#allocation2 + $0x112] sm:$0xff]
      %v1629 = vld [vmem:[#allocation2 + $0x11a] sm:$0xff]
      %v1630 = vld [vmem:[#allocation2 + $0x122] sm:$0xff]
      %v1631 = vld [vmem:[#allocation2 + $0x12a] sm:$0xff]
      %v1632 = vld [vmem:[#allocation2 + $0x132] sm:$0xff]
      %v1633 = vld [vmem:[#allocation2 + $0x13a] sm:$0xff]
      %v1634 = vld [vmem:[#allocation2 + $0x142] sm:$0xff]
      %v1635 = vld [vmem:[#allocation2 + $0x14a] sm:$0xff]
      %v1636 = vld [vmem:[#allocation2 + $0x152] sm:$0xff]
      %v1637 = vld [vmem:[#allocation2 + $0x15a] sm:$0xff]
      %v1638 = vld [vmem:[#allocation2 + $0x162] sm:$0xff]
      %v1639 = vld [vmem:[#allocation2 + $0x16a] sm:$0xff]
      %v1640 = vld [vmem:[#allocation2 + $0x172] sm:$0xff]
      %v1641 = vld [vmem:[#allocation2 + $0x17a] sm:$0xff]
      %v1642 = vld [vmem:[#allocation2 + $0x182] sm:$0xff]
      %v1643 = vld [vmem:[#allocation2 + $0x18a] sm:$0xff]
      %v1644 = vld [vmem:[#allocation2 + $0x192] sm:$0xff]
      %v1645 = vld [vmem:[#allocation2 + $0x19a] sm:$0xff]
      %v1646 = vld [vmem:[#allocation2 + $0x1a2] sm:$0xff]
      %v1647 = vld [vmem:[#allocation2 + $0x2b] sm:$0xff]
      %v1648 = vld [vmem:[#allocation2 + $0x33] sm:$0xff]
      %v1649 = vld [vmem:[#allocation2 + $0x3b] sm:$0xff]
      %v1650 = vld [vmem:[#allocation2 + $0x43] sm:$0xff]
      %v1651 = vld [vmem:[#allocation2 + $0x4b] sm:$0xff]
      %v1652 = vld [vmem:[#allocation2 + $0x53] sm:$0xff]
      %v1653 = vld [vmem:[#allocation2 + $0x5b] sm:$0xff]
      %v1654 = vld [vmem:[#allocation2 + $0x63] sm:$0xff]
      %v1655 = vld [vmem:[#allocation2 + $0x6b] sm:$0xff]
      %v1656 = vld [vmem:[#allocation2 + $0x73] sm:$0xff]
      %v1657 = vld [vmem:[#allocation2 + $0x7b] sm:$0xff]
      %v1658 = vld [vmem:[#allocation2 + $0x83] sm:$0xff]
      %v1659 = vld [vmem:[#allocation2 + $0x8b] sm:$0xff]
      %v1660 = vld [vmem:[#allocation2 + $0x93] sm:$0xff]
      %v1661 = vld [vmem:[#allocation2 + $0x9b] sm:$0xff]
      %v1662 = vld [vmem:[#allocation2 + $0xa3] sm:$0xff]
      %v1663 = vld [vmem:[#allocation2 + $0xab] sm:$0xff]
      %v1664 = vld [vmem:[#allocation2 + $0xb3] sm:$0xff]
      %v1665 = vld [vmem:[#allocation2 + $0xbb] sm:$0xff]
      %v1666 = vld [vmem:[#allocation2 + $0xc3] sm:$0xff]
      %v1667 = vld [vmem:[#allocation2 + $0xcb] sm:$0xff]
      %v1668 = vld [vmem:[#allocation2 + $0xd3] sm:$0xff]
      %v1669 = vld [vmem:[#allocation2 + $0xdb] sm:$0xff]
      %v1670 = vld [vmem:[#allocation2 + $0xe3] sm:$0xff]
      %v1671 = vld [vmem:[#allocation2 + $0xeb] sm:$0xff]
      %v1672 = vld [vmem:[#allocation2 + $0xf3] sm:$0xff]
      %v1673 = vld [vmem:[#allocation2 + $0xfb] sm:$0xff]
      %v1674 = vld [vmem:[#allocation2 + $0x103] sm:$0xff]
      %v1675 = vld [vmem:[#allocation2 + $0x10b] sm:$0xff]
      %v1676 = vld [vmem:[#allocation2 + $0x113] sm:$0xff]
      %v1677 = vld [vmem:[#allocation2 + $0x11b] sm:$0xff]
      %v1678 = vld [vmem:[#allocation2 + $0x123] sm:$0xff]
      %v1679 = vld [vmem:[#allocation2 + $0x12b] sm:$0xff]
      %v1680 = vld [vmem:[#allocation2 + $0x133] sm:$0xff]
      %v1681 = vld [vmem:[#allocation2 + $0x13b] sm:$0xff]
      %v1682 = vld [vmem:[#allocation2 + $0x143] sm:$0xff]
      %v1683 = vld [vmem:[#allocation2 + $0x14b] sm:$0xff]
      %v1684 = vld [vmem:[#allocation2 + $0x153] sm:$0xff]
      %v1685 = vld [vmem:[#allocation2 + $0x15b] sm:$0xff]
      %v1686 = vld [vmem:[#allocation2 + $0x163] sm:$0xff]
      %v1687 = vld [vmem:[#allocation2 + $0x16b] sm:$0xff]
      %v1688 = vld [vmem:[#allocation2 + $0x173] sm:$0xff]
      %v1689 = vld [vmem:[#allocation2 + $0x17b] sm:$0xff]
      %v1690 = vld [vmem:[#allocation2 + $0x183] sm:$0xff]
      %v1691 = vld [vmem:[#allocation2 + $0x18b] sm:$0xff]
      %v1692 = vld [vmem:[#allocation2 + $0x193] sm:$0xff]
      %v1693 = vld [vmem:[#allocation2 + $0x19b] sm:$0xff]
      %v1694 = vld [vmem:[#allocation2 + $0x1a3] sm:$0xff]
      %1743 = vrot.lane.b32.xlu0 %v1599, 32
      %v1744 = vpop.permute.xlu0 %1743
      %1745 = vrot.lane.b32.xlu0 %v1600, 32
      %v1746 = vpop.permute.xlu0 %1745
      %1747 = vrot.lane.b32.xlu0 %v1601, 32
      %v1748 = vpop.permute.xlu0 %1747
      %1749 = vrot.lane.b32.xlu0 %v1602, 32
      %v1750 = vpop.permute.xlu0 %1749
      %1751 = vrot.lane.b32.xlu0 %v1603, 32
      %v1752 = vpop.permute.xlu0 %1751
      %1753 = vrot.lane.b32.xlu0 %v1604, 32
      %v1754 = vpop.permute.xlu0 %1753
      %1755 = vrot.lane.b32.xlu0 %v1605, 32
      %v1756 = vpop.permute.xlu0 %1755
      %1757 = vrot.lane.b32.xlu0 %v1606, 32
      %v1758 = vpop.permute.xlu0 %1757
      %1759 = vrot.lane.b32.xlu0 %v1607, 32
      %v1760 = vpop.permute.xlu0 %1759
      %1761 = vrot.lane.b32.xlu0 %v1608, 32
      %v1762 = vpop.permute.xlu0 %1761
      %1763 = vrot.lane.b32.xlu0 %v1609, 32
      %v1764 = vpop.permute.xlu0 %1763
      %1765 = vrot.lane.b32.xlu0 %v1610, 32
      %v1766 = vpop.permute.xlu0 %1765
      %1767 = vrot.lane.b32.xlu0 %v1611, 32
      %v1768 = vpop.permute.xlu0 %1767
      %1769 = vrot.lane.b32.xlu0 %v1612, 32
      %v1770 = vpop.permute.xlu0 %1769
      %1771 = vrot.lane.b32.xlu0 %v1613, 32
      %v1772 = vpop.permute.xlu0 %1771
      %1773 = vrot.lane.b32.xlu0 %v1614, 32
      %v1774 = vpop.permute.xlu0 %1773
      %1775 = vrot.lane.b32.xlu0 %v1615, 32
      %v1776 = vpop.permute.xlu0 %1775
      %1777 = vrot.lane.b32.xlu0 %v1616, 32
      %v1778 = vpop.permute.xlu0 %1777
      %1779 = vrot.lane.b32.xlu0 %v1617, 32
      %v1780 = vpop.permute.xlu0 %1779
      %1781 = vrot.lane.b32.xlu0 %v1618, 32
      %v1782 = vpop.permute.xlu0 %1781
      %1783 = vrot.lane.b32.xlu0 %v1619, 32
      %v1784 = vpop.permute.xlu0 %1783
      %1785 = vrot.lane.b32.xlu0 %v1620, 32
      %v1786 = vpop.permute.xlu0 %1785
      %1787 = vrot.lane.b32.xlu0 %v1621, 32
      %v1788 = vpop.permute.xlu0 %1787
      %1789 = vrot.lane.b32.xlu0 %v1622, 32
      %v1790 = vpop.permute.xlu0 %1789
      %1791 = vrot.lane.b32.xlu0 %v1623, 32
      %v1792 = vpop.permute.xlu0 %1791
      %1793 = vrot.lane.b32.xlu0 %v1624, 32
      %v1794 = vpop.permute.xlu0 %1793
      %1795 = vrot.lane.b32.xlu0 %v1625, 32
      %v1796 = vpop.permute.xlu0 %1795
      %1797 = vrot.lane.b32.xlu0 %v1626, 32
      %v1798 = vpop.permute.xlu0 %1797
      %1799 = vrot.lane.b32.xlu0 %v1627, 32
      %v1800 = vpop.permute.xlu0 %1799
      %1801 = vrot.lane.b32.xlu0 %v1628, 32
      %v1802 = vpop.permute.xlu0 %1801
      %1803 = vrot.lane.b32.xlu0 %v1629, 32
      %v1804 = vpop.permute.xlu0 %1803
      %1805 = vrot.lane.b32.xlu0 %v1630, 32
      %v1806 = vpop.permute.xlu0 %1805
      %1807 = vrot.lane.b32.xlu0 %v1631, 32
      %v1808 = vpop.permute.xlu0 %1807
      %1809 = vrot.lane.b32.xlu0 %v1632, 32
      %v1810 = vpop.permute.xlu0 %1809
      %1811 = vrot.lane.b32.xlu0 %v1633, 32
      %v1812 = vpop.permute.xlu0 %1811
      %1813 = vrot.lane.b32.xlu0 %v1634, 32
      %v1814 = vpop.permute.xlu0 %1813
      %1815 = vrot.lane.b32.xlu0 %v1635, 32
      %v1816 = vpop.permute.xlu0 %1815
      %1817 = vrot.lane.b32.xlu0 %v1636, 32
      %v1818 = vpop.permute.xlu0 %1817
      %1819 = vrot.lane.b32.xlu0 %v1637, 32
      %v1820 = vpop.permute.xlu0 %1819
      %1821 = vrot.lane.b32.xlu0 %v1638, 32
      %v1822 = vpop.permute.xlu0 %1821
      %1823 = vrot.lane.b32.xlu0 %v1639, 32
      %v1824 = vpop.permute.xlu0 %1823
      %1825 = vrot.lane.b32.xlu0 %v1640, 32
      %v1826 = vpop.permute.xlu0 %1825
      %1827 = vrot.lane.b32.xlu0 %v1641, 32
      %v1828 = vpop.permute.xlu0 %1827
      %1829 = vrot.lane.b32.xlu0 %v1642, 32
      %v1830 = vpop.permute.xlu0 %1829
      %1831 = vrot.lane.b32.xlu0 %v1643, 32
      %v1832 = vpop.permute.xlu0 %1831
      %1833 = vrot.lane.b32.xlu0 %v1644, 32
      %v1834 = vpop.permute.xlu0 %1833
      %1835 = vrot.lane.b32.xlu0 %v1645, 32
      %v1836 = vpop.permute.xlu0 %1835
      %1837 = vrot.lane.b32.xlu0 %v1646, 32
      %v1838 = vpop.permute.xlu0 %1837
      %1935 = vrot.lane.b32.xlu0 %v1647, 64
      %v1936 = vpop.permute.xlu0 %1935
      %1937 = vrot.lane.b32.xlu0 %v1648, 64
      %v1938 = vpop.permute.xlu0 %1937
      %1939 = vrot.lane.b32.xlu0 %v1649, 64
      %v1940 = vpop.permute.xlu0 %1939
      %1941 = vrot.lane.b32.xlu0 %v1650, 64
      %v1942 = vpop.permute.xlu0 %1941
      %1943 = vrot.lane.b32.xlu0 %v1651, 64
      %v1944 = vpop.permute.xlu0 %1943
      %1945 = vrot.lane.b32.xlu0 %v1652, 64
      %v1946 = vpop.permute.xlu0 %1945
      %1947 = vrot.lane.b32.xlu0 %v1653, 64
      %v1948 = vpop.permute.xlu0 %1947
      %1949 = vrot.lane.b32.xlu0 %v1654, 64
      %v1950 = vpop.permute.xlu0 %1949
      %1951 = vrot.lane.b32.xlu0 %v1655, 64
      %v1952 = vpop.permute.xlu0 %1951
      %1953 = vrot.lane.b32.xlu0 %v1656, 64
      %v1954 = vpop.permute.xlu0 %1953
      %1955 = vrot.lane.b32.xlu0 %v1657, 64
      %v1956 = vpop.permute.xlu0 %1955
      %1957 = vrot.lane.b32.xlu0 %v1658, 64
      %v1958 = vpop.permute.xlu0 %1957
      %1959 = vrot.lane.b32.xlu0 %v1659, 64
      %v1960 = vpop.permute.xlu0 %1959
      %1961 = vrot.lane.b32.xlu0 %v1660, 64
      %v1962 = vpop.permute.xlu0 %1961
      %1963 = vrot.lane.b32.xlu0 %v1661, 64
      %v1964 = vpop.permute.xlu0 %1963
      %1965 = vrot.lane.b32.xlu0 %v1662, 64
      %v1966 = vpop.permute.xlu0 %1965
      %1967 = vrot.lane.b32.xlu0 %v1663, 64
      %v1968 = vpop.permute.xlu0 %1967
      %1969 = vrot.lane.b32.xlu0 %v1664, 64
      %v1970 = vpop.permute.xlu0 %1969
      %1971 = vrot.lane.b32.xlu0 %v1665, 64
      %v1972 = vpop.permute.xlu0 %1971
      %1973 = vrot.lane.b32.xlu0 %v1666, 64
      %v1974 = vpop.permute.xlu0 %1973
      %1975 = vrot.lane.b32.xlu0 %v1667, 64
      %v1976 = vpop.permute.xlu0 %1975
      %1977 = vrot.lane.b32.xlu0 %v1668, 64
      %v1978 = vpop.permute.xlu0 %1977
      %1979 = vrot.lane.b32.xlu0 %v1669, 64
      %v1980 = vpop.permute.xlu0 %1979
      %1981 = vrot.lane.b32.xlu0 %v1670, 64
      %v1982 = vpop.permute.xlu0 %1981
      %1983 = vrot.lane.b32.xlu0 %v1671, 64
      %v1984 = vpop.permute.xlu0 %1983
      %1985 = vrot.lane.b32.xlu0 %v1672, 64
      %v1986 = vpop.permute.xlu0 %1985
      %1987 = vrot.lane.b32.xlu0 %v1673, 64
      %v1988 = vpop.permute.xlu0 %1987
      %1989 = vrot.lane.b32.xlu0 %v1674, 64
      %v1990 = vpop.permute.xlu0 %1989
      %1991 = vrot.lane.b32.xlu0 %v1675, 64
      %v1992 = vpop.permute.xlu0 %1991
      %1993 = vrot.lane.b32.xlu0 %v1676, 64
      %v1994 = vpop.permute.xlu0 %1993
      %1995 = vrot.lane.b32.xlu0 %v1677, 64
      %v1996 = vpop.permute.xlu0 %1995
      %1997 = vrot.lane.b32.xlu0 %v1678, 64
      %v1998 = vpop.permute.xlu0 %1997
      %1999 = vrot.lane.b32.xlu0 %v1679, 64
      %v2000 = vpop.permute.xlu0 %1999
      %2001 = vrot.lane.b32.xlu0 %v1680, 64
      %v2002 = vpop.permute.xlu0 %2001
      %2003 = vrot.lane.b32.xlu0 %v1681, 64
      %v2004 = vpop.permute.xlu0 %2003
      %2005 = vrot.lane.b32.xlu0 %v1682, 64
      %v2006 = vpop.permute.xlu0 %2005
      %2007 = vrot.lane.b32.xlu0 %v1683, 64
      %v2008 = vpop.permute.xlu0 %2007
      %2009 = vrot.lane.b32.xlu0 %v1684, 64
      %v2010 = vpop.permute.xlu0 %2009
      %2011 = vrot.lane.b32.xlu0 %v1685, 64
      %v2012 = vpop.permute.xlu0 %2011
      %2013 = vrot.lane.b32.xlu0 %v1686, 64
      %v2014 = vpop.permute.xlu0 %2013
      %2015 = vrot.lane.b32.xlu0 %v1687, 64
      %v2016 = vpop.permute.xlu0 %2015
      %2017 = vrot.lane.b32.xlu0 %v1688, 64
      %v2018 = vpop.permute.xlu0 %2017
      %2019 = vrot.lane.b32.xlu0 %v1689, 64
      %v2020 = vpop.permute.xlu0 %2019
      %2021 = vrot.lane.b32.xlu0 %v1690, 64
      %v2022 = vpop.permute.xlu0 %2021
      %2023 = vrot.lane.b32.xlu0 %v1691, 64
      %v2024 = vpop.permute.xlu0 %2023
      %2025 = vrot.lane.b32.xlu0 %v1692, 64
      %v2026 = vpop.permute.xlu0 %2025
      %2027 = vrot.lane.b32.xlu0 %v1693, 64
      %v2028 = vpop.permute.xlu0 %2027
      %2029 = vrot.lane.b32.xlu0 %v1694, 64
      %v2030 = vpop.permute.xlu0 %2029
      %v2079 = vsel %vm873, %v1047, %v1744
      %v2080 = vsel %vm873, %v1048, %v1746
      %v2081 = vsel %vm873, %v1049, %v1748
      %v2082 = vsel %vm873, %v1050, %v1750
      %v2083 = vsel %vm873, %v1051, %v1752
      %v2084 = vsel %vm873, %v1052, %v1754
      %v2085 = vsel %vm873, %v1053, %v1756
      %v2086 = vsel %vm873, %v1054, %v1758
      %v2087 = vsel %vm873, %v1055, %v1760
      %v2088 = vsel %vm873, %v1056, %v1762
      %v2089 = vsel %vm873, %v1057, %v1764
      %v2090 = vsel %vm873, %v1058, %v1766
      %v2091 = vsel %vm873, %v1059, %v1768
      %v2092 = vsel %vm873, %v1060, %v1770
      %v2093 = vsel %vm873, %v1061, %v1772
      %v2094 = vsel %vm873, %v1062, %v1774
      %v2095 = vsel %vm873, %v1063, %v1776
      %v2096 = vsel %vm873, %v1064, %v1778
      %v2097 = vsel %vm873, %v1065, %v1780
      %v2098 = vsel %vm873, %v1066, %v1782
      %v2099 = vsel %vm873, %v1067, %v1784
      %v2100 = vsel %vm873, %v1068, %v1786
      %v2101 = vsel %vm873, %v1069, %v1788
      %v2102 = vsel %vm873, %v1070, %v1790
      %v2103 = vsel %vm873, %v1071, %v1792
      %v2104 = vsel %vm873, %v1072, %v1794
      %v2105 = vsel %vm873, %v1073, %v1796
      %v2106 = vsel %vm873, %v1074, %v1798
      %v2107 = vsel %vm873, %v1075, %v1800
      %v2108 = vsel %vm873, %v1076, %v1802
      %v2109 = vsel %vm873, %v1077, %v1804
      %v2110 = vsel %vm873, %v1078, %v1806
      %v2111 = vsel %vm873, %v1079, %v1808
      %v2112 = vsel %vm873, %v1080, %v1810
      %v2113 = vsel %vm873, %v1081, %v1812
      %v2114 = vsel %vm873, %v1082, %v1814
      %v2115 = vsel %vm873, %v1083, %v1816
      %v2116 = vsel %vm873, %v1084, %v1818
      %v2117 = vsel %vm873, %v1085, %v1820
      %v2118 = vsel %vm873, %v1086, %v1822
      %v2119 = vsel %vm873, %v1087, %v1824
      %v2120 = vsel %vm873, %v1088, %v1826
      %v2121 = vsel %vm873, %v1089, %v1828
      %v2122 = vsel %vm873, %v1090, %v1830
      %v2123 = vsel %vm873, %v1091, %v1832
      %v2124 = vsel %vm873, %v1092, %v1834
      %v2125 = vsel %vm873, %v1597, %v1836
      %v2126 = vsel %vm873, %v1598, %v1838
      %v2127 = vsel %vm922, %v2079, %v1936
      %v2128 = vsel %vm922, %v2080, %v1938
      %v2129 = vsel %vm922, %v2081, %v1940
      %v2130 = vsel %vm922, %v2082, %v1942
      %v2131 = vsel %vm922, %v2083, %v1944
      %v2132 = vsel %vm922, %v2084, %v1946
      %v2133 = vsel %vm922, %v2085, %v1948
      %v2134 = vsel %vm922, %v2086, %v1950
      %v2135 = vsel %vm922, %v2087, %v1952
      %v2136 = vsel %vm922, %v2088, %v1954
      %v2137 = vsel %vm922, %v2089, %v1956
      %v2138 = vsel %vm922, %v2090, %v1958
      %v2139 = vsel %vm922, %v2091, %v1960
      %v2140 = vsel %vm922, %v2092, %v1962
      %v2141 = vsel %vm922, %v2093, %v1964
      %v2142 = vsel %vm922, %v2094, %v1966
      %v2143 = vsel %vm922, %v2095, %v1968
      %v2144 = vsel %vm922, %v2096, %v1970
      %v2145 = vsel %vm922, %v2097, %v1972
      %v2146 = vsel %vm922, %v2098, %v1974
      %v2147 = vsel %vm922, %v2099, %v1976
      %v2148 = vsel %vm922, %v2100, %v1978
      %v2149 = vsel %vm922, %v2101, %v1980
      %v2150 = vsel %vm922, %v2102, %v1982
      %v2151 = vsel %vm922, %v2103, %v1984
      %v2152 = vsel %vm922, %v2104, %v1986
      %v2153 = vsel %vm922, %v2105, %v1988
      %v2154 = vsel %vm922, %v2106, %v1990
      %v2155 = vsel %vm922, %v2107, %v1992
      %v2156 = vsel %vm922, %v2108, %v1994
      %v2157 = vsel %vm922, %v2109, %v1996
      %v2158 = vsel %vm922, %v2110, %v1998
      %v2159 = vsel %vm922, %v2111, %v2000
      %v2160 = vsel %vm922, %v2112, %v2002
      %v2161 = vsel %vm922, %v2113, %v2004
      %v2162 = vsel %vm922, %v2114, %v2006
      %v2163 = vsel %vm922, %v2115, %v2008
      %v2164 = vsel %vm922, %v2116, %v2010
      %v2165 = vsel %vm922, %v2117, %v2012
      %v2166 = vsel %vm922, %v2118, %v2014
      %v2167 = vsel %vm922, %v2119, %v2016
      %v2168 = vsel %vm922, %v2120, %v2018
      %v2169 = vsel %vm922, %v2121, %v2020
      %v2170 = vsel %vm922, %v2122, %v2022
      %v2171 = vsel %vm922, %v2123, %v2024
      %v2172 = vsel %vm922, %v2124, %v2026
      %v2173 = vsel %vm922, %v2125, %v2028
      %v2174 = vsel %vm922, %v2126, %v2030
      %v2175 = vpack.c.bf16 %v2128, %v2127
      %v2176 = vpack.c.bf16 %v2130, %v2129
      %v2177 = vpack.c.bf16 %v2132, %v2131
      %v2178 = vpack.c.bf16 %v2134, %v2133
      %v2179 = vpack.c.bf16 %v2136, %v2135
      %v2180 = vpack.c.bf16 %v2138, %v2137
      %v2181 = vpack.c.bf16 %v2140, %v2139
      %v2182 = vpack.c.bf16 %v2142, %v2141
      %v2183 = vpack.c.bf16 %v2144, %v2143
      %v2184 = vpack.c.bf16 %v2146, %v2145
      %v2185 = vpack.c.bf16 %v2148, %v2147
      %v2186 = vpack.c.bf16 %v2150, %v2149
      %v2187 = vpack.c.bf16 %v2152, %v2151
      %v2188 = vpack.c.bf16 %v2154, %v2153
      %v2189 = vpack.c.bf16 %v2156, %v2155
      %v2190 = vpack.c.bf16 %v2158, %v2157
      %v2191 = vpack.c.bf16 %v2160, %v2159
      %v2192 = vpack.c.bf16 %v2162, %v2161
      %v2193 = vpack.c.bf16 %v2164, %v2163
      %v2194 = vpack.c.bf16 %v2166, %v2165
      %v2195 = vpack.c.bf16 %v2168, %v2167
      %v2196 = vpack.c.bf16 %v2170, %v2169
      %v2197 = vpack.c.bf16 %v2172, %v2171
      %v2198 = vpack.c.bf16 %v2174, %v2173
      %v2199 = vld [vmem:[%s1] sm:$0xf]
      %v2200 = vld [vmem:[%s1 + $0x4] sm:$0xf]
      %v2201 = vld [vmem:[%s1 + $0x8] sm:$0xf]
      %v2202 = vld [vmem:[%s1 + $0xc] sm:$0xf]
      %v2203 = vld [vmem:[%s1 + $0x10] sm:$0xf]
      %v2204 = vld [vmem:[%s1 + $0x14] sm:$0xf]
      %v2205 = vld [vmem:[%s1 + $0x18] sm:$0xf]
      %v2206 = vld [vmem:[%s1 + $0x1c] sm:$0xf]
      %v2207 = vld [vmem:[%s1 + $0x20] sm:$0xf]
      %v2208 = vld [vmem:[%s1 + $0x24] sm:$0xf]
      %v2209 = vld [vmem:[%s1 + $0x28] sm:$0xf]
      %v2210 = vld [vmem:[%s1 + $0x2c] sm:$0xf]
      %s2211 = scalar_lea.vmem %s1, 48
      %v2212 = vld [vmem:[%s2211] sm:$0xf]
      %v2213 = vld [vmem:[%s2211 + $0x4] sm:$0xf]
      %v2214 = vld [vmem:[%s2211 + $0x8] sm:$0xf]
      %v2215 = vld [vmem:[%s2211 + $0xc] sm:$0xf]
      %v2216 = vld [vmem:[%s2211 + $0x10] sm:$0xf]
      %v2217 = vld [vmem:[%s2211 + $0x14] sm:$0xf]
      %v2218 = vld [vmem:[%s2211 + $0x18] sm:$0xf]
      %v2219 = vld [vmem:[%s2211 + $0x1c] sm:$0xf]
      %v2220 = vld [vmem:[%s2211 + $0x20] sm:$0xf]
      %v2221 = vld [vmem:[%s2211 + $0x24] sm:$0xf]
      %v2222 = vld [vmem:[%s2211 + $0x28] sm:$0xf]
      %v2223 = vld [vmem:[%s2211 + $0x2c] sm:$0xf]
      %s2224 = scalar_lea.vmem %s1, 96
      %v2225 = vld [vmem:[%s2224] sm:$0xf]
      %v2226 = vld [vmem:[%s2224 + $0x4] sm:$0xf]
      %v2227 = vld [vmem:[%s2224 + $0x8] sm:$0xf]
      %v2228 = vld [vmem:[%s2224 + $0xc] sm:$0xf]
      %v2229 = vld [vmem:[%s2224 + $0x10] sm:$0xf]
      %v2230 = vld [vmem:[%s2224 + $0x14] sm:$0xf]
      %v2231 = vld [vmem:[%s2224 + $0x18] sm:$0xf]
      %v2232 = vld [vmem:[%s2224 + $0x1c] sm:$0xf]
      %v2233 = vld [vmem:[%s2224 + $0x20] sm:$0xf]
      %v2234 = vld [vmem:[%s2224 + $0x24] sm:$0xf]
      %v2235 = vld [vmem:[%s2224 + $0x28] sm:$0xf]
      %v2236 = vld [vmem:[%s2224 + $0x2c] sm:$0xf]
      %v2237 = vld [vmem:[%s226] sm:$0xff]
      %v2238 = vld [vmem:[%s226 + $0x8] sm:$0xff]
      %v2239 = vld [vmem:[%s226 + $0x10] sm:$0xff]
      %v2240 = vld [vmem:[%s226 + $0x18] sm:$0xff]
      %v2241 = vld [vmem:[%s226 + $0x20] sm:$0xff]
      %v2242 = vld [vmem:[%s226 + $0x28] sm:$0xff]
      %v2243 = vld [vmem:[%s226 + $0x30] sm:$0xff]
      %v2244 = vld [vmem:[%s226 + $0x38] sm:$0xff]
      %v2245 = vld [vmem:[%s226 + $0x40] sm:$0xff]
      %v2246 = vld [vmem:[%s226 + $0x48] sm:$0xff]
      %v2247 = vld [vmem:[%s226 + $0x50] sm:$0xff]
      %v2248 = vld [vmem:[%s226 + $0x58] sm:$0xff]
      %v2249 = vld [vmem:[%s226 + $0x60] sm:$0xff]
      %v2250 = vld [vmem:[%s226 + $0x68] sm:$0xff]
      %v2251 = vld [vmem:[%s226 + $0x70] sm:$0xff]
      %v2252 = vld [vmem:[%s226 + $0x78] sm:$0xff]
      %v2265 = vunpack.c.l.b16 %v2199
      %v2266 = vunpack.c.l.b16 %v2200
      %v2267 = vunpack.c.l.b16 %v2201
      %v2268 = vunpack.c.l.b16 %v2202
      %v2269 = vunpack.c.l.b16 %v2203
      %v2270 = vunpack.c.l.b16 %v2204
      %v2271 = vunpack.c.l.b16 %v2205
      %v2272 = vunpack.c.l.b16 %v2206
      %v2273 = vunpack.c.l.b16 %v2207
      %v2274 = vunpack.c.l.b16 %v2208
      %v2275 = vunpack.c.l.b16 %v2209
      %v2276 = vunpack.c.l.b16 %v2210
      %v2277 = vpack.c.b16 %v2266, %v2265
      %v2278 = vpack.c.b16 %v2268, %v2267
      %v2279 = vpack.c.b16 %v2270, %v2269
      %v2280 = vpack.c.b16 %v2272, %v2271
      %v2281 = vpack.c.b16 %v2274, %v2273
      %v2282 = vpack.c.b16 %v2276, %v2275
      %vm2289 = vcmask 785408
      %v2291 = vsel %vm2289, %v971, 0
      %v2294 = vsel %vm2289, %v972, 0
      %v2297 = vsel %vm2289, %v973, 0
      %v2300 = vsel %vm2289, %v974, 0
      %v2303 = vsel %vm2289, %v975, 0
      %v2306 = vsel %vm2289, %v976, 0
      %v2309 = vsel %vm2289, %v977, 0
      %v2312 = vsel %vm2289, %v978, 0
      %2314 = vmatprep.subr.bf16.mxu0 0
      %2315 = vmatpush1.bf16.msra.mxu0 %v2277
      %2316 = vmatprep.subr.bf16.mxu0 0
      %2317 = vmatpush1.bf16.msra.mxu0 %v2278
      %2318 = vmatprep.subr.bf16.mxu0 0
      %2319 = vmatpush1.bf16.msra.mxu0 %v2279
      %2320 = vmatprep.subr.bf16.mxu0 0
      %2321 = vmatpush1.bf16.msra.mxu0 %v2280
      %2322 = vmatprep.subr.bf16.mxu0 0
      %2323 = vmatpush1.bf16.msra.mxu0 %v2281
      %2324 = vmatprep.subr.bf16.mxu0 0
      %2325 = vmatpush1.bf16.msra.mxu0 %v2282
      %2326 = vmatprep.subr.bf16.mxu0 0
      %2327 = vmatpush1.bf16.msra.mxu0 0
      %2328 = vmatprep.subr.bf16.mxu0 0
      %2329 = vmatpush1.bf16.msra.mxu0 0
      %2330 = vmatprep.subr.bf16.mxu0 0
      %2331 = vmatpush1.bf16.msra.mxu0 0
      %2332 = vmatprep.subr.bf16.mxu0 0
      %2333 = vmatpush1.bf16.msra.mxu0 0
      %2334 = vmatprep.subr.bf16.mxu0 0
      %2335 = vmatpush1.bf16.msra.mxu0 0
      %2336 = vmatprep.subr.bf16.mxu0 0
      %2337 = vmatpush1.bf16.msra.mxu0 0
      %2338 = vmatprep.subr.bf16.mxu0 0
      %2339 = vmatpush1.bf16.msra.mxu0 0
      %2340 = vmatprep.subr.bf16.mxu0 0
      %2341 = vmatpush1.bf16.msra.mxu0 0
      %2342 = vmatprep.subr.bf16.mxu0 0
      %2343 = vmatpush1.bf16.msra.mxu0 0
      %2344 = vmatprep.subr.bf16.mxu0 0
      %2345 = vmatpush1.bf16.msra.mxu0 0
      %2346 = vmatprep.mubr.bf16.mxu0 0
      %2347 = vmatmul.mubr.bf16.gmra.mrb[0].mxu0 %v2291
      %v2348 = vpop.f32.mrb[0].mxu0
      %v2349 = vadd.f32 0.0, %v2348
      %v2350 = vpop.f32.mrb[0].mxu0
      %v2351 = vpop.f32.mrb[0].mxu0
      %v2352 = vadd.f32 0.0, %v2351
      %v2353 = vpop.f32.mrb[0].mxu0
      %2354 = vmatprep.mubr.bf16.mxu0 0
      %2355 = vmatmul.mubr.bf16.gmra.mrb[0].mxu0 %v2294
      %v2356 = vpop.f32.mrb[0].mxu0
      %v2357 = vadd.f32 0.0, %v2356
      %v2358 = vpop.f32.mrb[0].mxu0
      %v2359 = vpop.f32.mrb[0].mxu0
      %v2360 = vadd.f32 0.0, %v2359
      %v2361 = vpop.f32.mrb[0].mxu0
      %2362 = vmatprep.mubr.bf16.mxu0 0
      %2363 = vmatmul.mubr.bf16.gmra.mrb[0].mxu0 %v2297
      %v2364 = vpop.f32.mrb[0].mxu0
      %v2365 = vadd.f32 0.0, %v2364
      %v2366 = vpop.f32.mrb[0].mxu0
      %v2367 = vpop.f32.mrb[0].mxu0
      %v2368 = vadd.f32 0.0, %v2367
      %v2369 = vpop.f32.mrb[0].mxu0
      %2370 = vmatprep.mubr.bf16.mxu0 0
      %2371 = vmatmul.mubr.bf16.gmra.mrb[0].mxu0 %v2300
      %v2372 = vpop.f32.mrb[0].mxu0
      %v2373 = vadd.f32 0.0, %v2372
      %v2374 = vpop.f32.mrb[0].mxu0
      %v2375 = vpop.f32.mrb[0].mxu0
      %v2376 = vadd.f32 0.0, %v2375
      %v2377 = vpop.f32.mrb[0].mxu0
      %2378 = vmatprep.mubr.bf16.mxu0 0
      %2379 = vmatmul.mubr.bf16.gmra.mrb[0].mxu0 %v2303
      %v2380 = vpop.f32.mrb[0].mxu0
      %v2381 = vadd.f32 0.0, %v2380
      %v2382 = vpop.f32.mrb[0].mxu0
      %v2383 = vpop.f32.mrb[0].mxu0
      %v2384 = vadd.f32 0.0, %v2383
      %v2385 = vpop.f32.mrb[0].mxu0
      %2386 = vmatprep.mubr.bf16.mxu0 0
      %2387 = vmatmul.mubr.bf16.gmra.mrb[0].mxu0 %v2306
      %v2388 = vpop.f32.mrb[0].mxu0
      %v2389 = vadd.f32 0.0, %v2388
      %v2390 = vpop.f32.mrb[0].mxu0
      %v2391 = vpop.f32.mrb[0].mxu0
      %v2392 = vadd.f32 0.0, %v2391
      %v2393 = vpop.f32.mrb[0].mxu0
      %2394 = vmatprep.mubr.bf16.mxu0 0
      %2395 = vmatmul.mubr.bf16.gmra.mrb[0].mxu0 %v2309
      %v2396 = vpop.f32.mrb[0].mxu0
      %v2397 = vadd.f32 0.0, %v2396
      %v2398 = vpop.f32.mrb[0].mxu0
      %v2399 = vpop.f32.mrb[0].mxu0
      %v2400 = vadd.f32 0.0, %v2399
      %v2401 = vpop.f32.mrb[0].mxu0
      %2402 = vmatprep.mubr.bf16.mxu0 0
      %2403 = vmatmul.mubr.bf16.gmra.mrb[0].mxu0 %v2312
      %v2404 = vpop.f32.mrb[0].mxu0
      %v2405 = vadd.f32 0.0, %v2404
      %v2406 = vpop.f32.mrb[0].mxu0
      %v2407 = vpop.f32.mrb[0].mxu0
      %v2408 = vadd.f32 0.0, %v2407
      %v2409 = vpop.f32.mrb[0].mxu0
      %2410 = vdwg.mxu0
      %v2411 = vadd.f32 %v2237, %v2349
      %v2412 = vadd.f32 %v2238, %v2352
      %v2413 = vadd.f32 %v2239, %v2357
      %v2414 = vadd.f32 %v2240, %v2360
      %v2415 = vadd.f32 %v2241, %v2365
      %v2416 = vadd.f32 %v2242, %v2368
      %v2417 = vadd.f32 %v2243, %v2373
      %v2418 = vadd.f32 %v2244, %v2376
      %v2419 = vadd.f32 %v2245, %v2381
      %v2420 = vadd.f32 %v2246, %v2384
      %v2421 = vadd.f32 %v2247, %v2389
      %v2422 = vadd.f32 %v2248, %v2392
      %v2423 = vadd.f32 %v2249, %v2397
      %v2424 = vadd.f32 %v2250, %v2400
      %v2425 = vadd.f32 %v2251, %v2405
      %v2426 = vadd.f32 %v2252, %v2408
      %v2439 = vunpack.c.l.b16 %v2212
      %v2440 = vunpack.c.l.b16 %v2213
      %v2441 = vunpack.c.l.b16 %v2214
      %v2442 = vunpack.c.l.b16 %v2215
      %v2443 = vunpack.c.l.b16 %v2216
      %v2444 = vunpack.c.l.b16 %v2217
      %v2445 = vunpack.c.l.b16 %v2218
      %v2446 = vunpack.c.l.b16 %v2219
      %v2447 = vunpack.c.l.b16 %v2220
      %v2448 = vunpack.c.l.b16 %v2221
      %v2449 = vunpack.c.l.b16 %v2222
      %v2450 = vunpack.c.l.b16 %v2223
      %v2451 = vpack.c.b16 %v2440, %v2439
      %v2452 = vpack.c.b16 %v2442, %v2441
      %v2453 = vpack.c.b16 %v2444, %v2443
      %v2454 = vpack.c.b16 %v2446, %v2445
      %v2455 = vpack.c.b16 %v2448, %v2447
      %v2456 = vpack.c.b16 %v2450, %v2449
      %v2464 = vsel %vm2289, %v1573, 0
      %v2467 = vsel %vm2289, %v1574, 0
      %v2470 = vsel %vm2289, %v1575, 0
      %v2473 = vsel %vm2289, %v1576, 0
      %v2476 = vsel %vm2289, %v1577, 0
      %v2479 = vsel %vm2289, %v1578, 0
      %v2482 = vsel %vm2289, %v1579, 0
      %v2485 = vsel %vm2289, %v1580, 0
      %2487 = vmatprep.subr.bf16.mxu0 0
      %2488 = vmatpush1.bf16.msra.mxu0 %v2451
      %2489 = vmatprep.subr.bf16.mxu0 0
      %2490 = vmatpush1.bf16.msra.mxu0 %v2452
      %2491 = vmatprep.subr.bf16.mxu0 0
      %2492 = vmatpush1.bf16.msra.mxu0 %v2453
      %2493 = vmatprep.subr.bf16.mxu0 0
      %2494 = vmatpush1.bf16.msra.mxu0 %v2454
      %2495 = vmatprep.subr.bf16.mxu0 0
      %2496 = vmatpush1.bf16.msra.mxu0 %v2455
      %2497 = vmatprep.subr.bf16.mxu0 0
      %2498 = vmatpush1.bf16.msra.mxu0 %v2456
      %2499 = vmatprep.subr.bf16.mxu0 0
      %2500 = vmatpush1.bf16.msra.mxu0 0
      %2501 = vmatprep.subr.bf16.mxu0 0
      %2502 = vmatpush1.bf16.msra.mxu0 0
      %2503 = vmatprep.subr.bf16.mxu0 0
      %2504 = vmatpush1.bf16.msra.mxu0 0
      %2505 = vmatprep.subr.bf16.mxu0 0
      %2506 = vmatpush1.bf16.msra.mxu0 0
      %2507 = vmatprep.subr.bf16.mxu0 0
      %2508 = vmatpush1.bf16.msra.mxu0 0
      %2509 = vmatprep.subr.bf16.mxu0 0
      %2510 = vmatpush1.bf16.msra.mxu0 0
      %2511 = vmatprep.subr.bf16.mxu0 0
      %2512 = vmatpush1.bf16.msra.mxu0 0
      %2513 = vmatprep.subr.bf16.mxu0 0
      %2514 = vmatpush1.bf16.msra.mxu0 0
      %2515 = vmatprep.subr.bf16.mxu0 0
      %2516 = vmatpush1.bf16.msra.mxu0 0
      %2517 = vmatprep.subr.bf16.mxu0 0
      %2518 = vmatpush1.bf16.msra.mxu0 0
      %2519 = vmatprep.mubr.bf16.mxu0 0
      %2520 = vmatmul.mubr.bf16.gmra.mrb[0].mxu0 %v2464
      %v2521 = vpop.f32.mrb[0].mxu0
      %v2522 = vadd.f32 0.0, %v2521
      %v2523 = vpop.f32.mrb[0].mxu0
      %v2524 = vpop.f32.mrb[0].mxu0
      %v2525 = vadd.f32 0.0, %v2524
      %v2526 = vpop.f32.mrb[0].mxu0
      %2527 = vmatprep.mubr.bf16.mxu0 0
      %2528 = vmatmul.mubr.bf16.gmra.mrb[0].mxu0 %v2467
      %v2529 = vpop.f32.mrb[0].mxu0
      %v2530 = vadd.f32 0.0, %v2529
      %v2531 = vpop.f32.mrb[0].mxu0
      %v2532 = vpop.f32.mrb[0].mxu0
      %v2533 = vadd.f32 0.0, %v2532
      %v2534 = vpop.f32.mrb[0].mxu0
      %2535 = vmatprep.mubr.bf16.mxu0 0
      %2536 = vmatmul.mubr.bf16.gmra.mrb[0].mxu0 %v2470
      %v2537 = vpop.f32.mrb[0].mxu0
      %v2538 = vadd.f32 0.0, %v2537
      %v2539 = vpop.f32.mrb[0].mxu0
      %v2540 = vpop.f32.mrb[0].mxu0
      %v2541 = vadd.f32 0.0, %v2540
      %v2542 = vpop.f32.mrb[0].mxu0
      %2543 = vmatprep.mubr.bf16.mxu0 0
      %2544 = vmatmul.mubr.bf16.gmra.mrb[0].mxu0 %v2473
      %v2545 = vpop.f32.mrb[0].mxu0
      %v2546 = vadd.f32 0.0, %v2545
      %v2547 = vpop.f32.mrb[0].mxu0
      %v2548 = vpop.f32.mrb[0].mxu0
      %v2549 = vadd.f32 0.0, %v2548
      %v2550 = vpop.f32.mrb[0].mxu0
      %2551 = vmatprep.mubr.bf16.mxu0 0
      %2552 = vmatmul.mubr.bf16.gmra.mrb[0].mxu0 %v2476
      %v2553 = vpop.f32.mrb[0].mxu0
      %v2554 = vadd.f32 0.0, %v2553
      %v2555 = vpop.f32.mrb[0].mxu0
      %v2556 = vpop.f32.mrb[0].mxu0
      %v2557 = vadd.f32 0.0, %v2556
      %v2558 = vpop.f32.mrb[0].mxu0
      %2559 = vmatprep.mubr.bf16.mxu0 0
      %2560 = vmatmul.mubr.bf16.gmra.mrb[0].mxu0 %v2479
      %v2561 = vpop.f32.mrb[0].mxu0
      %v2562 = vadd.f32 0.0, %v2561
      %v2563 = vpop.f32.mrb[0].mxu0
      %v2564 = vpop.f32.mrb[0].mxu0
      %v2565 = vadd.f32 0.0, %v2564
      %v2566 = vpop.f32.mrb[0].mxu0
      %2567 = vmatprep.mubr.bf16.mxu0 0
      %2568 = vmatmul.mubr.bf16.gmra.mrb[0].mxu0 %v2482
      %v2569 = vpop.f32.mrb[0].mxu0
      %v2570 = vadd.f32 0.0, %v2569
      %v2571 = vpop.f32.mrb[0].mxu0
      %v2572 = vpop.f32.mrb[0].mxu0
      %v2573 = vadd.f32 0.0, %v2572
      %v2574 = vpop.f32.mrb[0].mxu0
      %2575 = vmatprep.mubr.bf16.mxu0 0
      %2576 = vmatmul.mubr.bf16.gmra.mrb[0].mxu0 %v2485
      %v2577 = vpop.f32.mrb[0].mxu0
      %v2578 = vadd.f32 0.0, %v2577
      %v2579 = vpop.f32.mrb[0].mxu0
      %v2580 = vpop.f32.mrb[0].mxu0
      %v2581 = vadd.f32 0.0, %v2580
      %v2582 = vpop.f32.mrb[0].mxu0
      %2583 = vdwg.mxu0
      %v2584 = vadd.f32 %v2411, %v2522
      %v2585 = vadd.f32 %v2412, %v2525
      %v2586 = vadd.f32 %v2413, %v2530
      %v2587 = vadd.f32 %v2414, %v2533
      %v2588 = vadd.f32 %v2415, %v2538
      %v2589 = vadd.f32 %v2416, %v2541
      %v2590 = vadd.f32 %v2417, %v2546
      %v2591 = vadd.f32 %v2418, %v2549
      %v2592 = vadd.f32 %v2419, %v2554
      %v2593 = vadd.f32 %v2420, %v2557
      %v2594 = vadd.f32 %v2421, %v2562
      %v2595 = vadd.f32 %v2422, %v2565
      %v2596 = vadd.f32 %v2423, %v2570
      %v2597 = vadd.f32 %v2424, %v2573
      %v2598 = vadd.f32 %v2425, %v2578
      %v2599 = vadd.f32 %v2426, %v2581
      %v2612 = vunpack.c.l.b16 %v2225
      %v2613 = vunpack.c.l.b16 %v2226
      %v2614 = vunpack.c.l.b16 %v2227
      %v2615 = vunpack.c.l.b16 %v2228
      %v2616 = vunpack.c.l.b16 %v2229
      %v2617 = vunpack.c.l.b16 %v2230
      %v2618 = vunpack.c.l.b16 %v2231
      %v2619 = vunpack.c.l.b16 %v2232
      %v2620 = vunpack.c.l.b16 %v2233
      %v2621 = vunpack.c.l.b16 %v2234
      %v2622 = vunpack.c.l.b16 %v2235
      %v2623 = vunpack.c.l.b16 %v2236
      %v2624 = vpack.c.b16 %v2613, %v2612
      %v2625 = vpack.c.b16 %v2615, %v2614
      %v2626 = vpack.c.b16 %v2617, %v2616
      %v2627 = vpack.c.b16 %v2619, %v2618
      %v2628 = vpack.c.b16 %v2621, %v2620
      %v2629 = vpack.c.b16 %v2623, %v2622
      %v2637 = vsel %vm2289, %v2175, 0
      %v2640 = vsel %vm2289, %v2176, 0
      %v2643 = vsel %vm2289, %v2177, 0
      %v2646 = vsel %vm2289, %v2178, 0
      %v2649 = vsel %vm2289, %v2179, 0
      %v2652 = vsel %vm2289, %v2180, 0
      %v2655 = vsel %vm2289, %v2181, 0
      %v2658 = vsel %vm2289, %v2182, 0
      %2660 = vmatprep.subr.bf16.mxu0 0
      %2661 = vmatpush1.bf16.msra.mxu0 %v2624
      %2662 = vmatprep.subr.bf16.mxu0 0
      %2663 = vmatpush1.bf16.msra.mxu0 %v2625
      %2664 = vmatprep.subr.bf16.mxu0 0
      %2665 = vmatpush1.bf16.msra.mxu0 %v2626
      %2666 = vmatprep.subr.bf16.mxu0 0
      %2667 = vmatpush1.bf16.msra.mxu0 %v2627
      %2668 = vmatprep.subr.bf16.mxu0 0
      %2669 = vmatpush1.bf16.msra.mxu0 %v2628
      %2670 = vmatprep.subr.bf16.mxu0 0
      %2671 = vmatpush1.bf16.msra.mxu0 %v2629
      %2672 = vmatprep.subr.bf16.mxu0 0
      %2673 = vmatpush1.bf16.msra.mxu0 0
      %2674 = vmatprep.subr.bf16.mxu0 0
      %2675 = vmatpush1.bf16.msra.mxu0 0
      %2676 = vmatprep.subr.bf16.mxu0 0
      %2677 = vmatpush1.bf16.msra.mxu0 0
      %2678 = vmatprep.subr.bf16.mxu0 0
      %2679 = vmatpush1.bf16.msra.mxu0 0
      %2680 = vmatprep.subr.bf16.mxu0 0
      %2681 = vmatpush1.bf16.msra.mxu0 0
      %2682 = vmatprep.subr.bf16.mxu0 0
      %2683 = vmatpush1.bf16.msra.mxu0 0
      %2684 = vmatprep.subr.bf16.mxu0 0
      %2685 = vmatpush1.bf16.msra.mxu0 0
      %2686 = vmatprep.subr.bf16.mxu0 0
      %2687 = vmatpush1.bf16.msra.mxu0 0
      %2688 = vmatprep.subr.bf16.mxu0 0
      %2689 = vmatpush1.bf16.msra.mxu0 0
      %2690 = vmatprep.subr.bf16.mxu0 0
      %2691 = vmatpush1.bf16.msra.mxu0 0
      %2692 = vmatprep.mubr.bf16.mxu0 0
      %2693 = vmatmul.mubr.bf16.gmra.mrb[0].mxu0 %v2637
      %v2694 = vpop.f32.mrb[0].mxu0
      %v2695 = vadd.f32 0.0, %v2694
      %v2696 = vpop.f32.mrb[0].mxu0
      %v2697 = vpop.f32.mrb[0].mxu0
      %v2698 = vadd.f32 0.0, %v2697
      %v2699 = vpop.f32.mrb[0].mxu0
      %2700 = vmatprep.mubr.bf16.mxu0 0
      %2701 = vmatmul.mubr.bf16.gmra.mrb[0].mxu0 %v2640
      %v2702 = vpop.f32.mrb[0].mxu0
      %v2703 = vadd.f32 0.0, %v2702
      %v2704 = vpop.f32.mrb[0].mxu0
      %v2705 = vpop.f32.mrb[0].mxu0
      %v2706 = vadd.f32 0.0, %v2705
      %v2707 = vpop.f32.mrb[0].mxu0
      %2708 = vmatprep.mubr.bf16.mxu0 0
      %2709 = vmatmul.mubr.bf16.gmra.mrb[0].mxu0 %v2643
      %v2710 = vpop.f32.mrb[0].mxu0
      %v2711 = vadd.f32 0.0, %v2710
      %v2712 = vpop.f32.mrb[0].mxu0
      %v2713 = vpop.f32.mrb[0].mxu0
      %v2714 = vadd.f32 0.0, %v2713
      %v2715 = vpop.f32.mrb[0].mxu0
      %2716 = vmatprep.mubr.bf16.mxu0 0
      %2717 = vmatmul.mubr.bf16.gmra.mrb[0].mxu0 %v2646
      %v2718 = vpop.f32.mrb[0].mxu0
      %v2719 = vadd.f32 0.0, %v2718
      %v2720 = vpop.f32.mrb[0].mxu0
      %v2721 = vpop.f32.mrb[0].mxu0
      %v2722 = vadd.f32 0.0, %v2721
      %v2723 = vpop.f32.mrb[0].mxu0
      %2724 = vmatprep.mubr.bf16.mxu0 0
      %2725 = vmatmul.mubr.bf16.gmra.mrb[0].mxu0 %v2649
      %v2726 = vpop.f32.mrb[0].mxu0
      %v2727 = vadd.f32 0.0, %v2726
      %v2728 = vpop.f32.mrb[0].mxu0
      %v2729 = vpop.f32.mrb[0].mxu0
      %v2730 = vadd.f32 0.0, %v2729
      %v2731 = vpop.f32.mrb[0].mxu0
      %2732 = vmatprep.mubr.bf16.mxu0 0
      %2733 = vmatmul.mubr.bf16.gmra.mrb[0].mxu0 %v2652
      %v2734 = vpop.f32.mrb[0].mxu0
      %v2735 = vadd.f32 0.0, %v2734
      %v2736 = vpop.f32.mrb[0].mxu0
      %v2737 = vpop.f32.mrb[0].mxu0
      %v2738 = vadd.f32 0.0, %v2737
      %v2739 = vpop.f32.mrb[0].mxu0
      %2740 = vmatprep.mubr.bf16.mxu0 0
      %2741 = vmatmul.mubr.bf16.gmra.mrb[0].mxu0 %v2655
      %v2742 = vpop.f32.mrb[0].mxu0
      %v2743 = vadd.f32 0.0, %v2742
      %v2744 = vpop.f32.mrb[0].mxu0
      %v2745 = vpop.f32.mrb[0].mxu0
      %v2746 = vadd.f32 0.0, %v2745
      %v2747 = vpop.f32.mrb[0].mxu0
      %2748 = vmatprep.mubr.bf16.mxu0 0
      %2749 = vmatmul.mubr.bf16.gmra.mrb[0].mxu0 %v2658
      %v2750 = vpop.f32.mrb[0].mxu0
      %v2751 = vadd.f32 0.0, %v2750
      %v2752 = vpop.f32.mrb[0].mxu0
      %v2753 = vpop.f32.mrb[0].mxu0
      %v2754 = vadd.f32 0.0, %v2753
      %v2755 = vpop.f32.mrb[0].mxu0
      %2756 = vdwg.mxu0
      %v2757 = vadd.f32 %v2584, %v2695
      %v2758 = vadd.f32 %v2585, %v2698
      %v2759 = vadd.f32 %v2586, %v2703
      %v2760 = vadd.f32 %v2587, %v2706
      %v2761 = vadd.f32 %v2588, %v2711
      %v2762 = vadd.f32 %v2589, %v2714
      %v2763 = vadd.f32 %v2590, %v2719
      %v2764 = vadd.f32 %v2591, %v2722
      %v2765 = vadd.f32 %v2592, %v2727
      %v2766 = vadd.f32 %v2593, %v2730
      %v2767 = vadd.f32 %v2594, %v2735
      %v2768 = vadd.f32 %v2595, %v2738
      %v2769 = vadd.f32 %v2596, %v2743
      %v2770 = vadd.f32 %v2597, %v2746
      %v2771 = vadd.f32 %v2598, %v2751
      %v2772 = vadd.f32 %v2599, %v2754
      %v2773 = vxor.u32 %v2757, 2147483648
      %v2774 = vxor.u32 %v2758, 2147483648
      %v2775 = vxor.u32 %v2759, 2147483648
      %v2776 = vxor.u32 %v2760, 2147483648
      %v2777 = vxor.u32 %v2761, 2147483648
      %v2778 = vxor.u32 %v2762, 2147483648
      %v2779 = vxor.u32 %v2763, 2147483648
      %v2780 = vxor.u32 %v2764, 2147483648
      %v2781 = vxor.u32 %v2765, 2147483648
      %v2782 = vxor.u32 %v2766, 2147483648
      %v2783 = vxor.u32 %v2767, 2147483648
      %v2784 = vxor.u32 %v2768, 2147483648
      %v2785 = vxor.u32 %v2769, 2147483648
      %v2786 = vxor.u32 %v2770, 2147483648
      %v2787 = vxor.u32 %v2771, 2147483648
      %v2788 = vxor.u32 %v2772, 2147483648
      %v2789 = vmul.f32 %v2773, 1.442695
      %v2790 = vpow.pop %v2789
      %v2791 = vmul.f32 %v2774, 1.442695
      %v2792 = vpow.pop %v2791
      %v2793 = vmul.f32 %v2775, 1.442695
      %v2794 = vpow.pop %v2793
      %v2795 = vmul.f32 %v2776, 1.442695
      %v2796 = vpow.pop %v2795
      %v2797 = vmul.f32 %v2777, 1.442695
      %v2798 = vpow.pop %v2797
      %v2799 = vmul.f32 %v2778, 1.442695
      %v2800 = vpow.pop %v2799
      %v2801 = vmul.f32 %v2779, 1.442695
      %v2802 = vpow.pop %v2801
      %v2803 = vmul.f32 %v2780, 1.442695
      %v2804 = vpow.pop %v2803
      %v2805 = vmul.f32 %v2781, 1.442695
      %v2806 = vpow.pop %v2805
      %v2807 = vmul.f32 %v2782, 1.442695
      %v2808 = vpow.pop %v2807
      %v2809 = vmul.f32 %v2783, 1.442695
      %v2810 = vpow.pop %v2809
      %v2811 = vmul.f32 %v2784, 1.442695
      %v2812 = vpow.pop %v2811
      %v2813 = vmul.f32 %v2785, 1.442695
      %v2814 = vpow.pop %v2813
      %v2815 = vmul.f32 %v2786, 1.442695
      %v2816 = vpow.pop %v2815
      %v2817 = vmul.f32 %v2787, 1.442695
      %v2818 = vpow.pop %v2817
      %v2819 = vmul.f32 %v2788, 1.442695
      %v2820 = vpow.pop %v2819
      %v2821 = vadd.f32 %v2790, 1.0
      %v2822 = vadd.f32 %v2792, 1.0
      %v2823 = vadd.f32 %v2794, 1.0
      %v2824 = vadd.f32 %v2796, 1.0
      %v2825 = vadd.f32 %v2798, 1.0
      %v2826 = vadd.f32 %v2800, 1.0
      %v2827 = vadd.f32 %v2802, 1.0
      %v2828 = vadd.f32 %v2804, 1.0
      %v2829 = vadd.f32 %v2806, 1.0
      %v2830 = vadd.f32 %v2808, 1.0
      %v2831 = vadd.f32 %v2810, 1.0
      %v2832 = vadd.f32 %v2812, 1.0
      %v2833 = vadd.f32 %v2814, 1.0
      %v2834 = vadd.f32 %v2816, 1.0
      %v2835 = vadd.f32 %v2818, 1.0
      %v2836 = vadd.f32 %v2820, 1.0
      %v2837 = vrcp.pop %v2821
      %v2838 = vmul.f32 1.0, %v2837
      %v2839 = vrcp.pop %v2822
      %v2840 = vmul.f32 1.0, %v2839
      %v2841 = vrcp.pop %v2823
      %v2842 = vmul.f32 1.0, %v2841
      %v2843 = vrcp.pop %v2824
      %v2844 = vmul.f32 1.0, %v2843
      %v2845 = vrcp.pop %v2825
      %v2846 = vmul.f32 1.0, %v2845
      %v2847 = vrcp.pop %v2826
      %v2848 = vmul.f32 1.0, %v2847
      %v2849 = vrcp.pop %v2827
      %v2850 = vmul.f32 1.0, %v2849
      %v2851 = vrcp.pop %v2828
      %v2852 = vmul.f32 1.0, %v2851
      %v2853 = vrcp.pop %v2829
      %v2854 = vmul.f32 1.0, %v2853
      %v2855 = vrcp.pop %v2830
      %v2856 = vmul.f32 1.0, %v2855
      %v2857 = vrcp.pop %v2831
      %v2858 = vmul.f32 1.0, %v2857
      %v2859 = vrcp.pop %v2832
      %v2860 = vmul.f32 1.0, %v2859
      %v2861 = vrcp.pop %v2833
      %v2862 = vmul.f32 1.0, %v2861
      %v2863 = vrcp.pop %v2834
      %v2864 = vmul.f32 1.0, %v2863
      %v2865 = vrcp.pop %v2835
      %v2866 = vmul.f32 1.0, %v2865
      %v2867 = vrcp.pop %v2836
      %v2868 = vmul.f32 1.0, %v2867
      %v2869 = vtanh.pop %v2757
      %v2870 = vtanh.pop %v2758
      %v2871 = vtanh.pop %v2759
      %v2872 = vtanh.pop %v2760
      %v2873 = vtanh.pop %v2761
      %v2874 = vtanh.pop %v2762
      %v2875 = vtanh.pop %v2763
      %v2876 = vtanh.pop %v2764
      %v2877 = vtanh.pop %v2765
      %v2878 = vtanh.pop %v2766
      %v2879 = vtanh.pop %v2767
      %v2880 = vtanh.pop %v2768
      %v2881 = vtanh.pop %v2769
      %v2882 = vtanh.pop %v2770
      %v2883 = vtanh.pop %v2771
      %v2884 = vtanh.pop %v2772
      %v2885 = vld [vmem:[%s236] sm:$0xff]
      %v2886 = vld [vmem:[%s236 + $0x8] sm:$0xff]
      %v2887 = vld [vmem:[%s236 + $0x10] sm:$0xff]
      %v2888 = vld [vmem:[%s236 + $0x18] sm:$0xff]
      %v2889 = vld [vmem:[%s236 + $0x20] sm:$0xff]
      %v2890 = vld [vmem:[%s236 + $0x28] sm:$0xff]
      %v2891 = vld [vmem:[%s236 + $0x30] sm:$0xff]
      %v2892 = vld [vmem:[%s236 + $0x38] sm:$0xff]
      %v2893 = vld [vmem:[%s236 + $0x40] sm:$0xff]
      %v2894 = vld [vmem:[%s236 + $0x48] sm:$0xff]
      %v2895 = vld [vmem:[%s236 + $0x50] sm:$0xff]
      %v2896 = vld [vmem:[%s236 + $0x58] sm:$0xff]
      %v2897 = vld [vmem:[%s236 + $0x60] sm:$0xff]
      %v2898 = vld [vmem:[%s236 + $0x68] sm:$0xff]
      %v2899 = vld [vmem:[%s236 + $0x70] sm:$0xff]
      %v2900 = vld [vmem:[%s236 + $0x78] sm:$0xff]
      %2917 = vrot.lane.b32.xlu0 %v2885, 32
      %v2918 = vpop.permute.xlu0 %2917
      %2919 = vrot.lane.b32.xlu0 %v2886, 32
      %v2920 = vpop.permute.xlu0 %2919
      %2921 = vrot.lane.b32.xlu0 %v2887, 32
      %v2922 = vpop.permute.xlu0 %2921
      %2923 = vrot.lane.b32.xlu0 %v2888, 32
      %v2924 = vpop.permute.xlu0 %2923
      %2925 = vrot.lane.b32.xlu0 %v2889, 32
      %v2926 = vpop.permute.xlu0 %2925
      %2927 = vrot.lane.b32.xlu0 %v2890, 32
      %v2928 = vpop.permute.xlu0 %2927
      %2929 = vrot.lane.b32.xlu0 %v2891, 32
      %v2930 = vpop.permute.xlu0 %2929
      %2931 = vrot.lane.b32.xlu0 %v2892, 32
      %v2932 = vpop.permute.xlu0 %2931
      %2933 = vrot.lane.b32.xlu0 %v2893, 32
      %v2934 = vpop.permute.xlu0 %2933
      %2935 = vrot.lane.b32.xlu0 %v2894, 32
      %v2936 = vpop.permute.xlu0 %2935
      %2937 = vrot.lane.b32.xlu0 %v2895, 32
      %v2938 = vpop.permute.xlu0 %2937
      %2939 = vrot.lane.b32.xlu0 %v2896, 32
      %v2940 = vpop.permute.xlu0 %2939
      %2941 = vrot.lane.b32.xlu0 %v2897, 32
      %v2942 = vpop.permute.xlu0 %2941
      %2943 = vrot.lane.b32.xlu0 %v2898, 32
      %v2944 = vpop.permute.xlu0 %2943
      %2945 = vrot.lane.b32.xlu0 %v2899, 32
      %v2946 = vpop.permute.xlu0 %2945
      %2947 = vrot.lane.b32.xlu0 %v2900, 32
      %v2948 = vpop.permute.xlu0 %2947
      %v2965 = vmul.f32 %v2838, %v2918
      %v2966 = vmul.f32 %v2840, %v2920
      %v2967 = vmul.f32 %v2842, %v2922
      %v2968 = vmul.f32 %v2844, %v2924
      %v2969 = vmul.f32 %v2846, %v2926
      %v2970 = vmul.f32 %v2848, %v2928
      %v2971 = vmul.f32 %v2850, %v2930
      %v2972 = vmul.f32 %v2852, %v2932
      %v2973 = vmul.f32 %v2854, %v2934
      %v2974 = vmul.f32 %v2856, %v2936
      %v2975 = vmul.f32 %v2858, %v2938
      %v2976 = vmul.f32 %v2860, %v2940
      %v2977 = vmul.f32 %v2862, %v2942
      %v2978 = vmul.f32 %v2864, %v2944
      %v2979 = vmul.f32 %v2866, %v2946
      %v2980 = vmul.f32 %v2868, %v2948
      %2997 = vrot.lane.b32.xlu0 %v2869, 32
      %v2998 = vpop.permute.xlu0 %2997
      %2999 = vrot.lane.b32.xlu0 %v2870, 32
      %v3000 = vpop.permute.xlu0 %2999
      %3001 = vrot.lane.b32.xlu0 %v2871, 32
      %v3002 = vpop.permute.xlu0 %3001
      %3003 = vrot.lane.b32.xlu0 %v2872, 32
      %v3004 = vpop.permute.xlu0 %3003
      %3005 = vrot.lane.b32.xlu0 %v2873, 32
      %v3006 = vpop.permute.xlu0 %3005
      %3007 = vrot.lane.b32.xlu0 %v2874, 32
      %v3008 = vpop.permute.xlu0 %3007
      %3009 = vrot.lane.b32.xlu0 %v2875, 32
      %v3010 = vpop.permute.xlu0 %3009
      %3011 = vrot.lane.b32.xlu0 %v2876, 32
      %v3012 = vpop.permute.xlu0 %3011
      %3013 = vrot.lane.b32.xlu0 %v2877, 32
      %v3014 = vpop.permute.xlu0 %3013
      %3015 = vrot.lane.b32.xlu0 %v2878, 32
      %v3016 = vpop.permute.xlu0 %3015
      %3017 = vrot.lane.b32.xlu0 %v2879, 32
      %v3018 = vpop.permute.xlu0 %3017
      %3019 = vrot.lane.b32.xlu0 %v2880, 32
      %v3020 = vpop.permute.xlu0 %3019
      %3021 = vrot.lane.b32.xlu0 %v2881, 32
      %v3022 = vpop.permute.xlu0 %3021
      %3023 = vrot.lane.b32.xlu0 %v2882, 32
      %v3024 = vpop.permute.xlu0 %3023
      %3025 = vrot.lane.b32.xlu0 %v2883, 32
      %v3026 = vpop.permute.xlu0 %3025
      %3027 = vrot.lane.b32.xlu0 %v2884, 32
      %v3028 = vpop.permute.xlu0 %3027
      %v3045 = vmul.f32 %v2838, %v2998
      %v3046 = vmul.f32 %v2840, %v3000
      %v3047 = vmul.f32 %v2842, %v3002
      %v3048 = vmul.f32 %v2844, %v3004
      %v3049 = vmul.f32 %v2846, %v3006
      %v3050 = vmul.f32 %v2848, %v3008
      %v3051 = vmul.f32 %v2850, %v3010
      %v3052 = vmul.f32 %v2852, %v3012
      %v3053 = vmul.f32 %v2854, %v3014
      %v3054 = vmul.f32 %v2856, %v3016
      %v3055 = vmul.f32 %v2858, %v3018
      %v3056 = vmul.f32 %v2860, %v3020
      %v3057 = vmul.f32 %v2862, %v3022
      %v3058 = vmul.f32 %v2864, %v3024
      %v3059 = vmul.f32 %v2866, %v3026
      %v3060 = vmul.f32 %v2868, %v3028
      %3077 = vrot.lane.b32.xlu0 %v3045, 32
      %v3078 = vpop.permute.xlu0 %3077
      %3079 = vrot.lane.b32.xlu0 %v3046, 32
      %v3080 = vpop.permute.xlu0 %3079
      %3081 = vrot.lane.b32.xlu0 %v3047, 32
      %v3082 = vpop.permute.xlu0 %3081
      %3083 = vrot.lane.b32.xlu0 %v3048, 32
      %v3084 = vpop.permute.xlu0 %3083
      %3085 = vrot.lane.b32.xlu0 %v3049, 32
      %v3086 = vpop.permute.xlu0 %3085
      %3087 = vrot.lane.b32.xlu0 %v3050, 32
      %v3088 = vpop.permute.xlu0 %3087
      %3089 = vrot.lane.b32.xlu0 %v3051, 32
      %v3090 = vpop.permute.xlu0 %3089
      %3091 = vrot.lane.b32.xlu0 %v3052, 32
      %v3092 = vpop.permute.xlu0 %3091
      %3093 = vrot.lane.b32.xlu0 %v3053, 32
      %v3094 = vpop.permute.xlu0 %3093
      %3095 = vrot.lane.b32.xlu0 %v3054, 32
      %v3096 = vpop.permute.xlu0 %3095
      %3097 = vrot.lane.b32.xlu0 %v3055, 32
      %v3098 = vpop.permute.xlu0 %3097
      %3099 = vrot.lane.b32.xlu0 %v3056, 32
      %v3100 = vpop.permute.xlu0 %3099
      %3101 = vrot.lane.b32.xlu0 %v3057, 32
      %v3102 = vpop.permute.xlu0 %3101
      %3103 = vrot.lane.b32.xlu0 %v3058, 32
      %v3104 = vpop.permute.xlu0 %3103
      %3105 = vrot.lane.b32.xlu0 %v3059, 32
      %v3106 = vpop.permute.xlu0 %3105
      %3107 = vrot.lane.b32.xlu0 %v3060, 32
      %v3108 = vpop.permute.xlu0 %3107
      %v3125 = vadd.f32 %v2965, %v3078
      %v3126 = vadd.f32 %v2966, %v3080
      %v3127 = vadd.f32 %v2967, %v3082
      %v3128 = vadd.f32 %v2968, %v3084
      %v3129 = vadd.f32 %v2969, %v3086
      %v3130 = vadd.f32 %v2970, %v3088
      %v3131 = vadd.f32 %v2971, %v3090
      %v3132 = vadd.f32 %v2972, %v3092
      %v3133 = vadd.f32 %v2973, %v3094
      %v3134 = vadd.f32 %v2974, %v3096
      %v3135 = vadd.f32 %v2975, %v3098
      %v3136 = vadd.f32 %v2976, %v3100
      %v3137 = vadd.f32 %v2977, %v3102
      %v3138 = vadd.f32 %v2978, %v3104
      %v3139 = vadd.f32 %v2979, %v3106
      %v3140 = vadd.f32 %v2980, %v3108
      %v3141 = vtanh.pop %v3125
      %v3142 = vtanh.pop %v3126
      %v3143 = vtanh.pop %v3127
      %v3144 = vtanh.pop %v3128
      %v3145 = vtanh.pop %v3129
      %v3146 = vtanh.pop %v3130
      %v3147 = vtanh.pop %v3131
      %v3148 = vtanh.pop %v3132
      %v3149 = vtanh.pop %v3133
      %v3150 = vtanh.pop %v3134
      %v3151 = vtanh.pop %v3135
      %v3152 = vtanh.pop %v3136
      %v3153 = vtanh.pop %v3137
      %v3154 = vtanh.pop %v3138
      %v3155 = vtanh.pop %v3139
      %v3156 = vtanh.pop %v3140
      %3173 = vrot.lane.b32.xlu0 %v3141, 32
      %v3174 = vpop.permute.xlu0 %3173
      %3175 = vrot.lane.b32.xlu0 %v3142, 32
      %v3176 = vpop.permute.xlu0 %3175
      %3177 = vrot.lane.b32.xlu0 %v3143, 32
      %v3178 = vpop.permute.xlu0 %3177
      %3179 = vrot.lane.b32.xlu0 %v3144, 32
      %v3180 = vpop.permute.xlu0 %3179
      %3181 = vrot.lane.b32.xlu0 %v3145, 32
      %v3182 = vpop.permute.xlu0 %3181
      %3183 = vrot.lane.b32.xlu0 %v3146, 32
      %v3184 = vpop.permute.xlu0 %3183
      %3185 = vrot.lane.b32.xlu0 %v3147, 32
      %v3186 = vpop.permute.xlu0 %3185
      %3187 = vrot.lane.b32.xlu0 %v3148, 32
      %v3188 = vpop.permute.xlu0 %3187
      %3189 = vrot.lane.b32.xlu0 %v3149, 32
      %v3190 = vpop.permute.xlu0 %3189
      %3191 = vrot.lane.b32.xlu0 %v3150, 32
      %v3192 = vpop.permute.xlu0 %3191
      %3193 = vrot.lane.b32.xlu0 %v3151, 32
      %v3194 = vpop.permute.xlu0 %3193
      %3195 = vrot.lane.b32.xlu0 %v3152, 32
      %v3196 = vpop.permute.xlu0 %3195
      %3197 = vrot.lane.b32.xlu0 %v3153, 32
      %v3198 = vpop.permute.xlu0 %3197
      %3199 = vrot.lane.b32.xlu0 %v3154, 32
      %v3200 = vpop.permute.xlu0 %3199
      %3201 = vrot.lane.b32.xlu0 %v3155, 32
      %v3202 = vpop.permute.xlu0 %3201
      %3203 = vrot.lane.b32.xlu0 %v3156, 32
      %v3204 = vpop.permute.xlu0 %3203
      %v3221 = vmul.f32 %v2838, %v3174
      %v3222 = vmul.f32 %v2840, %v3176
      %v3223 = vmul.f32 %v2842, %v3178
      %v3224 = vmul.f32 %v2844, %v3180
      %v3225 = vmul.f32 %v2846, %v3182
      %v3226 = vmul.f32 %v2848, %v3184
      %v3227 = vmul.f32 %v2850, %v3186
      %v3228 = vmul.f32 %v2852, %v3188
      %v3229 = vmul.f32 %v2854, %v3190
      %v3230 = vmul.f32 %v2856, %v3192
      %v3231 = vmul.f32 %v2858, %v3194
      %v3232 = vmul.f32 %v2860, %v3196
      %v3233 = vmul.f32 %v2862, %v3198
      %v3234 = vmul.f32 %v2864, %v3200
      %v3235 = vmul.f32 %v2866, %v3202
      %v3236 = vmul.f32 %v2868, %v3204
      %3253 = vrot.lane.b32.xlu0 %v3125, 96
      %v3254 = vpop.permute.xlu0 %3253
      %3255 = vrot.lane.b32.xlu0 %v3126, 96
      %v3256 = vpop.permute.xlu0 %3255
      %3257 = vrot.lane.b32.xlu0 %v3127, 96
      %v3258 = vpop.permute.xlu0 %3257
      %3259 = vrot.lane.b32.xlu0 %v3128, 96
      %v3260 = vpop.permute.xlu0 %3259
      %3261 = vrot.lane.b32.xlu0 %v3129, 96
      %v3262 = vpop.permute.xlu0 %3261
      %3263 = vrot.lane.b32.xlu0 %v3130, 96
      %v3264 = vpop.permute.xlu0 %3263
      %3265 = vrot.lane.b32.xlu0 %v3131, 96
      %v3266 = vpop.permute.xlu0 %3265
      %3267 = vrot.lane.b32.xlu0 %v3132, 96
      %v3268 = vpop.permute.xlu0 %3267
      %3269 = vrot.lane.b32.xlu0 %v3133, 96
      %v3270 = vpop.permute.xlu0 %3269
      %3271 = vrot.lane.b32.xlu0 %v3134, 96
      %v3272 = vpop.permute.xlu0 %3271
      %3273 = vrot.lane.b32.xlu0 %v3135, 96
      %v3274 = vpop.permute.xlu0 %3273
      %3275 = vrot.lane.b32.xlu0 %v3136, 96
      %v3276 = vpop.permute.xlu0 %3275
      %3277 = vrot.lane.b32.xlu0 %v3137, 96
      %v3278 = vpop.permute.xlu0 %3277
      %3279 = vrot.lane.b32.xlu0 %v3138, 96
      %v3280 = vpop.permute.xlu0 %3279
      %3281 = vrot.lane.b32.xlu0 %v3139, 96
      %v3282 = vpop.permute.xlu0 %3281
      %3283 = vrot.lane.b32.xlu0 %v3140, 96
      %v3284 = vpop.permute.xlu0 %3283
      %3301 = vst.msk [vmem:[%s236] sm:$0xff] %vm873, %v3254
      %3302 = vst.msk [vmem:[%s236 + $0x8] sm:$0xff] %vm873, %v3256
      %3303 = vst.msk [vmem:[%s236 + $0x10] sm:$0xff] %vm873, %v3258
      %3304 = vst.msk [vmem:[%s236 + $0x18] sm:$0xff] %vm873, %v3260
      %3305 = vst.msk [vmem:[%s236 + $0x20] sm:$0xff] %vm873, %v3262
      %3306 = vst.msk [vmem:[%s236 + $0x28] sm:$0xff] %vm873, %v3264
      %3307 = vst.msk [vmem:[%s236 + $0x30] sm:$0xff] %vm873, %v3266
      %3308 = vst.msk [vmem:[%s236 + $0x38] sm:$0xff] %vm873, %v3268
      %3309 = vst.msk [vmem:[%s236 + $0x40] sm:$0xff] %vm873, %v3270
      %3310 = vst.msk [vmem:[%s236 + $0x48] sm:$0xff] %vm873, %v3272
      %3311 = vst.msk [vmem:[%s236 + $0x50] sm:$0xff] %vm873, %v3274
      %3312 = vst.msk [vmem:[%s236 + $0x58] sm:$0xff] %vm873, %v3276
      %3313 = vst.msk [vmem:[%s236 + $0x60] sm:$0xff] %vm873, %v3278
      %3314 = vst.msk [vmem:[%s236 + $0x68] sm:$0xff] %vm873, %v3280
      %3315 = vst.msk [vmem:[%s236 + $0x70] sm:$0xff] %vm873, %v3282
      %3316 = vst.msk [vmem:[%s236 + $0x78] sm:$0xff] %vm873, %v3284
      %3333 = vrot.lane.b32.xlu0 %v3221, 64
      %v3334 = vpop.permute.xlu0 %3333
      %3335 = vrot.lane.b32.xlu0 %v3222, 64
      %v3336 = vpop.permute.xlu0 %3335
      %3337 = vrot.lane.b32.xlu0 %v3223, 64
      %v3338 = vpop.permute.xlu0 %3337
      %3339 = vrot.lane.b32.xlu0 %v3224, 64
      %v3340 = vpop.permute.xlu0 %3339
      %3341 = vrot.lane.b32.xlu0 %v3225, 64
      %v3342 = vpop.permute.xlu0 %3341
      %3343 = vrot.lane.b32.xlu0 %v3226, 64
      %v3344 = vpop.permute.xlu0 %3343
      %3345 = vrot.lane.b32.xlu0 %v3227, 64
      %v3346 = vpop.permute.xlu0 %3345
      %3347 = vrot.lane.b32.xlu0 %v3228, 64
      %v3348 = vpop.permute.xlu0 %3347
      %3349 = vrot.lane.b32.xlu0 %v3229, 64
      %v3350 = vpop.permute.xlu0 %3349
      %3351 = vrot.lane.b32.xlu0 %v3230, 64
      %v3352 = vpop.permute.xlu0 %3351
      %3353 = vrot.lane.b32.xlu0 %v3231, 64
      %v3354 = vpop.permute.xlu0 %3353
      %3355 = vrot.lane.b32.xlu0 %v3232, 64
      %v3356 = vpop.permute.xlu0 %3355
      %3357 = vrot.lane.b32.xlu0 %v3233, 64
      %v3358 = vpop.permute.xlu0 %3357
      %3359 = vrot.lane.b32.xlu0 %v3234, 64
      %v3360 = vpop.permute.xlu0 %3359
      %3361 = vrot.lane.b32.xlu0 %v3235, 64
      %v3362 = vpop.permute.xlu0 %3361
      %3363 = vrot.lane.b32.xlu0 %v3236, 64
      %v3364 = vpop.permute.xlu0 %3363
      %3381 = vst.msk [vmem:[%s231] sm:$0xff] %vm873, %v3334
      %3382 = vst.msk [vmem:[%s231 + $0x8] sm:$0xff] %vm873, %v3336
      %3383 = vst.msk [vmem:[%s231 + $0x10] sm:$0xff] %vm873, %v3338
      %3384 = vst.msk [vmem:[%s231 + $0x18] sm:$0xff] %vm873, %v3340
      %3385 = vst.msk [vmem:[%s231 + $0x20] sm:$0xff] %vm873, %v3342
      %3386 = vst.msk [vmem:[%s231 + $0x28] sm:$0xff] %vm873, %v3344
      %3387 = vst.msk [vmem:[%s231 + $0x30] sm:$0xff] %vm873, %v3346
      %3388 = vst.msk [vmem:[%s231 + $0x38] sm:$0xff] %vm873, %v3348
      %3389 = vst.msk [vmem:[%s231 + $0x40] sm:$0xff] %vm873, %v3350
      %3390 = vst.msk [vmem:[%s231 + $0x48] sm:$0xff] %vm873, %v3352
      %3391 = vst.msk [vmem:[%s231 + $0x50] sm:$0xff] %vm873, %v3354
      %3392 = vst.msk [vmem:[%s231 + $0x58] sm:$0xff] %vm873, %v3356
      %3393 = vst.msk [vmem:[%s231 + $0x60] sm:$0xff] %vm873, %v3358
      %3394 = vst.msk [vmem:[%s231 + $0x68] sm:$0xff] %vm873, %v3360
      %3395 = vst.msk [vmem:[%s231 + $0x70] sm:$0xff] %vm873, %v3362
      %3396 = vst.msk [vmem:[%s231 + $0x78] sm:$0xff] %vm873, %v3364
      %v3397 = vld [vmem:[%s2] sm:$0xff]
      %v3398 = vld [vmem:[%s2 + $0x8] sm:$0xff]
      %v3399 = vld [vmem:[%s2 + $0x10] sm:$0xff]
      %v3400 = vld [vmem:[%s2 + $0x18] sm:$0xff]
      %v3401 = vld [vmem:[%s2 + $0x20] sm:$0xff]
      %v3402 = vld [vmem:[%s2 + $0x28] sm:$0xff]
      %v3403 = vld [vmem:[%s2 + $0x30] sm:$0xff]
      %v3404 = vld [vmem:[%s2 + $0x38] sm:$0xff]
      %v3405 = vld [vmem:[%s2 + $0x40] sm:$0xff]
      %v3406 = vld [vmem:[%s2 + $0x48] sm:$0xff]
      %v3407 = vld [vmem:[%s2 + $0x50] sm:$0xff]
      %v3408 = vld [vmem:[%s2 + $0x58] sm:$0xff]
      %v3409 = vld [vmem:[%s2 + $0x60] sm:$0xff]
      %v3410 = vld [vmem:[%s2 + $0x68] sm:$0xff]
      %v3411 = vld [vmem:[%s2 + $0x70] sm:$0xff]
      %v3412 = vld [vmem:[%s2 + $0x78] sm:$0xff]
      %3429 = vrot.lane.b32.xlu0 %v3397, 64
      %v3430 = vpop.permute.xlu0 %3429
      %3431 = vrot.lane.b32.xlu0 %v3398, 64
      %v3432 = vpop.permute.xlu0 %3431
      %3433 = vrot.lane.b32.xlu0 %v3399, 64
      %v3434 = vpop.permute.xlu0 %3433
      %3435 = vrot.lane.b32.xlu0 %v3400, 64
      %v3436 = vpop.permute.xlu0 %3435
      %3437 = vrot.lane.b32.xlu0 %v3401, 64
      %v3438 = vpop.permute.xlu0 %3437
      %3439 = vrot.lane.b32.xlu0 %v3402, 64
      %v3440 = vpop.permute.xlu0 %3439
      %3441 = vrot.lane.b32.xlu0 %v3403, 64
      %v3442 = vpop.permute.xlu0 %3441
      %3443 = vrot.lane.b32.xlu0 %v3404, 64
      %v3444 = vpop.permute.xlu0 %3443
      %3445 = vrot.lane.b32.xlu0 %v3405, 64
      %v3446 = vpop.permute.xlu0 %3445
      %3447 = vrot.lane.b32.xlu0 %v3406, 64
      %v3448 = vpop.permute.xlu0 %3447
      %3449 = vrot.lane.b32.xlu0 %v3407, 64
      %v3450 = vpop.permute.xlu0 %3449
      %3451 = vrot.lane.b32.xlu0 %v3408, 64
      %v3452 = vpop.permute.xlu0 %3451
      %3453 = vrot.lane.b32.xlu0 %v3409, 64
      %v3454 = vpop.permute.xlu0 %3453
      %3455 = vrot.lane.b32.xlu0 %v3410, 64
      %v3456 = vpop.permute.xlu0 %3455
      %3457 = vrot.lane.b32.xlu0 %v3411, 64
      %v3458 = vpop.permute.xlu0 %3457
      %3459 = vrot.lane.b32.xlu0 %v3412, 64
      %v3460 = vpop.permute.xlu0 %3459
      %v3477 = vmul.f32 %v3221, %v3430
      %v3478 = vmul.f32 %v3222, %v3432
      %v3479 = vmul.f32 %v3223, %v3434
      %v3480 = vmul.f32 %v3224, %v3436
      %v3481 = vmul.f32 %v3225, %v3438
      %v3482 = vmul.f32 %v3226, %v3440
      %v3483 = vmul.f32 %v3227, %v3442
      %v3484 = vmul.f32 %v3228, %v3444
      %v3485 = vmul.f32 %v3229, %v3446
      %v3486 = vmul.f32 %v3230, %v3448
      %v3487 = vmul.f32 %v3231, %v3450
      %v3488 = vmul.f32 %v3232, %v3452
      %v3489 = vmul.f32 %v3233, %v3454
      %v3490 = vmul.f32 %v3234, %v3456
      %v3491 = vmul.f32 %v3235, %v3458
      %v3492 = vmul.f32 %v3236, %v3460
      %3509 = vrot.lane.b32.xlu0 %v3477, 64
      %v3510 = vpop.permute.xlu0 %3509
      %3511 = vrot.lane.b32.xlu0 %v3478, 64
      %v3512 = vpop.permute.xlu0 %3511
      %3513 = vrot.lane.b32.xlu0 %v3479, 64
      %v3514 = vpop.permute.xlu0 %3513
      %3515 = vrot.lane.b32.xlu0 %v3480, 64
      %v3516 = vpop.permute.xlu0 %3515
      %3517 = vrot.lane.b32.xlu0 %v3481, 64
      %v3518 = vpop.permute.xlu0 %3517
      %3519 = vrot.lane.b32.xlu0 %v3482, 64
      %v3520 = vpop.permute.xlu0 %3519
      %3521 = vrot.lane.b32.xlu0 %v3483, 64
      %v3522 = vpop.permute.xlu0 %3521
      %3523 = vrot.lane.b32.xlu0 %v3484, 64
      %v3524 = vpop.permute.xlu0 %3523
      %3525 = vrot.lane.b32.xlu0 %v3485, 64
      %v3526 = vpop.permute.xlu0 %3525
      %3527 = vrot.lane.b32.xlu0 %v3486, 64
      %v3528 = vpop.permute.xlu0 %3527
      %3529 = vrot.lane.b32.xlu0 %v3487, 64
      %v3530 = vpop.permute.xlu0 %3529
      %3531 = vrot.lane.b32.xlu0 %v3488, 64
      %v3532 = vpop.permute.xlu0 %3531
      %3533 = vrot.lane.b32.xlu0 %v3489, 64
      %v3534 = vpop.permute.xlu0 %3533
      %3535 = vrot.lane.b32.xlu0 %v3490, 64
      %v3536 = vpop.permute.xlu0 %3535
      %3537 = vrot.lane.b32.xlu0 %v3491, 64
      %v3538 = vpop.permute.xlu0 %3537
      %3539 = vrot.lane.b32.xlu0 %v3492, 64
      %v3540 = vpop.permute.xlu0 %3539
      %3557 = vst.msk [vmem:[#allocation2 + $0x18] sm:$0xff] %vm873, %v3510
      %3558 = vst.msk [vmem:[#allocation2 + $0x20] sm:$0xff] %vm873, %v3512
      %3559 = vst.msk [vmem:[#allocation2 + $0x28] sm:$0xff] %vm873, %v3514
      %3560 = vst.msk [vmem:[#allocation2 + $0x30] sm:$0xff] %vm873, %v3516
      %3561 = vst.msk [vmem:[#allocation2 + $0x38] sm:$0xff] %vm873, %v3518
      %3562 = vst.msk [vmem:[#allocation2 + $0x40] sm:$0xff] %vm873, %v3520
      %3563 = vst.msk [vmem:[#allocation2 + $0x48] sm:$0xff] %vm873, %v3522
      %3564 = vst.msk [vmem:[#allocation2 + $0x50] sm:$0xff] %vm873, %v3524
      %3565 = vst.msk [vmem:[#allocation2 + $0x58] sm:$0xff] %vm873, %v3526
      %3566 = vst.msk [vmem:[#allocation2 + $0x60] sm:$0xff] %vm873, %v3528
      %3567 = vst.msk [vmem:[#allocation2 + $0x68] sm:$0xff] %vm873, %v3530
      %3568 = vst.msk [vmem:[#allocation2 + $0x70] sm:$0xff] %vm873, %v3532
      %3569 = vst.msk [vmem:[#allocation2 + $0x78] sm:$0xff] %vm873, %v3534
      %3570 = vst.msk [vmem:[#allocation2 + $0x80] sm:$0xff] %vm873, %v3536
      %3571 = vst.msk [vmem:[#allocation2 + $0x88] sm:$0xff] %vm873, %v3538
      %3572 = vst.msk [vmem:[#allocation2 + $0x90] sm:$0xff] %vm873, %v3540
      %v3573 = vld [vmem:[%s226 + $0x80] sm:$0xff]
      %v3574 = vld [vmem:[%s226 + $0x88] sm:$0xff]
      %v3575 = vld [vmem:[%s226 + $0x90] sm:$0xff]
      %v3576 = vld [vmem:[%s226 + $0x98] sm:$0xff]
      %v3577 = vld [vmem:[%s226 + $0xa0] sm:$0xff]
      %v3578 = vld [vmem:[%s226 + $0xa8] sm:$0xff]
      %v3579 = vld [vmem:[%s226 + $0xb0] sm:$0xff]
      %v3580 = vld [vmem:[%s226 + $0xb8] sm:$0xff]
      %v3581 = vld [vmem:[%s226 + $0xc0] sm:$0xff]
      %v3582 = vld [vmem:[%s226 + $0xc8] sm:$0xff]
      %v3583 = vld [vmem:[%s226 + $0xd0] sm:$0xff]
      %v3584 = vld [vmem:[%s226 + $0xd8] sm:$0xff]
      %v3585 = vld [vmem:[%s226 + $0xe0] sm:$0xff]
      %v3586 = vld [vmem:[%s226 + $0xe8] sm:$0xff]
      %v3587 = vld [vmem:[%s226 + $0xf0] sm:$0xff]
      %v3588 = vld [vmem:[%s226 + $0xf8] sm:$0xff]
      %v3590 = vsel %vm2289, %v979, 0
      %v3593 = vsel %vm2289, %v980, 0
      %v3596 = vsel %vm2289, %v981, 0
      %v3599 = vsel %vm2289, %v982, 0
      %v3602 = vsel %vm2289, %v983, 0
      %v3605 = vsel %vm2289, %v984, 0
      %v3608 = vsel %vm2289, %v985, 0
      %v3611 = vsel %vm2289, %v986, 0
      %3613 = vmatprep.subr.bf16.mxu0 0
      %3614 = vmatpush1.bf16.msra.mxu0 %v2277
      %3615 = vmatprep.subr.bf16.mxu0 0
      %3616 = vmatpush1.bf16.msra.mxu0 %v2278
      %3617 = vmatprep.subr.bf16.mxu0 0
      %3618 = vmatpush1.bf16.msra.mxu0 %v2279
      %3619 = vmatprep.subr.bf16.mxu0 0
      %3620 = vmatpush1.bf16.msra.mxu0 %v2280
      %3621 = vmatprep.subr.bf16.mxu0 0
      %3622 = vmatpush1.bf16.msra.mxu0 %v2281
      %3623 = vmatprep.subr.bf16.mxu0 0
      %3624 = vmatpush1.bf16.msra.mxu0 %v2282
      %3625 = vmatprep.subr.bf16.mxu0 0
      %3626 = vmatpush1.bf16.msra.mxu0 0
      %3627 = vmatprep.subr.bf16.mxu0 0
      %3628 = vmatpush1.bf16.msra.mxu0 0
      %3629 = vmatprep.subr.bf16.mxu0 0
      %3630 = vmatpush1.bf16.msra.mxu0 0
      %3631 = vmatprep.subr.bf16.mxu0 0
      %3632 = vmatpush1.bf16.msra.mxu0 0
      %3633 = vmatprep.subr.bf16.mxu0 0
      %3634 = vmatpush1.bf16.msra.mxu0 0
      %3635 = vmatprep.subr.bf16.mxu0 0
      %3636 = vmatpush1.bf16.msra.mxu0 0
      %3637 = vmatprep.subr.bf16.mxu0 0
      %3638 = vmatpush1.bf16.msra.mxu0 0
      %3639 = vmatprep.subr.bf16.mxu0 0
      %3640 = vmatpush1.bf16.msra.mxu0 0
      %3641 = vmatprep.subr.bf16.mxu0 0
      %3642 = vmatpush1.bf16.msra.mxu0 0
      %3643 = vmatprep.subr.bf16.mxu0 0
      %3644 = vmatpush1.bf16.msra.mxu0 0
      %3645 = vmatprep.mubr.bf16.mxu0 0
      %3646 = vmatmul.mubr.bf16.gmra.mrb[0].mxu0 %v3590
      %v3647 = vpop.f32.mrb[0].mxu0
      %v3648 = vadd.f32 0.0, %v3647
      %v3649 = vpop.f32.mrb[0].mxu0
      %v3650 = vpop.f32.mrb[0].mxu0
      %v3651 = vadd.f32 0.0, %v3650
      %v3652 = vpop.f32.mrb[0].mxu0
      %3653 = vmatprep.mubr.bf16.mxu0 0
      %3654 = vmatmul.mubr.bf16.gmra.mrb[0].mxu0 %v3593
      %v3655 = vpop.f32.mrb[0].mxu0
      %v3656 = vadd.f32 0.0, %v3655
      %v3657 = vpop.f32.mrb[0].mxu0
      %v3658 = vpop.f32.mrb[0].mxu0
      %v3659 = vadd.f32 0.0, %v3658
      %v3660 = vpop.f32.mrb[0].mxu0
      %3661 = vmatprep.mubr.bf16.mxu0 0
      %3662 = vmatmul.mubr.bf16.gmra.mrb[0].mxu0 %v3596
      %v3663 = vpop.f32.mrb[0].mxu0
      %v3664 = vadd.f32 0.0, %v3663
      %v3665 = vpop.f32.mrb[0].mxu0
      %v3666 = vpop.f32.mrb[0].mxu0
      %v3667 = vadd.f32 0.0, %v3666
      %v3668 = vpop.f32.mrb[0].mxu0
      %3669 = vmatprep.mubr.bf16.mxu0 0
      %3670 = vmatmul.mubr.bf16.gmra.mrb[0].mxu0 %v3599
      %v3671 = vpop.f32.mrb[0].mxu0
      %v3672 = vadd.f32 0.0, %v3671
      %v3673 = vpop.f32.mrb[0].mxu0
      %v3674 = vpop.f32.mrb[0].mxu0
      %v3675 = vadd.f32 0.0, %v3674
      %v3676 = vpop.f32.mrb[0].mxu0
      %3677 = vmatprep.mubr.bf16.mxu0 0
      %3678 = vmatmul.mubr.bf16.gmra.mrb[0].mxu0 %v3602
      %v3679 = vpop.f32.mrb[0].mxu0
      %v3680 = vadd.f32 0.0, %v3679
      %v3681 = vpop.f32.mrb[0].mxu0
      %v3682 = vpop.f32.mrb[0].mxu0
      %v3683 = vadd.f32 0.0, %v3682
      %v3684 = vpop.f32.mrb[0].mxu0
      %3685 = vmatprep.mubr.bf16.mxu0 0
      %3686 = vmatmul.mubr.bf16.gmra.mrb[0].mxu0 %v3605
      %v3687 = vpop.f32.mrb[0].mxu0
      %v3688 = vadd.f32 0.0, %v3687
      %v3689 = vpop.f32.mrb[0].mxu0
      %v3690 = vpop.f32.mrb[0].mxu0
      %v3691 = vadd.f32 0.0, %v3690
      %v3692 = vpop.f32.mrb[0].mxu0
      %3693 = vmatprep.mubr.bf16.mxu0 0
      %3694 = vmatmul.mubr.bf16.gmra.mrb[0].mxu0 %v3608
      %v3695 = vpop.f32.mrb[0].mxu0
      %v3696 = vadd.f32 0.0, %v3695
      %v3697 = vpop.f32.mrb[0].mxu0
      %v3698 = vpop.f32.mrb[0].mxu0
      %v3699 = vadd.f32 0.0, %v3698
      %v3700 = vpop.f32.mrb[0].mxu0
      %3701 = vmatprep.mubr.bf16.mxu0 0
      %3702 = vmatmul.mubr.bf16.gmra.mrb[0].mxu0 %v3611
      %v3703 = vpop.f32.mrb[0].mxu0
      %v3704 = vadd.f32 0.0, %v3703
      %v3705 = vpop.f32.mrb[0].mxu0
      %v3706 = vpop.f32.mrb[0].mxu0
      %v3707 = vadd.f32 0.0, %v3706
      %v3708 = vpop.f32.mrb[0].mxu0
      %3709 = vdwg.mxu0
      %v3710 = vadd.f32 %v3573, %v3648
      %v3711 = vadd.f32 %v3574, %v3651
      %v3712 = vadd.f32 %v3575, %v3656
      %v3713 = vadd.f32 %v3576, %v3659
      %v3714 = vadd.f32 %v3577, %v3664
      %v3715 = vadd.f32 %v3578, %v3667
      %v3716 = vadd.f32 %v3579, %v3672
      %v3717 = vadd.f32 %v3580, %v3675
      %v3718 = vadd.f32 %v3581, %v3680
      %v3719 = vadd.f32 %v3582, %v3683
      %v3720 = vadd.f32 %v3583, %v3688
      %v3721 = vadd.f32 %v3584, %v3691
      %v3722 = vadd.f32 %v3585, %v3696
      %v3723 = vadd.f32 %v3586, %v3699
      %v3724 = vadd.f32 %v3587, %v3704
      %v3725 = vadd.f32 %v3588, %v3707
      %v3727 = vsel %vm2289, %v1581, 0
      %v3730 = vsel %vm2289, %v1582, 0
      %v3733 = vsel %vm2289, %v1583, 0
      %v3736 = vsel %vm2289, %v1584, 0
      %v3739 = vsel %vm2289, %v1585, 0
      %v3742 = vsel %vm2289, %v1586, 0
      %v3745 = vsel %vm2289, %v1587, 0
      %v3748 = vsel %vm2289, %v1588, 0
      %3750 = vmatprep.subr.bf16.mxu0 0
      %3751 = vmatpush1.bf16.msra.mxu0 %v2451
      %3752 = vmatprep.subr.bf16.mxu0 0
      %3753 = vmatpush1.bf16.msra.mxu0 %v2452
      %3754 = vmatprep.subr.bf16.mxu0 0
      %3755 = vmatpush1.bf16.msra.mxu0 %v2453
      %3756 = vmatprep.subr.bf16.mxu0 0
      %3757 = vmatpush1.bf16.msra.mxu0 %v2454
      %3758 = vmatprep.subr.bf16.mxu0 0
      %3759 = vmatpush1.bf16.msra.mxu0 %v2455
      %3760 = vmatprep.subr.bf16.mxu0 0
      %3761 = vmatpush1.bf16.msra.mxu0 %v2456
      %3762 = vmatprep.subr.bf16.mxu0 0
      %3763 = vmatpush1.bf16.msra.mxu0 0
      %3764 = vmatprep.subr.bf16.mxu0 0
      %3765 = vmatpush1.bf16.msra.mxu0 0
      %3766 = vmatprep.subr.bf16.mxu0 0
      %3767 = vmatpush1.bf16.msra.mxu0 0
      %3768 = vmatprep.subr.bf16.mxu0 0
      %3769 = vmatpush1.bf16.msra.mxu0 0
      %3770 = vmatprep.subr.bf16.mxu0 0
      %3771 = vmatpush1.bf16.msra.mxu0 0
      %3772 = vmatprep.subr.bf16.mxu0 0
      %3773 = vmatpush1.bf16.msra.mxu0 0
      %3774 = vmatprep.subr.bf16.mxu0 0
      %3775 = vmatpush1.bf16.msra.mxu0 0
      %3776 = vmatprep.subr.bf16.mxu0 0
      %3777 = vmatpush1.bf16.msra.mxu0 0
      %3778 = vmatprep.subr.bf16.mxu0 0
      %3779 = vmatpush1.bf16.msra.mxu0 0
      %3780 = vmatprep.subr.bf16.mxu0 0
      %3781 = vmatpush1.bf16.msra.mxu0 0
      %3782 = vmatprep.mubr.bf16.mxu0 0
      %3783 = vmatmul.mubr.bf16.gmra.mrb[0].mxu0 %v3727
      %v3784 = vpop.f32.mrb[0].mxu0
      %v3785 = vadd.f32 0.0, %v3784
      %v3786 = vpop.f32.mrb[0].mxu0
      %v3787 = vpop.f32.mrb[0].mxu0
      %v3788 = vadd.f32 0.0, %v3787
      %v3789 = vpop.f32.mrb[0].mxu0
      %3790 = vmatprep.mubr.bf16.mxu0 0
      %3791 = vmatmul.mubr.bf16.gmra.mrb[0].mxu0 %v3730
      %v3792 = vpop.f32.mrb[0].mxu0
      %v3793 = vadd.f32 0.0, %v3792
      %v3794 = vpop.f32.mrb[0].mxu0
      %v3795 = vpop.f32.mrb[0].mxu0
      %v3796 = vadd.f32 0.0, %v3795
      %v3797 = vpop.f32.mrb[0].mxu0
      %3798 = vmatprep.mubr.bf16.mxu0 0
      %3799 = vmatmul.mubr.bf16.gmra.mrb[0].mxu0 %v3733
      %v3800 = vpop.f32.mrb[0].mxu0
      %v3801 = vadd.f32 0.0, %v3800
      %v3802 = vpop.f32.mrb[0].mxu0
      %v3803 = vpop.f32.mrb[0].mxu0
      %v3804 = vadd.f32 0.0, %v3803
      %v3805 = vpop.f32.mrb[0].mxu0
      %3806 = vmatprep.mubr.bf16.mxu0 0
      %3807 = vmatmul.mubr.bf16.gmra.mrb[0].mxu0 %v3736
      %v3808 = vpop.f32.mrb[0].mxu0
      %v3809 = vadd.f32 0.0, %v3808
      %v3810 = vpop.f32.mrb[0].mxu0
      %v3811 = vpop.f32.mrb[0].mxu0
      %v3812 = vadd.f32 0.0, %v3811
      %v3813 = vpop.f32.mrb[0].mxu0
      %3814 = vmatprep.mubr.bf16.mxu0 0
      %3815 = vmatmul.mubr.bf16.gmra.mrb[0].mxu0 %v3739
      %v3816 = vpop.f32.mrb[0].mxu0
      %v3817 = vadd.f32 0.0, %v3816
      %v3818 = vpop.f32.mrb[0].mxu0
      %v3819 = vpop.f32.mrb[0].mxu0
      %v3820 = vadd.f32 0.0, %v3819
      %v3821 = vpop.f32.mrb[0].mxu0
      %3822 = vmatprep.mubr.bf16.mxu0 0
      %3823 = vmatmul.mubr.bf16.gmra.mrb[0].mxu0 %v3742
      %v3824 = vpop.f32.mrb[0].mxu0
      %v3825 = vadd.f32 0.0, %v3824
      %v3826 = vpop.f32.mrb[0].mxu0
      %v3827 = vpop.f32.mrb[0].mxu0
      %v3828 = vadd.f32 0.0, %v3827
      %v3829 = vpop.f32.mrb[0].mxu0
      %3830 = vmatprep.mubr.bf16.mxu0 0
      %3831 = vmatmul.mubr.bf16.gmra.mrb[0].mxu0 %v3745
      %v3832 = vpop.f32.mrb[0].mxu0
      %v3833 = vadd.f32 0.0, %v3832
      %v3834 = vpop.f32.mrb[0].mxu0
      %v3835 = vpop.f32.mrb[0].mxu0
      %v3836 = vadd.f32 0.0, %v3835
      %v3837 = vpop.f32.mrb[0].mxu0
      %3838 = vmatprep.mubr.bf16.mxu0 0
      %3839 = vmatmul.mubr.bf16.gmra.mrb[0].mxu0 %v3748
      %v3840 = vpop.f32.mrb[0].mxu0
      %v3841 = vadd.f32 0.0, %v3840
      %v3842 = vpop.f32.mrb[0].mxu0
      %v3843 = vpop.f32.mrb[0].mxu0
      %v3844 = vadd.f32 0.0, %v3843
      %v3845 = vpop.f32.mrb[0].mxu0
      %3846 = vdwg.mxu0
      %v3847 = vadd.f32 %v3710, %v3785
      %v3848 = vadd.f32 %v3711, %v3788
      %v3849 = vadd.f32 %v3712, %v3793
      %v3850 = vadd.f32 %v3713, %v3796
      %v3851 = vadd.f32 %v3714, %v3801
      %v3852 = vadd.f32 %v3715, %v3804
      %v3853 = vadd.f32 %v3716, %v3809
      %v3854 = vadd.f32 %v3717, %v3812
      %v3855 = vadd.f32 %v3718, %v3817
      %v3856 = vadd.f32 %v3719, %v3820
      %v3857 = vadd.f32 %v3720, %v3825
      %v3858 = vadd.f32 %v3721, %v3828
      %v3859 = vadd.f32 %v3722, %v3833
      %v3860 = vadd.f32 %v3723, %v3836
      %v3861 = vadd.f32 %v3724, %v3841
      %v3862 = vadd.f32 %v3725, %v3844
      %v3864 = vsel %vm2289, %v2183, 0
      %v3867 = vsel %vm2289, %v2184, 0
      %v3870 = vsel %vm2289, %v2185, 0
      %v3873 = vsel %vm2289, %v2186, 0
      %v3876 = vsel %vm2289, %v2187, 0
      %v3879 = vsel %vm2289, %v2188, 0
      %v3882 = vsel %vm2289, %v2189, 0
      %v3885 = vsel %vm2289, %v2190, 0
      %3887 = vmatprep.subr.bf16.mxu0 0
      %3888 = vmatpush1.bf16.msra.mxu0 %v2624
      %3889 = vmatprep.subr.bf16.mxu0 0
      %3890 = vmatpush1.bf16.msra.mxu0 %v2625
      %3891 = vmatprep.subr.bf16.mxu0 0
      %3892 = vmatpush1.bf16.msra.mxu0 %v2626
      %3893 = vmatprep.subr.bf16.mxu0 0
      %3894 = vmatpush1.bf16.msra.mxu0 %v2627
      %3895 = vmatprep.subr.bf16.mxu0 0
      %3896 = vmatpush1.bf16.msra.mxu0 %v2628
      %3897 = vmatprep.subr.bf16.mxu0 0
      %3898 = vmatpush1.bf16.msra.mxu0 %v2629
      %3899 = vmatprep.subr.bf16.mxu0 0
      %3900 = vmatpush1.bf16.msra.mxu0 0
      %3901 = vmatprep.subr.bf16.mxu0 0
      %3902 = vmatpush1.bf16.msra.mxu0 0
      %3903 = vmatprep.subr.bf16.mxu0 0
      %3904 = vmatpush1.bf16.msra.mxu0 0
      %3905 = vmatprep.subr.bf16.mxu0 0
      %3906 = vmatpush1.bf16.msra.mxu0 0
      %3907 = vmatprep.subr.bf16.mxu0 0
      %3908 = vmatpush1.bf16.msra.mxu0 0
      %3909 = vmatprep.subr.bf16.mxu0 0
      %3910 = vmatpush1.bf16.msra.mxu0 0
      %3911 = vmatprep.subr.bf16.mxu0 0
      %3912 = vmatpush1.bf16.msra.mxu0 0
      %3913 = vmatprep.subr.bf16.mxu0 0
      %3914 = vmatpush1.bf16.msra.mxu0 0
      %3915 = vmatprep.subr.bf16.mxu0 0
      %3916 = vmatpush1.bf16.msra.mxu0 0
      %3917 = vmatprep.subr.bf16.mxu0 0
      %3918 = vmatpush1.bf16.msra.mxu0 0
      %3919 = vmatprep.mubr.bf16.mxu0 0
      %3920 = vmatmul.mubr.bf16.gmra.mrb[0].mxu0 %v3864
      %v3921 = vpop.f32.mrb[0].mxu0
      %v3922 = vadd.f32 0.0, %v3921
      %v3923 = vpop.f32.mrb[0].mxu0
      %v3924 = vpop.f32.mrb[0].mxu0
      %v3925 = vadd.f32 0.0, %v3924
      %v3926 = vpop.f32.mrb[0].mxu0
      %3927 = vmatprep.mubr.bf16.mxu0 0
      %3928 = vmatmul.mubr.bf16.gmra.mrb[0].mxu0 %v3867
      %v3929 = vpop.f32.mrb[0].mxu0
      %v3930 = vadd.f32 0.0, %v3929
      %v3931 = vpop.f32.mrb[0].mxu0
      %v3932 = vpop.f32.mrb[0].mxu0
      %v3933 = vadd.f32 0.0, %v3932
      %v3934 = vpop.f32.mrb[0].mxu0
      %3935 = vmatprep.mubr.bf16.mxu0 0
      %3936 = vmatmul.mubr.bf16.gmra.mrb[0].mxu0 %v3870
      %v3937 = vpop.f32.mrb[0].mxu0
      %v3938 = vadd.f32 0.0, %v3937
      %v3939 = vpop.f32.mrb[0].mxu0
      %v3940 = vpop.f32.mrb[0].mxu0
      %v3941 = vadd.f32 0.0, %v3940
      %v3942 = vpop.f32.mrb[0].mxu0
      %3943 = vmatprep.mubr.bf16.mxu0 0
      %3944 = vmatmul.mubr.bf16.gmra.mrb[0].mxu0 %v3873
      %v3945 = vpop.f32.mrb[0].mxu0
      %v3946 = vadd.f32 0.0, %v3945
      %v3947 = vpop.f32.mrb[0].mxu0
      %v3948 = vpop.f32.mrb[0].mxu0
      %v3949 = vadd.f32 0.0, %v3948
      %v3950 = vpop.f32.mrb[0].mxu0
      %3951 = vmatprep.mubr.bf16.mxu0 0
      %3952 = vmatmul.mubr.bf16.gmra.mrb[0].mxu0 %v3876
      %v3953 = vpop.f32.mrb[0].mxu0
      %v3954 = vadd.f32 0.0, %v3953
      %v3955 = vpop.f32.mrb[0].mxu0
      %v3956 = vpop.f32.mrb[0].mxu0
      %v3957 = vadd.f32 0.0, %v3956
      %v3958 = vpop.f32.mrb[0].mxu0
      %3959 = vmatprep.mubr.bf16.mxu0 0
      %3960 = vmatmul.mubr.bf16.gmra.mrb[0].mxu0 %v3879
      %v3961 = vpop.f32.mrb[0].mxu0
      %v3962 = vadd.f32 0.0, %v3961
      %v3963 = vpop.f32.mrb[0].mxu0
      %v3964 = vpop.f32.mrb[0].mxu0
      %v3965 = vadd.f32 0.0, %v3964
      %v3966 = vpop.f32.mrb[0].mxu0
      %3967 = vmatprep.mubr.bf16.mxu0 0
      %3968 = vmatmul.mubr.bf16.gmra.mrb[0].mxu0 %v3882
      %v3969 = vpop.f32.mrb[0].mxu0
      %v3970 = vadd.f32 0.0, %v3969
      %v3971 = vpop.f32.mrb[0].mxu0
      %v3972 = vpop.f32.mrb[0].mxu0
      %v3973 = vadd.f32 0.0, %v3972
      %v3974 = vpop.f32.mrb[0].mxu0
      %3975 = vmatprep.mubr.bf16.mxu0 0
      %3976 = vmatmul.mubr.bf16.gmra.mrb[0].mxu0 %v3885
      %v3977 = vpop.f32.mrb[0].mxu0
      %v3978 = vadd.f32 0.0, %v3977
      %v3979 = vpop.f32.mrb[0].mxu0
      %v3980 = vpop.f32.mrb[0].mxu0
      %v3981 = vadd.f32 0.0, %v3980
      %v3982 = vpop.f32.mrb[0].mxu0
      %3983 = vdwg.mxu0
      %v3984 = vadd.f32 %v3847, %v3922
      %v3985 = vadd.f32 %v3848, %v3925
      %v3986 = vadd.f32 %v3849, %v3930
      %v3987 = vadd.f32 %v3850, %v3933
      %v3988 = vadd.f32 %v3851, %v3938
      %v3989 = vadd.f32 %v3852, %v3941
      %v3990 = vadd.f32 %v3853, %v3946
      %v3991 = vadd.f32 %v3854, %v3949
      %v3992 = vadd.f32 %v3855, %v3954
      %v3993 = vadd.f32 %v3856, %v3957
      %v3994 = vadd.f32 %v3857, %v3962
      %v3995 = vadd.f32 %v3858, %v3965
      %v3996 = vadd.f32 %v3859, %v3970
      %v3997 = vadd.f32 %v3860, %v3973
      %v3998 = vadd.f32 %v3861, %v3978
      %v3999 = vadd.f32 %v3862, %v3981
      %v4000 = vxor.u32 %v3984, 2147483648
      %v4001 = vxor.u32 %v3985, 2147483648
      %v4002 = vxor.u32 %v3986, 2147483648
      %v4003 = vxor.u32 %v3987, 2147483648
      %v4004 = vxor.u32 %v3988, 2147483648
      %v4005 = vxor.u32 %v3989, 2147483648
      %v4006 = vxor.u32 %v3990, 2147483648
      %v4007 = vxor.u32 %v3991, 2147483648
      %v4008 = vxor.u32 %v3992, 2147483648
      %v4009 = vxor.u32 %v3993, 2147483648
      %v4010 = vxor.u32 %v3994, 2147483648
      %v4011 = vxor.u32 %v3995, 2147483648
      %v4012 = vxor.u32 %v3996, 2147483648
      %v4013 = vxor.u32 %v3997, 2147483648
      %v4014 = vxor.u32 %v3998, 2147483648
      %v4015 = vxor.u32 %v3999, 2147483648
      %v4016 = vmul.f32 %v4000, 1.442695
      %v4017 = vpow.pop %v4016
      %v4018 = vmul.f32 %v4001, 1.442695
      %v4019 = vpow.pop %v4018
      %v4020 = vmul.f32 %v4002, 1.442695
      %v4021 = vpow.pop %v4020
      %v4022 = vmul.f32 %v4003, 1.442695
      %v4023 = vpow.pop %v4022
      %v4024 = vmul.f32 %v4004, 1.442695
      %v4025 = vpow.pop %v4024
      %v4026 = vmul.f32 %v4005, 1.442695
      %v4027 = vpow.pop %v4026
      %v4028 = vmul.f32 %v4006, 1.442695
      %v4029 = vpow.pop %v4028
      %v4030 = vmul.f32 %v4007, 1.442695
      %v4031 = vpow.pop %v4030
      %v4032 = vmul.f32 %v4008, 1.442695
      %v4033 = vpow.pop %v4032
      %v4034 = vmul.f32 %v4009, 1.442695
      %v4035 = vpow.pop %v4034
      %v4036 = vmul.f32 %v4010, 1.442695
      %v4037 = vpow.pop %v4036
      %v4038 = vmul.f32 %v4011, 1.442695
      %v4039 = vpow.pop %v4038
      %v4040 = vmul.f32 %v4012, 1.442695
      %v4041 = vpow.pop %v4040
      %v4042 = vmul.f32 %v4013, 1.442695
      %v4043 = vpow.pop %v4042
      %v4044 = vmul.f32 %v4014, 1.442695
      %v4045 = vpow.pop %v4044
      %v4046 = vmul.f32 %v4015, 1.442695
      %v4047 = vpow.pop %v4046
      %v4048 = vadd.f32 %v4017, 1.0
      %v4049 = vadd.f32 %v4019, 1.0
      %v4050 = vadd.f32 %v4021, 1.0
      %v4051 = vadd.f32 %v4023, 1.0
      %v4052 = vadd.f32 %v4025, 1.0
      %v4053 = vadd.f32 %v4027, 1.0
      %v4054 = vadd.f32 %v4029, 1.0
      %v4055 = vadd.f32 %v4031, 1.0
      %v4056 = vadd.f32 %v4033, 1.0
      %v4057 = vadd.f32 %v4035, 1.0
      %v4058 = vadd.f32 %v4037, 1.0
      %v4059 = vadd.f32 %v4039, 1.0
      %v4060 = vadd.f32 %v4041, 1.0
      %v4061 = vadd.f32 %v4043, 1.0
      %v4062 = vadd.f32 %v4045, 1.0
      %v4063 = vadd.f32 %v4047, 1.0
      %v4064 = vrcp.pop %v4048
      %v4065 = vmul.f32 1.0, %v4064
      %v4066 = vrcp.pop %v4049
      %v4067 = vmul.f32 1.0, %v4066
      %v4068 = vrcp.pop %v4050
      %v4069 = vmul.f32 1.0, %v4068
      %v4070 = vrcp.pop %v4051
      %v4071 = vmul.f32 1.0, %v4070
      %v4072 = vrcp.pop %v4052
      %v4073 = vmul.f32 1.0, %v4072
      %v4074 = vrcp.pop %v4053
      %v4075 = vmul.f32 1.0, %v4074
      %v4076 = vrcp.pop %v4054
      %v4077 = vmul.f32 1.0, %v4076
      %v4078 = vrcp.pop %v4055
      %v4079 = vmul.f32 1.0, %v4078
      %v4080 = vrcp.pop %v4056
      %v4081 = vmul.f32 1.0, %v4080
      %v4082 = vrcp.pop %v4057
      %v4083 = vmul.f32 1.0, %v4082
      %v4084 = vrcp.pop %v4058
      %v4085 = vmul.f32 1.0, %v4084
      %v4086 = vrcp.pop %v4059
      %v4087 = vmul.f32 1.0, %v4086
      %v4088 = vrcp.pop %v4060
      %v4089 = vmul.f32 1.0, %v4088
      %v4090 = vrcp.pop %v4061
      %v4091 = vmul.f32 1.0, %v4090
      %v4092 = vrcp.pop %v4062
      %v4093 = vmul.f32 1.0, %v4092
      %v4094 = vrcp.pop %v4063
      %v4095 = vmul.f32 1.0, %v4094
      %v4096 = vtanh.pop %v3984
      %v4097 = vtanh.pop %v3985
      %v4098 = vtanh.pop %v3986
      %v4099 = vtanh.pop %v3987
      %v4100 = vtanh.pop %v3988
      %v4101 = vtanh.pop %v3989
      %v4102 = vtanh.pop %v3990
      %v4103 = vtanh.pop %v3991
      %v4104 = vtanh.pop %v3992
      %v4105 = vtanh.pop %v3993
      %v4106 = vtanh.pop %v3994
      %v4107 = vtanh.pop %v3995
      %v4108 = vtanh.pop %v3996
      %v4109 = vtanh.pop %v3997
      %v4110 = vtanh.pop %v3998
      %v4111 = vtanh.pop %v3999
      %v4112 = vld [vmem:[%s236 + $0x80] sm:$0xff]
      %v4113 = vld [vmem:[%s236 + $0x88] sm:$0xff]
      %v4114 = vld [vmem:[%s236 + $0x90] sm:$0xff]
      %v4115 = vld [vmem:[%s236 + $0x98] sm:$0xff]
      %v4116 = vld [vmem:[%s236 + $0xa0] sm:$0xff]
      %v4117 = vld [vmem:[%s236 + $0xa8] sm:$0xff]
      %v4118 = vld [vmem:[%s236 + $0xb0] sm:$0xff]
      %v4119 = vld [vmem:[%s236 + $0xb8] sm:$0xff]
      %v4120 = vld [vmem:[%s236 + $0xc0] sm:$0xff]
      %v4121 = vld [vmem:[%s236 + $0xc8] sm:$0xff]
      %v4122 = vld [vmem:[%s236 + $0xd0] sm:$0xff]
      %v4123 = vld [vmem:[%s236 + $0xd8] sm:$0xff]
      %v4124 = vld [vmem:[%s236 + $0xe0] sm:$0xff]
      %v4125 = vld [vmem:[%s236 + $0xe8] sm:$0xff]
      %v4126 = vld [vmem:[%s236 + $0xf0] sm:$0xff]
      %v4127 = vld [vmem:[%s236 + $0xf8] sm:$0xff]
      %4144 = vrot.lane.b32.xlu0 %v4112, 32
      %v4145 = vpop.permute.xlu0 %4144
      %4146 = vrot.lane.b32.xlu0 %v4113, 32
      %v4147 = vpop.permute.xlu0 %4146
      %4148 = vrot.lane.b32.xlu0 %v4114, 32
      %v4149 = vpop.permute.xlu0 %4148
      %4150 = vrot.lane.b32.xlu0 %v4115, 32
      %v4151 = vpop.permute.xlu0 %4150
      %4152 = vrot.lane.b32.xlu0 %v4116, 32
      %v4153 = vpop.permute.xlu0 %4152
      %4154 = vrot.lane.b32.xlu0 %v4117, 32
      %v4155 = vpop.permute.xlu0 %4154
      %4156 = vrot.lane.b32.xlu0 %v4118, 32
      %v4157 = vpop.permute.xlu0 %4156
      %4158 = vrot.lane.b32.xlu0 %v4119, 32
      %v4159 = vpop.permute.xlu0 %4158
      %4160 = vrot.lane.b32.xlu0 %v4120, 32
      %v4161 = vpop.permute.xlu0 %4160
      %4162 = vrot.lane.b32.xlu0 %v4121, 32
      %v4163 = vpop.permute.xlu0 %4162
      %4164 = vrot.lane.b32.xlu0 %v4122, 32
      %v4165 = vpop.permute.xlu0 %4164
      %4166 = vrot.lane.b32.xlu0 %v4123, 32
      %v4167 = vpop.permute.xlu0 %4166
      %4168 = vrot.lane.b32.xlu0 %v4124, 32
      %v4169 = vpop.permute.xlu0 %4168
      %4170 = vrot.lane.b32.xlu0 %v4125, 32
      %v4171 = vpop.permute.xlu0 %4170
      %4172 = vrot.lane.b32.xlu0 %v4126, 32
      %v4173 = vpop.permute.xlu0 %4172
      %4174 = vrot.lane.b32.xlu0 %v4127, 32
      %v4175 = vpop.permute.xlu0 %4174
      %v4192 = vmul.f32 %v4065, %v4145
      %v4193 = vmul.f32 %v4067, %v4147
      %v4194 = vmul.f32 %v4069, %v4149
      %v4195 = vmul.f32 %v4071, %v4151
      %v4196 = vmul.f32 %v4073, %v4153
      %v4197 = vmul.f32 %v4075, %v4155
      %v4198 = vmul.f32 %v4077, %v4157
      %v4199 = vmul.f32 %v4079, %v4159
      %v4200 = vmul.f32 %v4081, %v4161
      %v4201 = vmul.f32 %v4083, %v4163
      %v4202 = vmul.f32 %v4085, %v4165
      %v4203 = vmul.f32 %v4087, %v4167
      %v4204 = vmul.f32 %v4089, %v4169
      %v4205 = vmul.f32 %v4091, %v4171
      %v4206 = vmul.f32 %v4093, %v4173
      %v4207 = vmul.f32 %v4095, %v4175
      %4224 = vrot.lane.b32.xlu0 %v4096, 32
      %v4225 = vpop.permute.xlu0 %4224
      %4226 = vrot.lane.b32.xlu0 %v4097, 32
      %v4227 = vpop.permute.xlu0 %4226
      %4228 = vrot.lane.b32.xlu0 %v4098, 32
      %v4229 = vpop.permute.xlu0 %4228
      %4230 = vrot.lane.b32.xlu0 %v4099, 32
      %v4231 = vpop.permute.xlu0 %4230
      %4232 = vrot.lane.b32.xlu0 %v4100, 32
      %v4233 = vpop.permute.xlu0 %4232
      %4234 = vrot.lane.b32.xlu0 %v4101, 32
      %v4235 = vpop.permute.xlu0 %4234
      %4236 = vrot.lane.b32.xlu0 %v4102, 32
      %v4237 = vpop.permute.xlu0 %4236
      %4238 = vrot.lane.b32.xlu0 %v4103, 32
      %v4239 = vpop.permute.xlu0 %4238
      %4240 = vrot.lane.b32.xlu0 %v4104, 32
      %v4241 = vpop.permute.xlu0 %4240
      %4242 = vrot.lane.b32.xlu0 %v4105, 32
      %v4243 = vpop.permute.xlu0 %4242
      %4244 = vrot.lane.b32.xlu0 %v4106, 32
      %v4245 = vpop.permute.xlu0 %4244
      %4246 = vrot.lane.b32.xlu0 %v4107, 32
      %v4247 = vpop.permute.xlu0 %4246
      %4248 = vrot.lane.b32.xlu0 %v4108, 32
      %v4249 = vpop.permute.xlu0 %4248
      %4250 = vrot.lane.b32.xlu0 %v4109, 32
      %v4251 = vpop.permute.xlu0 %4250
      %4252 = vrot.lane.b32.xlu0 %v4110, 32
      %v4253 = vpop.permute.xlu0 %4252
      %4254 = vrot.lane.b32.xlu0 %v4111, 32
      %v4255 = vpop.permute.xlu0 %4254
      %v4272 = vmul.f32 %v4065, %v4225
      %v4273 = vmul.f32 %v4067, %v4227
      %v4274 = vmul.f32 %v4069, %v4229
      %v4275 = vmul.f32 %v4071, %v4231
      %v4276 = vmul.f32 %v4073, %v4233
      %v4277 = vmul.f32 %v4075, %v4235
      %v4278 = vmul.f32 %v4077, %v4237
      %v4279 = vmul.f32 %v4079, %v4239
      %v4280 = vmul.f32 %v4081, %v4241
      %v4281 = vmul.f32 %v4083, %v4243
      %v4282 = vmul.f32 %v4085, %v4245
      %v4283 = vmul.f32 %v4087, %v4247
      %v4284 = vmul.f32 %v4089, %v4249
      %v4285 = vmul.f32 %v4091, %v4251
      %v4286 = vmul.f32 %v4093, %v4253
      %v4287 = vmul.f32 %v4095, %v4255
      %4304 = vrot.lane.b32.xlu0 %v4272, 32
      %v4305 = vpop.permute.xlu0 %4304
      %4306 = vrot.lane.b32.xlu0 %v4273, 32
      %v4307 = vpop.permute.xlu0 %4306
      %4308 = vrot.lane.b32.xlu0 %v4274, 32
      %v4309 = vpop.permute.xlu0 %4308
      %4310 = vrot.lane.b32.xlu0 %v4275, 32
      %v4311 = vpop.permute.xlu0 %4310
      %4312 = vrot.lane.b32.xlu0 %v4276, 32
      %v4313 = vpop.permute.xlu0 %4312
      %4314 = vrot.lane.b32.xlu0 %v4277, 32
      %v4315 = vpop.permute.xlu0 %4314
      %4316 = vrot.lane.b32.xlu0 %v4278, 32
      %v4317 = vpop.permute.xlu0 %4316
      %4318 = vrot.lane.b32.xlu0 %v4279, 32
      %v4319 = vpop.permute.xlu0 %4318
      %4320 = vrot.lane.b32.xlu0 %v4280, 32
      %v4321 = vpop.permute.xlu0 %4320
      %4322 = vrot.lane.b32.xlu0 %v4281, 32
      %v4323 = vpop.permute.xlu0 %4322
      %4324 = vrot.lane.b32.xlu0 %v4282, 32
      %v4325 = vpop.permute.xlu0 %4324
      %4326 = vrot.lane.b32.xlu0 %v4283, 32
      %v4327 = vpop.permute.xlu0 %4326
      %4328 = vrot.lane.b32.xlu0 %v4284, 32
      %v4329 = vpop.permute.xlu0 %4328
      %4330 = vrot.lane.b32.xlu0 %v4285, 32
      %v4331 = vpop.permute.xlu0 %4330
      %4332 = vrot.lane.b32.xlu0 %v4286, 32
      %v4333 = vpop.permute.xlu0 %4332
      %4334 = vrot.lane.b32.xlu0 %v4287, 32
      %v4335 = vpop.permute.xlu0 %4334
      %v4352 = vadd.f32 %v4192, %v4305
      %v4353 = vadd.f32 %v4193, %v4307
      %v4354 = vadd.f32 %v4194, %v4309
      %v4355 = vadd.f32 %v4195, %v4311
      %v4356 = vadd.f32 %v4196, %v4313
      %v4357 = vadd.f32 %v4197, %v4315
      %v4358 = vadd.f32 %v4198, %v4317
      %v4359 = vadd.f32 %v4199, %v4319
      %v4360 = vadd.f32 %v4200, %v4321
      %v4361 = vadd.f32 %v4201, %v4323
      %v4362 = vadd.f32 %v4202, %v4325
      %v4363 = vadd.f32 %v4203, %v4327
      %v4364 = vadd.f32 %v4204, %v4329
      %v4365 = vadd.f32 %v4205, %v4331
      %v4366 = vadd.f32 %v4206, %v4333
      %v4367 = vadd.f32 %v4207, %v4335
      %v4368 = vtanh.pop %v4352
      %v4369 = vtanh.pop %v4353
      %v4370 = vtanh.pop %v4354
      %v4371 = vtanh.pop %v4355
      %v4372 = vtanh.pop %v4356
      %v4373 = vtanh.pop %v4357
      %v4374 = vtanh.pop %v4358
      %v4375 = vtanh.pop %v4359
      %v4376 = vtanh.pop %v4360
      %v4377 = vtanh.pop %v4361
      %v4378 = vtanh.pop %v4362
      %v4379 = vtanh.pop %v4363
      %v4380 = vtanh.pop %v4364
      %v4381 = vtanh.pop %v4365
      %v4382 = vtanh.pop %v4366
      %v4383 = vtanh.pop %v4367
      %4400 = vrot.lane.b32.xlu0 %v4368, 32
      %v4401 = vpop.permute.xlu0 %4400
      %4402 = vrot.lane.b32.xlu0 %v4369, 32
      %v4403 = vpop.permute.xlu0 %4402
      %4404 = vrot.lane.b32.xlu0 %v4370, 32
      %v4405 = vpop.permute.xlu0 %4404
      %4406 = vrot.lane.b32.xlu0 %v4371, 32
      %v4407 = vpop.permute.xlu0 %4406
      %4408 = vrot.lane.b32.xlu0 %v4372, 32
      %v4409 = vpop.permute.xlu0 %4408
      %4410 = vrot.lane.b32.xlu0 %v4373, 32
      %v4411 = vpop.permute.xlu0 %4410
      %4412 = vrot.lane.b32.xlu0 %v4374, 32
      %v4413 = vpop.permute.xlu0 %4412
      %4414 = vrot.lane.b32.xlu0 %v4375, 32
      %v4415 = vpop.permute.xlu0 %4414
      %4416 = vrot.lane.b32.xlu0 %v4376, 32
      %v4417 = vpop.permute.xlu0 %4416
      %4418 = vrot.lane.b32.xlu0 %v4377, 32
      %v4419 = vpop.permute.xlu0 %4418
      %4420 = vrot.lane.b32.xlu0 %v4378, 32
      %v4421 = vpop.permute.xlu0 %4420
      %4422 = vrot.lane.b32.xlu0 %v4379, 32
      %v4423 = vpop.permute.xlu0 %4422
      %4424 = vrot.lane.b32.xlu0 %v4380, 32
      %v4425 = vpop.permute.xlu0 %4424
      %4426 = vrot.lane.b32.xlu0 %v4381, 32
      %v4427 = vpop.permute.xlu0 %4426
      %4428 = vrot.lane.b32.xlu0 %v4382, 32
      %v4429 = vpop.permute.xlu0 %4428
      %4430 = vrot.lane.b32.xlu0 %v4383, 32
      %v4431 = vpop.permute.xlu0 %4430
      %v4448 = vmul.f32 %v4065, %v4401
      %v4449 = vmul.f32 %v4067, %v4403
      %v4450 = vmul.f32 %v4069, %v4405
      %v4451 = vmul.f32 %v4071, %v4407
      %v4452 = vmul.f32 %v4073, %v4409
      %v4453 = vmul.f32 %v4075, %v4411
      %v4454 = vmul.f32 %v4077, %v4413
      %v4455 = vmul.f32 %v4079, %v4415
      %v4456 = vmul.f32 %v4081, %v4417
      %v4457 = vmul.f32 %v4083, %v4419
      %v4458 = vmul.f32 %v4085, %v4421
      %v4459 = vmul.f32 %v4087, %v4423
      %v4460 = vmul.f32 %v4089, %v4425
      %v4461 = vmul.f32 %v4091, %v4427
      %v4462 = vmul.f32 %v4093, %v4429
      %v4463 = vmul.f32 %v4095, %v4431
      %4480 = vrot.lane.b32.xlu0 %v4352, 96
      %v4481 = vpop.permute.xlu0 %4480
      %4482 = vrot.lane.b32.xlu0 %v4353, 96
      %v4483 = vpop.permute.xlu0 %4482
      %4484 = vrot.lane.b32.xlu0 %v4354, 96
      %v4485 = vpop.permute.xlu0 %4484
      %4486 = vrot.lane.b32.xlu0 %v4355, 96
      %v4487 = vpop.permute.xlu0 %4486
      %4488 = vrot.lane.b32.xlu0 %v4356, 96
      %v4489 = vpop.permute.xlu0 %4488
      %4490 = vrot.lane.b32.xlu0 %v4357, 96
      %v4491 = vpop.permute.xlu0 %4490
      %4492 = vrot.lane.b32.xlu0 %v4358, 96
      %v4493 = vpop.permute.xlu0 %4492
      %4494 = vrot.lane.b32.xlu0 %v4359, 96
      %v4495 = vpop.permute.xlu0 %4494
      %4496 = vrot.lane.b32.xlu0 %v4360, 96
      %v4497 = vpop.permute.xlu0 %4496
      %4498 = vrot.lane.b32.xlu0 %v4361, 96
      %v4499 = vpop.permute.xlu0 %4498
      %4500 = vrot.lane.b32.xlu0 %v4362, 96
      %v4501 = vpop.permute.xlu0 %4500
      %4502 = vrot.lane.b32.xlu0 %v4363, 96
      %v4503 = vpop.permute.xlu0 %4502
      %4504 = vrot.lane.b32.xlu0 %v4364, 96
      %v4505 = vpop.permute.xlu0 %4504
      %4506 = vrot.lane.b32.xlu0 %v4365, 96
      %v4507 = vpop.permute.xlu0 %4506
      %4508 = vrot.lane.b32.xlu0 %v4366, 96
      %v4509 = vpop.permute.xlu0 %4508
      %4510 = vrot.lane.b32.xlu0 %v4367, 96
      %v4511 = vpop.permute.xlu0 %4510
      %4528 = vst.msk [vmem:[%s236 + $0x80] sm:$0xff] %vm873, %v4481
      %4529 = vst.msk [vmem:[%s236 + $0x88] sm:$0xff] %vm873, %v4483
      %4530 = vst.msk [vmem:[%s236 + $0x90] sm:$0xff] %vm873, %v4485
      %4531 = vst.msk [vmem:[%s236 + $0x98] sm:$0xff] %vm873, %v4487
      %4532 = vst.msk [vmem:[%s236 + $0xa0] sm:$0xff] %vm873, %v4489
      %4533 = vst.msk [vmem:[%s236 + $0xa8] sm:$0xff] %vm873, %v4491
      %4534 = vst.msk [vmem:[%s236 + $0xb0] sm:$0xff] %vm873, %v4493
      %4535 = vst.msk [vmem:[%s236 + $0xb8] sm:$0xff] %vm873, %v4495
      %4536 = vst.msk [vmem:[%s236 + $0xc0] sm:$0xff] %vm873, %v4497
      %4537 = vst.msk [vmem:[%s236 + $0xc8] sm:$0xff] %vm873, %v4499
      %4538 = vst.msk [vmem:[%s236 + $0xd0] sm:$0xff] %vm873, %v4501
      %4539 = vst.msk [vmem:[%s236 + $0xd8] sm:$0xff] %vm873, %v4503
      %4540 = vst.msk [vmem:[%s236 + $0xe0] sm:$0xff] %vm873, %v4505
      %4541 = vst.msk [vmem:[%s236 + $0xe8] sm:$0xff] %vm873, %v4507
      %4542 = vst.msk [vmem:[%s236 + $0xf0] sm:$0xff] %vm873, %v4509
      %4543 = vst.msk [vmem:[%s236 + $0xf8] sm:$0xff] %vm873, %v4511
      %4560 = vrot.lane.b32.xlu0 %v4448, 64
      %v4561 = vpop.permute.xlu0 %4560
      %4562 = vrot.lane.b32.xlu0 %v4449, 64
      %v4563 = vpop.permute.xlu0 %4562
      %4564 = vrot.lane.b32.xlu0 %v4450, 64
      %v4565 = vpop.permute.xlu0 %4564
      %4566 = vrot.lane.b32.xlu0 %v4451, 64
      %v4567 = vpop.permute.xlu0 %4566
      %4568 = vrot.lane.b32.xlu0 %v4452, 64
      %v4569 = vpop.permute.xlu0 %4568
      %4570 = vrot.lane.b32.xlu0 %v4453, 64
      %v4571 = vpop.permute.xlu0 %4570
      %4572 = vrot.lane.b32.xlu0 %v4454, 64
      %v4573 = vpop.permute.xlu0 %4572
      %4574 = vrot.lane.b32.xlu0 %v4455, 64
      %v4575 = vpop.permute.xlu0 %4574
      %4576 = vrot.lane.b32.xlu0 %v4456, 64
      %v4577 = vpop.permute.xlu0 %4576
      %4578 = vrot.lane.b32.xlu0 %v4457, 64
      %v4579 = vpop.permute.xlu0 %4578
      %4580 = vrot.lane.b32.xlu0 %v4458, 64
      %v4581 = vpop.permute.xlu0 %4580
      %4582 = vrot.lane.b32.xlu0 %v4459, 64
      %v4583 = vpop.permute.xlu0 %4582
      %4584 = vrot.lane.b32.xlu0 %v4460, 64
      %v4585 = vpop.permute.xlu0 %4584
      %4586 = vrot.lane.b32.xlu0 %v4461, 64
      %v4587 = vpop.permute.xlu0 %4586
      %4588 = vrot.lane.b32.xlu0 %v4462, 64
      %v4589 = vpop.permute.xlu0 %4588
      %4590 = vrot.lane.b32.xlu0 %v4463, 64
      %v4591 = vpop.permute.xlu0 %4590
      %4608 = vst.msk [vmem:[%s231 + $0x80] sm:$0xff] %vm873, %v4561
      %4609 = vst.msk [vmem:[%s231 + $0x88] sm:$0xff] %vm873, %v4563
      %4610 = vst.msk [vmem:[%s231 + $0x90] sm:$0xff] %vm873, %v4565
      %4611 = vst.msk [vmem:[%s231 + $0x98] sm:$0xff] %vm873, %v4567
      %4612 = vst.msk [vmem:[%s231 + $0xa0] sm:$0xff] %vm873, %v4569
      %4613 = vst.msk [vmem:[%s231 + $0xa8] sm:$0xff] %vm873, %v4571
      %4614 = vst.msk [vmem:[%s231 + $0xb0] sm:$0xff] %vm873, %v4573
      %4615 = vst.msk [vmem:[%s231 + $0xb8] sm:$0xff] %vm873, %v4575
      %4616 = vst.msk [vmem:[%s231 + $0xc0] sm:$0xff] %vm873, %v4577
      %4617 = vst.msk [vmem:[%s231 + $0xc8] sm:$0xff] %vm873, %v4579
      %4618 = vst.msk [vmem:[%s231 + $0xd0] sm:$0xff] %vm873, %v4581
      %4619 = vst.msk [vmem:[%s231 + $0xd8] sm:$0xff] %vm873, %v4583
      %4620 = vst.msk [vmem:[%s231 + $0xe0] sm:$0xff] %vm873, %v4585
      %4621 = vst.msk [vmem:[%s231 + $0xe8] sm:$0xff] %vm873, %v4587
      %4622 = vst.msk [vmem:[%s231 + $0xf0] sm:$0xff] %vm873, %v4589
      %4623 = vst.msk [vmem:[%s231 + $0xf8] sm:$0xff] %vm873, %v4591
      %v4624 = vld [vmem:[%s2 + $0x80] sm:$0xff]
      %v4625 = vld [vmem:[%s2 + $0x88] sm:$0xff]
      %v4626 = vld [vmem:[%s2 + $0x90] sm:$0xff]
      %v4627 = vld [vmem:[%s2 + $0x98] sm:$0xff]
      %v4628 = vld [vmem:[%s2 + $0xa0] sm:$0xff]
      %v4629 = vld [vmem:[%s2 + $0xa8] sm:$0xff]
      %v4630 = vld [vmem:[%s2 + $0xb0] sm:$0xff]
      %v4631 = vld [vmem:[%s2 + $0xb8] sm:$0xff]
      %v4632 = vld [vmem:[%s2 + $0xc0] sm:$0xff]
      %v4633 = vld [vmem:[%s2 + $0xc8] sm:$0xff]
      %v4634 = vld [vmem:[%s2 + $0xd0] sm:$0xff]
      %v4635 = vld [vmem:[%s2 + $0xd8] sm:$0xff]
      %v4636 = vld [vmem:[%s2 + $0xe0] sm:$0xff]
      %v4637 = vld [vmem:[%s2 + $0xe8] sm:$0xff]
      %v4638 = vld [vmem:[%s2 + $0xf0] sm:$0xff]
      %v4639 = vld [vmem:[%s2 + $0xf8] sm:$0xff]
      %4656 = vrot.lane.b32.xlu0 %v4624, 64
      %v4657 = vpop.permute.xlu0 %4656
      %4658 = vrot.lane.b32.xlu0 %v4625, 64
      %v4659 = vpop.permute.xlu0 %4658
      %4660 = vrot.lane.b32.xlu0 %v4626, 64
      %v4661 = vpop.permute.xlu0 %4660
      %4662 = vrot.lane.b32.xlu0 %v4627, 64
      %v4663 = vpop.permute.xlu0 %4662
      %4664 = vrot.lane.b32.xlu0 %v4628, 64
      %v4665 = vpop.permute.xlu0 %4664
      %4666 = vrot.lane.b32.xlu0 %v4629, 64
      %v4667 = vpop.permute.xlu0 %4666
      %4668 = vrot.lane.b32.xlu0 %v4630, 64
      %v4669 = vpop.permute.xlu0 %4668
      %4670 = vrot.lane.b32.xlu0 %v4631, 64
      %v4671 = vpop.permute.xlu0 %4670
      %4672 = vrot.lane.b32.xlu0 %v4632, 64
      %v4673 = vpop.permute.xlu0 %4672
      %4674 = vrot.lane.b32.xlu0 %v4633, 64
      %v4675 = vpop.permute.xlu0 %4674
      %4676 = vrot.lane.b32.xlu0 %v4634, 64
      %v4677 = vpop.permute.xlu0 %4676
      %4678 = vrot.lane.b32.xlu0 %v4635, 64
      %v4679 = vpop.permute.xlu0 %4678
      %4680 = vrot.lane.b32.xlu0 %v4636, 64
      %v4681 = vpop.permute.xlu0 %4680
      %4682 = vrot.lane.b32.xlu0 %v4637, 64
      %v4683 = vpop.permute.xlu0 %4682
      %4684 = vrot.lane.b32.xlu0 %v4638, 64
      %v4685 = vpop.permute.xlu0 %4684
      %4686 = vrot.lane.b32.xlu0 %v4639, 64
      %v4687 = vpop.permute.xlu0 %4686
      %v4704 = vmul.f32 %v4448, %v4657
      %v4705 = vmul.f32 %v4449, %v4659
      %v4706 = vmul.f32 %v4450, %v4661
      %v4707 = vmul.f32 %v4451, %v4663
      %v4708 = vmul.f32 %v4452, %v4665
      %v4709 = vmul.f32 %v4453, %v4667
      %v4710 = vmul.f32 %v4454, %v4669
      %v4711 = vmul.f32 %v4455, %v4671
      %v4712 = vmul.f32 %v4456, %v4673
      %v4713 = vmul.f32 %v4457, %v4675
      %v4714 = vmul.f32 %v4458, %v4677
      %v4715 = vmul.f32 %v4459, %v4679
      %v4716 = vmul.f32 %v4460, %v4681
      %v4717 = vmul.f32 %v4461, %v4683
      %v4718 = vmul.f32 %v4462, %v4685
      %v4719 = vmul.f32 %v4463, %v4687
      %4736 = vrot.lane.b32.xlu0 %v4704, 64
      %v4737 = vpop.permute.xlu0 %4736
      %4738 = vrot.lane.b32.xlu0 %v4705, 64
      %v4739 = vpop.permute.xlu0 %4738
      %4740 = vrot.lane.b32.xlu0 %v4706, 64
      %v4741 = vpop.permute.xlu0 %4740
      %4742 = vrot.lane.b32.xlu0 %v4707, 64
      %v4743 = vpop.permute.xlu0 %4742
      %4744 = vrot.lane.b32.xlu0 %v4708, 64
      %v4745 = vpop.permute.xlu0 %4744
      %4746 = vrot.lane.b32.xlu0 %v4709, 64
      %v4747 = vpop.permute.xlu0 %4746
      %4748 = vrot.lane.b32.xlu0 %v4710, 64
      %v4749 = vpop.permute.xlu0 %4748
      %4750 = vrot.lane.b32.xlu0 %v4711, 64
      %v4751 = vpop.permute.xlu0 %4750
      %4752 = vrot.lane.b32.xlu0 %v4712, 64
      %v4753 = vpop.permute.xlu0 %4752
      %4754 = vrot.lane.b32.xlu0 %v4713, 64
      %v4755 = vpop.permute.xlu0 %4754
      %4756 = vrot.lane.b32.xlu0 %v4714, 64
      %v4757 = vpop.permute.xlu0 %4756
      %4758 = vrot.lane.b32.xlu0 %v4715, 64
      %v4759 = vpop.permute.xlu0 %4758
      %4760 = vrot.lane.b32.xlu0 %v4716, 64
      %v4761 = vpop.permute.xlu0 %4760
      %4762 = vrot.lane.b32.xlu0 %v4717, 64
      %v4763 = vpop.permute.xlu0 %4762
      %4764 = vrot.lane.b32.xlu0 %v4718, 64
      %v4765 = vpop.permute.xlu0 %4764
      %4766 = vrot.lane.b32.xlu0 %v4719, 64
      %v4767 = vpop.permute.xlu0 %4766
      %4784 = vst.msk [vmem:[#allocation2 + $0x98] sm:$0xff] %vm873, %v4737
      %4785 = vst.msk [vmem:[#allocation2 + $0xa0] sm:$0xff] %vm873, %v4739
      %4786 = vst.msk [vmem:[#allocation2 + $0xa8] sm:$0xff] %vm873, %v4741
      %4787 = vst.msk [vmem:[#allocation2 + $0xb0] sm:$0xff] %vm873, %v4743
      %4788 = vst.msk [vmem:[#allocation2 + $0xb8] sm:$0xff] %vm873, %v4745
      %4789 = vst.msk [vmem:[#allocation2 + $0xc0] sm:$0xff] %vm873, %v4747
      %4790 = vst.msk [vmem:[#allocation2 + $0xc8] sm:$0xff] %vm873, %v4749
      %4791 = vst.msk [vmem:[#allocation2 + $0xd0] sm:$0xff] %vm873, %v4751
      %4792 = vst.msk [vmem:[#allocation2 + $0xd8] sm:$0xff] %vm873, %v4753
      %4793 = vst.msk [vmem:[#allocation2 + $0xe0] sm:$0xff] %vm873, %v4755
      %4794 = vst.msk [vmem:[#allocation2 + $0xe8] sm:$0xff] %vm873, %v4757
      %4795 = vst.msk [vmem:[#allocation2 + $0xf0] sm:$0xff] %vm873, %v4759
      %4796 = vst.msk [vmem:[#allocation2 + $0xf8] sm:$0xff] %vm873, %v4761
      %4797 = vst.msk [vmem:[#allocation2 + $0x100] sm:$0xff] %vm873, %v4763
      %4798 = vst.msk [vmem:[#allocation2 + $0x108] sm:$0xff] %vm873, %v4765
      %4799 = vst.msk [vmem:[#allocation2 + $0x110] sm:$0xff] %vm873, %v4767
      %v4800 = vld [vmem:[%s226 + $0x100] sm:$0xff]
      %v4801 = vld [vmem:[%s226 + $0x108] sm:$0xff]
      %v4802 = vld [vmem:[%s226 + $0x110] sm:$0xff]
      %v4803 = vld [vmem:[%s226 + $0x118] sm:$0xff]
      %v4804 = vld [vmem:[%s226 + $0x120] sm:$0xff]
      %v4805 = vld [vmem:[%s226 + $0x128] sm:$0xff]
      %v4806 = vld [vmem:[%s226 + $0x130] sm:$0xff]
      %v4807 = vld [vmem:[%s226 + $0x138] sm:$0xff]
      %v4808 = vld [vmem:[%s226 + $0x140] sm:$0xff]
      %v4809 = vld [vmem:[%s226 + $0x148] sm:$0xff]
      %v4810 = vld [vmem:[%s226 + $0x150] sm:$0xff]
      %v4811 = vld [vmem:[%s226 + $0x158] sm:$0xff]
      %v4812 = vld [vmem:[%s226 + $0x160] sm:$0xff]
      %v4813 = vld [vmem:[%s226 + $0x168] sm:$0xff]
      %v4814 = vld [vmem:[%s226 + $0x170] sm:$0xff]
      %v4815 = vld [vmem:[%s226 + $0x178] sm:$0xff]
      %v4817 = vsel %vm2289, %v987, 0
      %v4820 = vsel %vm2289, %v988, 0
      %v4823 = vsel %vm2289, %v989, 0
      %v4826 = vsel %vm2289, %v990, 0
      %v4829 = vsel %vm2289, %v991, 0
      %v4832 = vsel %vm2289, %v992, 0
      %v4835 = vsel %vm2289, %v993, 0
      %v4838 = vsel %vm2289, %v994, 0
      %4840 = vmatprep.subr.bf16.mxu0 0
      %4841 = vmatpush1.bf16.msra.mxu0 %v2277
      %4842 = vmatprep.subr.bf16.mxu0 0
      %4843 = vmatpush1.bf16.msra.mxu0 %v2278
      %4844 = vmatprep.subr.bf16.mxu0 0
      %4845 = vmatpush1.bf16.msra.mxu0 %v2279
      %4846 = vmatprep.subr.bf16.mxu0 0
      %4847 = vmatpush1.bf16.msra.mxu0 %v2280
      %4848 = vmatprep.subr.bf16.mxu0 0
      %4849 = vmatpush1.bf16.msra.mxu0 %v2281
      %4850 = vmatprep.subr.bf16.mxu0 0
      %4851 = vmatpush1.bf16.msra.mxu0 %v2282
      %4852 = vmatprep.subr.bf16.mxu0 0
      %4853 = vmatpush1.bf16.msra.mxu0 0
      %4854 = vmatprep.subr.bf16.mxu0 0
      %4855 = vmatpush1.bf16.msra.mxu0 0
      %4856 = vmatprep.subr.bf16.mxu0 0
      %4857 = vmatpush1.bf16.msra.mxu0 0
      %4858 = vmatprep.subr.bf16.mxu0 0
      %4859 = vmatpush1.bf16.msra.mxu0 0
      %4860 = vmatprep.subr.bf16.mxu0 0
      %4861 = vmatpush1.bf16.msra.mxu0 0
      %4862 = vmatprep.subr.bf16.mxu0 0
      %4863 = vmatpush1.bf16.msra.mxu0 0
      %4864 = vmatprep.subr.bf16.mxu0 0
      %4865 = vmatpush1.bf16.msra.mxu0 0
      %4866 = vmatprep.subr.bf16.mxu0 0
      %4867 = vmatpush1.bf16.msra.mxu0 0
      %4868 = vmatprep.subr.bf16.mxu0 0
      %4869 = vmatpush1.bf16.msra.mxu0 0
      %4870 = vmatprep.subr.bf16.mxu0 0
      %4871 = vmatpush1.bf16.msra.mxu0 0
      %4872 = vmatprep.mubr.bf16.mxu0 0
      %4873 = vmatmul.mubr.bf16.gmra.mrb[0].mxu0 %v4817
      %v4874 = vpop.f32.mrb[0].mxu0
      %v4875 = vadd.f32 0.0, %v4874
      %v4876 = vpop.f32.mrb[0].mxu0
      %v4877 = vpop.f32.mrb[0].mxu0
      %v4878 = vadd.f32 0.0, %v4877
      %v4879 = vpop.f32.mrb[0].mxu0
      %4880 = vmatprep.mubr.bf16.mxu0 0
      %4881 = vmatmul.mubr.bf16.gmra.mrb[0].mxu0 %v4820
      %v4882 = vpop.f32.mrb[0].mxu0
      %v4883 = vadd.f32 0.0, %v4882
      %v4884 = vpop.f32.mrb[0].mxu0
      %v4885 = vpop.f32.mrb[0].mxu0
      %v4886 = vadd.f32 0.0, %v4885
      %v4887 = vpop.f32.mrb[0].mxu0
      %4888 = vmatprep.mubr.bf16.mxu0 0
      %4889 = vmatmul.mubr.bf16.gmra.mrb[0].mxu0 %v4823
      %v4890 = vpop.f32.mrb[0].mxu0
      %v4891 = vadd.f32 0.0, %v4890
      %v4892 = vpop.f32.mrb[0].mxu0
      %v4893 = vpop.f32.mrb[0].mxu0
      %v4894 = vadd.f32 0.0, %v4893
      %v4895 = vpop.f32.mrb[0].mxu0
      %4896 = vmatprep.mubr.bf16.mxu0 0
      %4897 = vmatmul.mubr.bf16.gmra.mrb[0].mxu0 %v4826
      %v4898 = vpop.f32.mrb[0].mxu0
      %v4899 = vadd.f32 0.0, %v4898
      %v4900 = vpop.f32.mrb[0].mxu0
      %v4901 = vpop.f32.mrb[0].mxu0
      %v4902 = vadd.f32 0.0, %v4901
      %v4903 = vpop.f32.mrb[0].mxu0
      %4904 = vmatprep.mubr.bf16.mxu0 0
      %4905 = vmatmul.mubr.bf16.gmra.mrb[0].mxu0 %v4829
      %v4906 = vpop.f32.mrb[0].mxu0
      %v4907 = vadd.f32 0.0, %v4906
      %v4908 = vpop.f32.mrb[0].mxu0
      %v4909 = vpop.f32.mrb[0].mxu0
      %v4910 = vadd.f32 0.0, %v4909
      %v4911 = vpop.f32.mrb[0].mxu0
      %4912 = vmatprep.mubr.bf16.mxu0 0
      %4913 = vmatmul.mubr.bf16.gmra.mrb[0].mxu0 %v4832
      %v4914 = vpop.f32.mrb[0].mxu0
      %v4915 = vadd.f32 0.0, %v4914
      %v4916 = vpop.f32.mrb[0].mxu0
      %v4917 = vpop.f32.mrb[0].mxu0
      %v4918 = vadd.f32 0.0, %v4917
      %v4919 = vpop.f32.mrb[0].mxu0
      %4920 = vmatprep.mubr.bf16.mxu0 0
      %4921 = vmatmul.mubr.bf16.gmra.mrb[0].mxu0 %v4835
      %v4922 = vpop.f32.mrb[0].mxu0
      %v4923 = vadd.f32 0.0, %v4922
      %v4924 = vpop.f32.mrb[0].mxu0
      %v4925 = vpop.f32.mrb[0].mxu0
      %v4926 = vadd.f32 0.0, %v4925
      %v4927 = vpop.f32.mrb[0].mxu0
      %4928 = vmatprep.mubr.bf16.mxu0 0
      %4929 = vmatmul.mubr.bf16.gmra.mrb[0].mxu0 %v4838
      %v4930 = vpop.f32.mrb[0].mxu0
      %v4931 = vadd.f32 0.0, %v4930
      %v4932 = vpop.f32.mrb[0].mxu0
      %v4933 = vpop.f32.mrb[0].mxu0
      %v4934 = vadd.f32 0.0, %v4933
      %v4935 = vpop.f32.mrb[0].mxu0
      %4936 = vdwg.mxu0
      %v4937 = vadd.f32 %v4800, %v4875
      %v4938 = vadd.f32 %v4801, %v4878
      %v4939 = vadd.f32 %v4802, %v4883
      %v4940 = vadd.f32 %v4803, %v4886
      %v4941 = vadd.f32 %v4804, %v4891
      %v4942 = vadd.f32 %v4805, %v4894
      %v4943 = vadd.f32 %v4806, %v4899
      %v4944 = vadd.f32 %v4807, %v4902
      %v4945 = vadd.f32 %v4808, %v4907
      %v4946 = vadd.f32 %v4809, %v4910
      %v4947 = vadd.f32 %v4810, %v4915
      %v4948 = vadd.f32 %v4811, %v4918
      %v4949 = vadd.f32 %v4812, %v4923
      %v4950 = vadd.f32 %v4813, %v4926
      %v4951 = vadd.f32 %v4814, %v4931
      %v4952 = vadd.f32 %v4815, %v4934
      %v4954 = vsel %vm2289, %v1589, 0
      %v4957 = vsel %vm2289, %v1590, 0
      %v4960 = vsel %vm2289, %v1591, 0
      %v4963 = vsel %vm2289, %v1592, 0
      %v4966 = vsel %vm2289, %v1593, 0
      %v4969 = vsel %vm2289, %v1594, 0
      %v4972 = vsel %vm2289, %v1595, 0
      %v4975 = vsel %vm2289, %v1596, 0
      %4977 = vmatprep.subr.bf16.mxu0 0
      %4978 = vmatpush1.bf16.msra.mxu0 %v2451
      %4979 = vmatprep.subr.bf16.mxu0 0
      %4980 = vmatpush1.bf16.msra.mxu0 %v2452
      %4981 = vmatprep.subr.bf16.mxu0 0
      %4982 = vmatpush1.bf16.msra.mxu0 %v2453
      %4983 = vmatprep.subr.bf16.mxu0 0
      %4984 = vmatpush1.bf16.msra.mxu0 %v2454
      %4985 = vmatprep.subr.bf16.mxu0 0
      %4986 = vmatpush1.bf16.msra.mxu0 %v2455
      %4987 = vmatprep.subr.bf16.mxu0 0
      %4988 = vmatpush1.bf16.msra.mxu0 %v2456
      %4989 = vmatprep.subr.bf16.mxu0 0
      %4990 = vmatpush1.bf16.msra.mxu0 0
      %4991 = vmatprep.subr.bf16.mxu0 0
      %4992 = vmatpush1.bf16.msra.mxu0 0
      %4993 = vmatprep.subr.bf16.mxu0 0
      %4994 = vmatpush1.bf16.msra.mxu0 0
      %4995 = vmatprep.subr.bf16.mxu0 0
      %4996 = vmatpush1.bf16.msra.mxu0 0
      %4997 = vmatprep.subr.bf16.mxu0 0
      %4998 = vmatpush1.bf16.msra.mxu0 0
      %4999 = vmatprep.subr.bf16.mxu0 0
      %5000 = vmatpush1.bf16.msra.mxu0 0
      %5001 = vmatprep.subr.bf16.mxu0 0
      %5002 = vmatpush1.bf16.msra.mxu0 0
      %5003 = vmatprep.subr.bf16.mxu0 0
      %5004 = vmatpush1.bf16.msra.mxu0 0
      %5005 = vmatprep.subr.bf16.mxu0 0
      %5006 = vmatpush1.bf16.msra.mxu0 0
      %5007 = vmatprep.subr.bf16.mxu0 0
      %5008 = vmatpush1.bf16.msra.mxu0 0
      %5009 = vmatprep.mubr.bf16.mxu0 0
      %5010 = vmatmul.mubr.bf16.gmra.mrb[0].mxu0 %v4954
      %v5011 = vpop.f32.mrb[0].mxu0
      %v5012 = vadd.f32 0.0, %v5011
      %v5013 = vpop.f32.mrb[0].mxu0
      %v5014 = vpop.f32.mrb[0].mxu0
      %v5015 = vadd.f32 0.0, %v5014
      %v5016 = vpop.f32.mrb[0].mxu0
      %5017 = vmatprep.mubr.bf16.mxu0 0
      %5018 = vmatmul.mubr.bf16.gmra.mrb[0].mxu0 %v4957
      %v5019 = vpop.f32.mrb[0].mxu0
      %v5020 = vadd.f32 0.0, %v5019
      %v5021 = vpop.f32.mrb[0].mxu0
      %v5022 = vpop.f32.mrb[0].mxu0
      %v5023 = vadd.f32 0.0, %v5022
      %v5024 = vpop.f32.mrb[0].mxu0
      %5025 = vmatprep.mubr.bf16.mxu0 0
      %5026 = vmatmul.mubr.bf16.gmra.mrb[0].mxu0 %v4960
      %v5027 = vpop.f32.mrb[0].mxu0
      %v5028 = vadd.f32 0.0, %v5027
      %v5029 = vpop.f32.mrb[0].mxu0
      %v5030 = vpop.f32.mrb[0].mxu0
      %v5031 = vadd.f32 0.0, %v5030
      %v5032 = vpop.f32.mrb[0].mxu0
      %5033 = vmatprep.mubr.bf16.mxu0 0
      %5034 = vmatmul.mubr.bf16.gmra.mrb[0].mxu0 %v4963
      %v5035 = vpop.f32.mrb[0].mxu0
      %v5036 = vadd.f32 0.0, %v5035
      %v5037 = vpop.f32.mrb[0].mxu0
      %v5038 = vpop.f32.mrb[0].mxu0
      %v5039 = vadd.f32 0.0, %v5038
      %v5040 = vpop.f32.mrb[0].mxu0
      %5041 = vmatprep.mubr.bf16.mxu0 0
      %5042 = vmatmul.mubr.bf16.gmra.mrb[0].mxu0 %v4966
      %v5043 = vpop.f32.mrb[0].mxu0
      %v5044 = vadd.f32 0.0, %v5043
      %v5045 = vpop.f32.mrb[0].mxu0
      %v5046 = vpop.f32.mrb[0].mxu0
      %v5047 = vadd.f32 0.0, %v5046
      %v5048 = vpop.f32.mrb[0].mxu0
      %5049 = vmatprep.mubr.bf16.mxu0 0
      %5050 = vmatmul.mubr.bf16.gmra.mrb[0].mxu0 %v4969
      %v5051 = vpop.f32.mrb[0].mxu0
      %v5052 = vadd.f32 0.0, %v5051
      %v5053 = vpop.f32.mrb[0].mxu0
      %v5054 = vpop.f32.mrb[0].mxu0
      %v5055 = vadd.f32 0.0, %v5054
      %v5056 = vpop.f32.mrb[0].mxu0
      %5057 = vmatprep.mubr.bf16.mxu0 0
      %5058 = vmatmul.mubr.bf16.gmra.mrb[0].mxu0 %v4972
      %v5059 = vpop.f32.mrb[0].mxu0
      %v5060 = vadd.f32 0.0, %v5059
      %v5061 = vpop.f32.mrb[0].mxu0
      %v5062 = vpop.f32.mrb[0].mxu0
      %v5063 = vadd.f32 0.0, %v5062
      %v5064 = vpop.f32.mrb[0].mxu0
      %5065 = vmatprep.mubr.bf16.mxu0 0
      %5066 = vmatmul.mubr.bf16.gmra.mrb[0].mxu0 %v4975
      %v5067 = vpop.f32.mrb[0].mxu0
      %v5068 = vadd.f32 0.0, %v5067
      %v5069 = vpop.f32.mrb[0].mxu0
      %v5070 = vpop.f32.mrb[0].mxu0
      %v5071 = vadd.f32 0.0, %v5070
      %v5072 = vpop.f32.mrb[0].mxu0
      %5073 = vdwg.mxu0
      %v5074 = vadd.f32 %v4937, %v5012
      %v5075 = vadd.f32 %v4938, %v5015
      %v5076 = vadd.f32 %v4939, %v5020
      %v5077 = vadd.f32 %v4940, %v5023
      %v5078 = vadd.f32 %v4941, %v5028
      %v5079 = vadd.f32 %v4942, %v5031
      %v5080 = vadd.f32 %v4943, %v5036
      %v5081 = vadd.f32 %v4944, %v5039
      %v5082 = vadd.f32 %v4945, %v5044
      %v5083 = vadd.f32 %v4946, %v5047
      %v5084 = vadd.f32 %v4947, %v5052
      %v5085 = vadd.f32 %v4948, %v5055
      %v5086 = vadd.f32 %v4949, %v5060
      %v5087 = vadd.f32 %v4950, %v5063
      %v5088 = vadd.f32 %v4951, %v5068
      %v5089 = vadd.f32 %v4952, %v5071
      %v5091 = vsel %vm2289, %v2191, 0
      %v5094 = vsel %vm2289, %v2192, 0
      %v5097 = vsel %vm2289, %v2193, 0
      %v5100 = vsel %vm2289, %v2194, 0
      %v5103 = vsel %vm2289, %v2195, 0
      %v5106 = vsel %vm2289, %v2196, 0
      %v5109 = vsel %vm2289, %v2197, 0
      %v5112 = vsel %vm2289, %v2198, 0
      %5114 = vmatprep.subr.bf16.mxu0 0
      %5115 = vmatpush1.bf16.msra.mxu0 %v2624
      %5116 = vmatprep.subr.bf16.mxu0 0
      %5117 = vmatpush1.bf16.msra.mxu0 %v2625
      %5118 = vmatprep.subr.bf16.mxu0 0
      %5119 = vmatpush1.bf16.msra.mxu0 %v2626
      %5120 = vmatprep.subr.bf16.mxu0 0
      %5121 = vmatpush1.bf16.msra.mxu0 %v2627
      %5122 = vmatprep.subr.bf16.mxu0 0
      %5123 = vmatpush1.bf16.msra.mxu0 %v2628
      %5124 = vmatprep.subr.bf16.mxu0 0
      %5125 = vmatpush1.bf16.msra.mxu0 %v2629
      %5126 = vmatprep.subr.bf16.mxu0 0
      %5127 = vmatpush1.bf16.msra.mxu0 0
      %5128 = vmatprep.subr.bf16.mxu0 0
      %5129 = vmatpush1.bf16.msra.mxu0 0
      %5130 = vmatprep.subr.bf16.mxu0 0
      %5131 = vmatpush1.bf16.msra.mxu0 0
      %5132 = vmatprep.subr.bf16.mxu0 0
      %5133 = vmatpush1.bf16.msra.mxu0 0
      %5134 = vmatprep.subr.bf16.mxu0 0
      %5135 = vmatpush1.bf16.msra.mxu0 0
      %5136 = vmatprep.subr.bf16.mxu0 0
      %5137 = vmatpush1.bf16.msra.mxu0 0
      %5138 = vmatprep.subr.bf16.mxu0 0
      %5139 = vmatpush1.bf16.msra.mxu0 0
      %5140 = vmatprep.subr.bf16.mxu0 0
      %5141 = vmatpush1.bf16.msra.mxu0 0
      %5142 = vmatprep.subr.bf16.mxu0 0
      %5143 = vmatpush1.bf16.msra.mxu0 0
      %5144 = vmatprep.subr.bf16.mxu0 0
      %5145 = vmatpush1.bf16.msra.mxu0 0
      %5146 = vmatprep.mubr.bf16.mxu0 0
      %5147 = vmatmul.mubr.bf16.gmra.mrb[0].mxu0 %v5091
      %v5148 = vpop.f32.mrb[0].mxu0
      %v5149 = vadd.f32 0.0, %v5148
      %v5150 = vpop.f32.mrb[0].mxu0
      %v5151 = vpop.f32.mrb[0].mxu0
      %v5152 = vadd.f32 0.0, %v5151
      %v5153 = vpop.f32.mrb[0].mxu0
      %5154 = vmatprep.mubr.bf16.mxu0 0
      %5155 = vmatmul.mubr.bf16.gmra.mrb[0].mxu0 %v5094
      %v5156 = vpop.f32.mrb[0].mxu0
      %v5157 = vadd.f32 0.0, %v5156
      %v5158 = vpop.f32.mrb[0].mxu0
      %v5159 = vpop.f32.mrb[0].mxu0
      %v5160 = vadd.f32 0.0, %v5159
      %v5161 = vpop.f32.mrb[0].mxu0
      %5162 = vmatprep.mubr.bf16.mxu0 0
      %5163 = vmatmul.mubr.bf16.gmra.mrb[0].mxu0 %v5097
      %v5164 = vpop.f32.mrb[0].mxu0
      %v5165 = vadd.f32 0.0, %v5164
      %v5166 = vpop.f32.mrb[0].mxu0
      %v5167 = vpop.f32.mrb[0].mxu0
      %v5168 = vadd.f32 0.0, %v5167
      %v5169 = vpop.f32.mrb[0].mxu0
      %5170 = vmatprep.mubr.bf16.mxu0 0
      %5171 = vmatmul.mubr.bf16.gmra.mrb[0].mxu0 %v5100
      %v5172 = vpop.f32.mrb[0].mxu0
      %v5173 = vadd.f32 0.0, %v5172
      %v5174 = vpop.f32.mrb[0].mxu0
      %v5175 = vpop.f32.mrb[0].mxu0
      %v5176 = vadd.f32 0.0, %v5175
      %v5177 = vpop.f32.mrb[0].mxu0
      %5178 = vmatprep.mubr.bf16.mxu0 0
      %5179 = vmatmul.mubr.bf16.gmra.mrb[0].mxu0 %v5103
      %v5180 = vpop.f32.mrb[0].mxu0
      %v5181 = vadd.f32 0.0, %v5180
      %v5182 = vpop.f32.mrb[0].mxu0
      %v5183 = vpop.f32.mrb[0].mxu0
      %v5184 = vadd.f32 0.0, %v5183
      %v5185 = vpop.f32.mrb[0].mxu0
      %5186 = vmatprep.mubr.bf16.mxu0 0
      %5187 = vmatmul.mubr.bf16.gmra.mrb[0].mxu0 %v5106
      %v5188 = vpop.f32.mrb[0].mxu0
      %v5189 = vadd.f32 0.0, %v5188
      %v5190 = vpop.f32.mrb[0].mxu0
      %v5191 = vpop.f32.mrb[0].mxu0
      %v5192 = vadd.f32 0.0, %v5191
      %v5193 = vpop.f32.mrb[0].mxu0
      %5194 = vmatprep.mubr.bf16.mxu0 0
      %5195 = vmatmul.mubr.bf16.gmra.mrb[0].mxu0 %v5109
      %v5196 = vpop.f32.mrb[0].mxu0
      %v5197 = vadd.f32 0.0, %v5196
      %v5198 = vpop.f32.mrb[0].mxu0
      %v5199 = vpop.f32.mrb[0].mxu0
      %v5200 = vadd.f32 0.0, %v5199
      %v5201 = vpop.f32.mrb[0].mxu0
      %5202 = vmatprep.mubr.bf16.mxu0 0
      %5203 = vmatmul.mubr.bf16.gmra.mrb[0].mxu0 %v5112
      %v5204 = vpop.f32.mrb[0].mxu0
      %v5205 = vadd.f32 0.0, %v5204
      %v5206 = vpop.f32.mrb[0].mxu0
      %v5207 = vpop.f32.mrb[0].mxu0
      %v5208 = vadd.f32 0.0, %v5207
      %v5209 = vpop.f32.mrb[0].mxu0
      %5210 = vdwg.mxu0
      %v5211 = vadd.f32 %v5074, %v5149
      %v5212 = vadd.f32 %v5075, %v5152
      %v5213 = vadd.f32 %v5076, %v5157
      %v5214 = vadd.f32 %v5077, %v5160
      %v5215 = vadd.f32 %v5078, %v5165
      %v5216 = vadd.f32 %v5079, %v5168
      %v5217 = vadd.f32 %v5080, %v5173
      %v5218 = vadd.f32 %v5081, %v5176
      %v5219 = vadd.f32 %v5082, %v5181
      %v5220 = vadd.f32 %v5083, %v5184
      %v5221 = vadd.f32 %v5084, %v5189
      %v5222 = vadd.f32 %v5085, %v5192
      %v5223 = vadd.f32 %v5086, %v5197
      %v5224 = vadd.f32 %v5087, %v5200
      %v5225 = vadd.f32 %v5088, %v5205
      %v5226 = vadd.f32 %v5089, %v5208
      %v5227 = vxor.u32 %v5211, 2147483648
      %v5228 = vxor.u32 %v5212, 2147483648
      %v5229 = vxor.u32 %v5213, 2147483648
      %v5230 = vxor.u32 %v5214, 2147483648
      %v5231 = vxor.u32 %v5215, 2147483648
      %v5232 = vxor.u32 %v5216, 2147483648
      %v5233 = vxor.u32 %v5217, 2147483648
      %v5234 = vxor.u32 %v5218, 2147483648
      %v5235 = vxor.u32 %v5219, 2147483648
      %v5236 = vxor.u32 %v5220, 2147483648
      %v5237 = vxor.u32 %v5221, 2147483648
      %v5238 = vxor.u32 %v5222, 2147483648
      %v5239 = vxor.u32 %v5223, 2147483648
      %v5240 = vxor.u32 %v5224, 2147483648
      %v5241 = vxor.u32 %v5225, 2147483648
      %v5242 = vxor.u32 %v5226, 2147483648
      %v5243 = vmul.f32 %v5227, 1.442695
      %v5244 = vpow.pop %v5243
      %v5245 = vmul.f32 %v5228, 1.442695
      %v5246 = vpow.pop %v5245
      %v5247 = vmul.f32 %v5229, 1.442695
      %v5248 = vpow.pop %v5247
      %v5249 = vmul.f32 %v5230, 1.442695
      %v5250 = vpow.pop %v5249
      %v5251 = vmul.f32 %v5231, 1.442695
      %v5252 = vpow.pop %v5251
      %v5253 = vmul.f32 %v5232, 1.442695
      %v5254 = vpow.pop %v5253
      %v5255 = vmul.f32 %v5233, 1.442695
      %v5256 = vpow.pop %v5255
      %v5257 = vmul.f32 %v5234, 1.442695
      %v5258 = vpow.pop %v5257
      %v5259 = vmul.f32 %v5235, 1.442695
      %v5260 = vpow.pop %v5259
      %v5261 = vmul.f32 %v5236, 1.442695
      %v5262 = vpow.pop %v5261
      %v5263 = vmul.f32 %v5237, 1.442695
      %v5264 = vpow.pop %v5263
      %v5265 = vmul.f32 %v5238, 1.442695
      %v5266 = vpow.pop %v5265
      %v5267 = vmul.f32 %v5239, 1.442695
      %v5268 = vpow.pop %v5267
      %v5269 = vmul.f32 %v5240, 1.442695
      %v5270 = vpow.pop %v5269
      %v5271 = vmul.f32 %v5241, 1.442695
      %v5272 = vpow.pop %v5271
      %v5273 = vmul.f32 %v5242, 1.442695
      %v5274 = vpow.pop %v5273
      %v5275 = vadd.f32 %v5244, 1.0
      %v5276 = vadd.f32 %v5246, 1.0
      %v5277 = vadd.f32 %v5248, 1.0
      %v5278 = vadd.f32 %v5250, 1.0
      %v5279 = vadd.f32 %v5252, 1.0
      %v5280 = vadd.f32 %v5254, 1.0
      %v5281 = vadd.f32 %v5256, 1.0
      %v5282 = vadd.f32 %v5258, 1.0
      %v5283 = vadd.f32 %v5260, 1.0
      %v5284 = vadd.f32 %v5262, 1.0
      %v5285 = vadd.f32 %v5264, 1.0
      %v5286 = vadd.f32 %v5266, 1.0
      %v5287 = vadd.f32 %v5268, 1.0
      %v5288 = vadd.f32 %v5270, 1.0
      %v5289 = vadd.f32 %v5272, 1.0
      %v5290 = vadd.f32 %v5274, 1.0
      %v5291 = vrcp.pop %v5275
      %v5292 = vmul.f32 1.0, %v5291
      %v5293 = vrcp.pop %v5276
      %v5294 = vmul.f32 1.0, %v5293
      %v5295 = vrcp.pop %v5277
      %v5296 = vmul.f32 1.0, %v5295
      %v5297 = vrcp.pop %v5278
      %v5298 = vmul.f32 1.0, %v5297
      %v5299 = vrcp.pop %v5279
      %v5300 = vmul.f32 1.0, %v5299
      %v5301 = vrcp.pop %v5280
      %v5302 = vmul.f32 1.0, %v5301
      %v5303 = vrcp.pop %v5281
      %v5304 = vmul.f32 1.0, %v5303
      %v5305 = vrcp.pop %v5282
      %v5306 = vmul.f32 1.0, %v5305
      %v5307 = vrcp.pop %v5283
      %v5308 = vmul.f32 1.0, %v5307
      %v5309 = vrcp.pop %v5284
      %v5310 = vmul.f32 1.0, %v5309
      %v5311 = vrcp.pop %v5285
      %v5312 = vmul.f32 1.0, %v5311
      %v5313 = vrcp.pop %v5286
      %v5314 = vmul.f32 1.0, %v5313
      %v5315 = vrcp.pop %v5287
      %v5316 = vmul.f32 1.0, %v5315
      %v5317 = vrcp.pop %v5288
      %v5318 = vmul.f32 1.0, %v5317
      %v5319 = vrcp.pop %v5289
      %v5320 = vmul.f32 1.0, %v5319
      %v5321 = vrcp.pop %v5290
      %v5322 = vmul.f32 1.0, %v5321
      %v5323 = vtanh.pop %v5211
      %v5324 = vtanh.pop %v5212
      %v5325 = vtanh.pop %v5213
      %v5326 = vtanh.pop %v5214
      %v5327 = vtanh.pop %v5215
      %v5328 = vtanh.pop %v5216
      %v5329 = vtanh.pop %v5217
      %v5330 = vtanh.pop %v5218
      %v5331 = vtanh.pop %v5219
      %v5332 = vtanh.pop %v5220
      %v5333 = vtanh.pop %v5221
      %v5334 = vtanh.pop %v5222
      %v5335 = vtanh.pop %v5223
      %v5336 = vtanh.pop %v5224
      %v5337 = vtanh.pop %v5225
      %v5338 = vtanh.pop %v5226
      %v5339 = vld [vmem:[%s236 + $0x100] sm:$0xff]
      %v5340 = vld [vmem:[%s236 + $0x108] sm:$0xff]
      %v5341 = vld [vmem:[%s236 + $0x110] sm:$0xff]
      %v5342 = vld [vmem:[%s236 + $0x118] sm:$0xff]
      %v5343 = vld [vmem:[%s236 + $0x120] sm:$0xff]
      %v5344 = vld [vmem:[%s236 + $0x128] sm:$0xff]
      %v5345 = vld [vmem:[%s236 + $0x130] sm:$0xff]
      %v5346 = vld [vmem:[%s236 + $0x138] sm:$0xff]
      %v5347 = vld [vmem:[%s236 + $0x140] sm:$0xff]
      %v5348 = vld [vmem:[%s236 + $0x148] sm:$0xff]
      %v5349 = vld [vmem:[%s236 + $0x150] sm:$0xff]
      %v5350 = vld [vmem:[%s236 + $0x158] sm:$0xff]
      %v5351 = vld [vmem:[%s236 + $0x160] sm:$0xff]
      %v5352 = vld [vmem:[%s236 + $0x168] sm:$0xff]
      %v5353 = vld [vmem:[%s236 + $0x170] sm:$0xff]
      %v5354 = vld [vmem:[%s236 + $0x178] sm:$0xff]
      %5371 = vrot.lane.b32.xlu0 %v5339, 32
      %v5372 = vpop.permute.xlu0 %5371
      %5373 = vrot.lane.b32.xlu0 %v5340, 32
      %v5374 = vpop.permute.xlu0 %5373
      %5375 = vrot.lane.b32.xlu0 %v5341, 32
      %v5376 = vpop.permute.xlu0 %5375
      %5377 = vrot.lane.b32.xlu0 %v5342, 32
      %v5378 = vpop.permute.xlu0 %5377
      %5379 = vrot.lane.b32.xlu0 %v5343, 32
      %v5380 = vpop.permute.xlu0 %5379
      %5381 = vrot.lane.b32.xlu0 %v5344, 32
      %v5382 = vpop.permute.xlu0 %5381
      %5383 = vrot.lane.b32.xlu0 %v5345, 32
      %v5384 = vpop.permute.xlu0 %5383
      %5385 = vrot.lane.b32.xlu0 %v5346, 32
      %v5386 = vpop.permute.xlu0 %5385
      %5387 = vrot.lane.b32.xlu0 %v5347, 32
      %v5388 = vpop.permute.xlu0 %5387
      %5389 = vrot.lane.b32.xlu0 %v5348, 32
      %v5390 = vpop.permute.xlu0 %5389
      %5391 = vrot.lane.b32.xlu0 %v5349, 32
      %v5392 = vpop.permute.xlu0 %5391
      %5393 = vrot.lane.b32.xlu0 %v5350, 32
      %v5394 = vpop.permute.xlu0 %5393
      %5395 = vrot.lane.b32.xlu0 %v5351, 32
      %v5396 = vpop.permute.xlu0 %5395
      %5397 = vrot.lane.b32.xlu0 %v5352, 32
      %v5398 = vpop.permute.xlu0 %5397
      %5399 = vrot.lane.b32.xlu0 %v5353, 32
      %v5400 = vpop.permute.xlu0 %5399
      %5401 = vrot.lane.b32.xlu0 %v5354, 32
      %v5402 = vpop.permute.xlu0 %5401
      %v5419 = vmul.f32 %v5292, %v5372
      %v5420 = vmul.f32 %v5294, %v5374
      %v5421 = vmul.f32 %v5296, %v5376
      %v5422 = vmul.f32 %v5298, %v5378
      %v5423 = vmul.f32 %v5300, %v5380
      %v5424 = vmul.f32 %v5302, %v5382
      %v5425 = vmul.f32 %v5304, %v5384
      %v5426 = vmul.f32 %v5306, %v5386
      %v5427 = vmul.f32 %v5308, %v5388
      %v5428 = vmul.f32 %v5310, %v5390
      %v5429 = vmul.f32 %v5312, %v5392
      %v5430 = vmul.f32 %v5314, %v5394
      %v5431 = vmul.f32 %v5316, %v5396
      %v5432 = vmul.f32 %v5318, %v5398
      %v5433 = vmul.f32 %v5320, %v5400
      %v5434 = vmul.f32 %v5322, %v5402
      %5451 = vrot.lane.b32.xlu0 %v5323, 32
      %v5452 = vpop.permute.xlu0 %5451
      %5453 = vrot.lane.b32.xlu0 %v5324, 32
      %v5454 = vpop.permute.xlu0 %5453
      %5455 = vrot.lane.b32.xlu0 %v5325, 32
      %v5456 = vpop.permute.xlu0 %5455
      %5457 = vrot.lane.b32.xlu0 %v5326, 32
      %v5458 = vpop.permute.xlu0 %5457
      %5459 = vrot.lane.b32.xlu0 %v5327, 32
      %v5460 = vpop.permute.xlu0 %5459
      %5461 = vrot.lane.b32.xlu0 %v5328, 32
      %v5462 = vpop.permute.xlu0 %5461
      %5463 = vrot.lane.b32.xlu0 %v5329, 32
      %v5464 = vpop.permute.xlu0 %5463
      %5465 = vrot.lane.b32.xlu0 %v5330, 32
      %v5466 = vpop.permute.xlu0 %5465
      %5467 = vrot.lane.b32.xlu0 %v5331, 32
      %v5468 = vpop.permute.xlu0 %5467
      %5469 = vrot.lane.b32.xlu0 %v5332, 32
      %v5470 = vpop.permute.xlu0 %5469
      %5471 = vrot.lane.b32.xlu0 %v5333, 32
      %v5472 = vpop.permute.xlu0 %5471
      %5473 = vrot.lane.b32.xlu0 %v5334, 32
      %v5474 = vpop.permute.xlu0 %5473
      %5475 = vrot.lane.b32.xlu0 %v5335, 32
      %v5476 = vpop.permute.xlu0 %5475
      %5477 = vrot.lane.b32.xlu0 %v5336, 32
      %v5478 = vpop.permute.xlu0 %5477
      %5479 = vrot.lane.b32.xlu0 %v5337, 32
      %v5480 = vpop.permute.xlu0 %5479
      %5481 = vrot.lane.b32.xlu0 %v5338, 32
      %v5482 = vpop.permute.xlu0 %5481
      %v5499 = vmul.f32 %v5292, %v5452
      %v5500 = vmul.f32 %v5294, %v5454
      %v5501 = vmul.f32 %v5296, %v5456
      %v5502 = vmul.f32 %v5298, %v5458
      %v5503 = vmul.f32 %v5300, %v5460
      %v5504 = vmul.f32 %v5302, %v5462
      %v5505 = vmul.f32 %v5304, %v5464
      %v5506 = vmul.f32 %v5306, %v5466
      %v5507 = vmul.f32 %v5308, %v5468
      %v5508 = vmul.f32 %v5310, %v5470
      %v5509 = vmul.f32 %v5312, %v5472
      %v5510 = vmul.f32 %v5314, %v5474
      %v5511 = vmul.f32 %v5316, %v5476
      %v5512 = vmul.f32 %v5318, %v5478
      %v5513 = vmul.f32 %v5320, %v5480
      %v5514 = vmul.f32 %v5322, %v5482
      %5531 = vrot.lane.b32.xlu0 %v5499, 32
      %v5532 = vpop.permute.xlu0 %5531
      %5533 = vrot.lane.b32.xlu0 %v5500, 32
      %v5534 = vpop.permute.xlu0 %5533
      %5535 = vrot.lane.b32.xlu0 %v5501, 32
      %v5536 = vpop.permute.xlu0 %5535
      %5537 = vrot.lane.b32.xlu0 %v5502, 32
      %v5538 = vpop.permute.xlu0 %5537
      %5539 = vrot.lane.b32.xlu0 %v5503, 32
      %v5540 = vpop.permute.xlu0 %5539
      %5541 = vrot.lane.b32.xlu0 %v5504, 32
      %v5542 = vpop.permute.xlu0 %5541
      %5543 = vrot.lane.b32.xlu0 %v5505, 32
      %v5544 = vpop.permute.xlu0 %5543
      %5545 = vrot.lane.b32.xlu0 %v5506, 32
      %v5546 = vpop.permute.xlu0 %5545
      %5547 = vrot.lane.b32.xlu0 %v5507, 32
      %v5548 = vpop.permute.xlu0 %5547
      %5549 = vrot.lane.b32.xlu0 %v5508, 32
      %v5550 = vpop.permute.xlu0 %5549
      %5551 = vrot.lane.b32.xlu0 %v5509, 32
      %v5552 = vpop.permute.xlu0 %5551
      %5553 = vrot.lane.b32.xlu0 %v5510, 32
      %v5554 = vpop.permute.xlu0 %5553
      %5555 = vrot.lane.b32.xlu0 %v5511, 32
      %v5556 = vpop.permute.xlu0 %5555
      %5557 = vrot.lane.b32.xlu0 %v5512, 32
      %v5558 = vpop.permute.xlu0 %5557
      %5559 = vrot.lane.b32.xlu0 %v5513, 32
      %v5560 = vpop.permute.xlu0 %5559
      %5561 = vrot.lane.b32.xlu0 %v5514, 32
      %v5562 = vpop.permute.xlu0 %5561
      %v5579 = vadd.f32 %v5419, %v5532
      %v5580 = vadd.f32 %v5420, %v5534
      %v5581 = vadd.f32 %v5421, %v5536
      %v5582 = vadd.f32 %v5422, %v5538
      %v5583 = vadd.f32 %v5423, %v5540
      %v5584 = vadd.f32 %v5424, %v5542
      %v5585 = vadd.f32 %v5425, %v5544
      %v5586 = vadd.f32 %v5426, %v5546
      %v5587 = vadd.f32 %v5427, %v5548
      %v5588 = vadd.f32 %v5428, %v5550
      %v5589 = vadd.f32 %v5429, %v5552
      %v5590 = vadd.f32 %v5430, %v5554
      %v5591 = vadd.f32 %v5431, %v5556
      %v5592 = vadd.f32 %v5432, %v5558
      %v5593 = vadd.f32 %v5433, %v5560
      %v5594 = vadd.f32 %v5434, %v5562
      %v5595 = vtanh.pop %v5579
      %v5596 = vtanh.pop %v5580
      %v5597 = vtanh.pop %v5581
      %v5598 = vtanh.pop %v5582
      %v5599 = vtanh.pop %v5583
      %v5600 = vtanh.pop %v5584
      %v5601 = vtanh.pop %v5585
      %v5602 = vtanh.pop %v5586
      %v5603 = vtanh.pop %v5587
      %v5604 = vtanh.pop %v5588
      %v5605 = vtanh.pop %v5589
      %v5606 = vtanh.pop %v5590
      %v5607 = vtanh.pop %v5591
      %v5608 = vtanh.pop %v5592
      %v5609 = vtanh.pop %v5593
      %v5610 = vtanh.pop %v5594
      %5627 = vrot.lane.b32.xlu0 %v5595, 32
      %v5628 = vpop.permute.xlu0 %5627
      %5629 = vrot.lane.b32.xlu0 %v5596, 32
      %v5630 = vpop.permute.xlu0 %5629
      %5631 = vrot.lane.b32.xlu0 %v5597, 32
      %v5632 = vpop.permute.xlu0 %5631
      %5633 = vrot.lane.b32.xlu0 %v5598, 32
      %v5634 = vpop.permute.xlu0 %5633
      %5635 = vrot.lane.b32.xlu0 %v5599, 32
      %v5636 = vpop.permute.xlu0 %5635
      %5637 = vrot.lane.b32.xlu0 %v5600, 32
      %v5638 = vpop.permute.xlu0 %5637
      %5639 = vrot.lane.b32.xlu0 %v5601, 32
      %v5640 = vpop.permute.xlu0 %5639
      %5641 = vrot.lane.b32.xlu0 %v5602, 32
      %v5642 = vpop.permute.xlu0 %5641
      %5643 = vrot.lane.b32.xlu0 %v5603, 32
      %v5644 = vpop.permute.xlu0 %5643
      %5645 = vrot.lane.b32.xlu0 %v5604, 32
      %v5646 = vpop.permute.xlu0 %5645
      %5647 = vrot.lane.b32.xlu0 %v5605, 32
      %v5648 = vpop.permute.xlu0 %5647
      %5649 = vrot.lane.b32.xlu0 %v5606, 32
      %v5650 = vpop.permute.xlu0 %5649
      %5651 = vrot.lane.b32.xlu0 %v5607, 32
      %v5652 = vpop.permute.xlu0 %5651
      %5653 = vrot.lane.b32.xlu0 %v5608, 32
      %v5654 = vpop.permute.xlu0 %5653
      %5655 = vrot.lane.b32.xlu0 %v5609, 32
      %v5656 = vpop.permute.xlu0 %5655
      %5657 = vrot.lane.b32.xlu0 %v5610, 32
      %v5658 = vpop.permute.xlu0 %5657
      %v5675 = vmul.f32 %v5292, %v5628
      %v5676 = vmul.f32 %v5294, %v5630
      %v5677 = vmul.f32 %v5296, %v5632
      %v5678 = vmul.f32 %v5298, %v5634
      %v5679 = vmul.f32 %v5300, %v5636
      %v5680 = vmul.f32 %v5302, %v5638
      %v5681 = vmul.f32 %v5304, %v5640
      %v5682 = vmul.f32 %v5306, %v5642
      %v5683 = vmul.f32 %v5308, %v5644
      %v5684 = vmul.f32 %v5310, %v5646
      %v5685 = vmul.f32 %v5312, %v5648
      %v5686 = vmul.f32 %v5314, %v5650
      %v5687 = vmul.f32 %v5316, %v5652
      %v5688 = vmul.f32 %v5318, %v5654
      %v5689 = vmul.f32 %v5320, %v5656
      %v5690 = vmul.f32 %v5322, %v5658
      %5707 = vrot.lane.b32.xlu0 %v5579, 96
      %v5708 = vpop.permute.xlu0 %5707
      %5709 = vrot.lane.b32.xlu0 %v5580, 96
      %v5710 = vpop.permute.xlu0 %5709
      %5711 = vrot.lane.b32.xlu0 %v5581, 96
      %v5712 = vpop.permute.xlu0 %5711
      %5713 = vrot.lane.b32.xlu0 %v5582, 96
      %v5714 = vpop.permute.xlu0 %5713
      %5715 = vrot.lane.b32.xlu0 %v5583, 96
      %v5716 = vpop.permute.xlu0 %5715
      %5717 = vrot.lane.b32.xlu0 %v5584, 96
      %v5718 = vpop.permute.xlu0 %5717
      %5719 = vrot.lane.b32.xlu0 %v5585, 96
      %v5720 = vpop.permute.xlu0 %5719
      %5721 = vrot.lane.b32.xlu0 %v5586, 96
      %v5722 = vpop.permute.xlu0 %5721
      %5723 = vrot.lane.b32.xlu0 %v5587, 96
      %v5724 = vpop.permute.xlu0 %5723
      %5725 = vrot.lane.b32.xlu0 %v5588, 96
      %v5726 = vpop.permute.xlu0 %5725
      %5727 = vrot.lane.b32.xlu0 %v5589, 96
      %v5728 = vpop.permute.xlu0 %5727
      %5729 = vrot.lane.b32.xlu0 %v5590, 96
      %v5730 = vpop.permute.xlu0 %5729
      %5731 = vrot.lane.b32.xlu0 %v5591, 96
      %v5732 = vpop.permute.xlu0 %5731
      %5733 = vrot.lane.b32.xlu0 %v5592, 96
      %v5734 = vpop.permute.xlu0 %5733
      %5735 = vrot.lane.b32.xlu0 %v5593, 96
      %v5736 = vpop.permute.xlu0 %5735
      %5737 = vrot.lane.b32.xlu0 %v5594, 96
      %v5738 = vpop.permute.xlu0 %5737
      %5755 = vst.msk [vmem:[%s236 + $0x100] sm:$0xff] %vm873, %v5708
      %5756 = vst.msk [vmem:[%s236 + $0x108] sm:$0xff] %vm873, %v5710
      %5757 = vst.msk [vmem:[%s236 + $0x110] sm:$0xff] %vm873, %v5712
      %5758 = vst.msk [vmem:[%s236 + $0x118] sm:$0xff] %vm873, %v5714
      %5759 = vst.msk [vmem:[%s236 + $0x120] sm:$0xff] %vm873, %v5716
      %5760 = vst.msk [vmem:[%s236 + $0x128] sm:$0xff] %vm873, %v5718
      %5761 = vst.msk [vmem:[%s236 + $0x130] sm:$0xff] %vm873, %v5720
      %5762 = vst.msk [vmem:[%s236 + $0x138] sm:$0xff] %vm873, %v5722
      %5763 = vst.msk [vmem:[%s236 + $0x140] sm:$0xff] %vm873, %v5724
      %5764 = vst.msk [vmem:[%s236 + $0x148] sm:$0xff] %vm873, %v5726
      %5765 = vst.msk [vmem:[%s236 + $0x150] sm:$0xff] %vm873, %v5728
      %5766 = vst.msk [vmem:[%s236 + $0x158] sm:$0xff] %vm873, %v5730
      %5767 = vst.msk [vmem:[%s236 + $0x160] sm:$0xff] %vm873, %v5732
      %5768 = vst.msk [vmem:[%s236 + $0x168] sm:$0xff] %vm873, %v5734
      %5769 = vst.msk [vmem:[%s236 + $0x170] sm:$0xff] %vm873, %v5736
      %5770 = vst.msk [vmem:[%s236 + $0x178] sm:$0xff] %vm873, %v5738
      %5787 = vrot.lane.b32.xlu0 %v5675, 64
      %v5788 = vpop.permute.xlu0 %5787
      %5789 = vrot.lane.b32.xlu0 %v5676, 64
      %v5790 = vpop.permute.xlu0 %5789
      %5791 = vrot.lane.b32.xlu0 %v5677, 64
      %v5792 = vpop.permute.xlu0 %5791
      %5793 = vrot.lane.b32.xlu0 %v5678, 64
      %v5794 = vpop.permute.xlu0 %5793
      %5795 = vrot.lane.b32.xlu0 %v5679, 64
      %v5796 = vpop.permute.xlu0 %5795
      %5797 = vrot.lane.b32.xlu0 %v5680, 64
      %v5798 = vpop.permute.xlu0 %5797
      %5799 = vrot.lane.b32.xlu0 %v5681, 64
      %v5800 = vpop.permute.xlu0 %5799
      %5801 = vrot.lane.b32.xlu0 %v5682, 64
      %v5802 = vpop.permute.xlu0 %5801
      %5803 = vrot.lane.b32.xlu0 %v5683, 64
      %v5804 = vpop.permute.xlu0 %5803
      %5805 = vrot.lane.b32.xlu0 %v5684, 64
      %v5806 = vpop.permute.xlu0 %5805
      %5807 = vrot.lane.b32.xlu0 %v5685, 64
      %v5808 = vpop.permute.xlu0 %5807
      %5809 = vrot.lane.b32.xlu0 %v5686, 64
      %v5810 = vpop.permute.xlu0 %5809
      %5811 = vrot.lane.b32.xlu0 %v5687, 64
      %v5812 = vpop.permute.xlu0 %5811
      %5813 = vrot.lane.b32.xlu0 %v5688, 64
      %v5814 = vpop.permute.xlu0 %5813
      %5815 = vrot.lane.b32.xlu0 %v5689, 64
      %v5816 = vpop.permute.xlu0 %5815
      %5817 = vrot.lane.b32.xlu0 %v5690, 64
      %v5818 = vpop.permute.xlu0 %5817
      %5835 = vst.msk [vmem:[%s231 + $0x100] sm:$0xff] %vm873, %v5788
      %5836 = vst.msk [vmem:[%s231 + $0x108] sm:$0xff] %vm873, %v5790
      %5837 = vst.msk [vmem:[%s231 + $0x110] sm:$0xff] %vm873, %v5792
      %5838 = vst.msk [vmem:[%s231 + $0x118] sm:$0xff] %vm873, %v5794
      %5839 = vst.msk [vmem:[%s231 + $0x120] sm:$0xff] %vm873, %v5796
      %5840 = vst.msk [vmem:[%s231 + $0x128] sm:$0xff] %vm873, %v5798
      %5841 = vst.msk [vmem:[%s231 + $0x130] sm:$0xff] %vm873, %v5800
      %5842 = vst.msk [vmem:[%s231 + $0x138] sm:$0xff] %vm873, %v5802
      %5843 = vst.msk [vmem:[%s231 + $0x140] sm:$0xff] %vm873, %v5804
      %5844 = vst.msk [vmem:[%s231 + $0x148] sm:$0xff] %vm873, %v5806
      %5845 = vst.msk [vmem:[%s231 + $0x150] sm:$0xff] %vm873, %v5808
      %5846 = vst.msk [vmem:[%s231 + $0x158] sm:$0xff] %vm873, %v5810
      %5847 = vst.msk [vmem:[%s231 + $0x160] sm:$0xff] %vm873, %v5812
      %5848 = vst.msk [vmem:[%s231 + $0x168] sm:$0xff] %vm873, %v5814
      %5849 = vst.msk [vmem:[%s231 + $0x170] sm:$0xff] %vm873, %v5816
      %5850 = vst.msk [vmem:[%s231 + $0x178] sm:$0xff] %vm873, %v5818
      %v5851 = vld [vmem:[%s2 + $0x100] sm:$0xff]
      %v5852 = vld [vmem:[%s2 + $0x108] sm:$0xff]
      %v5853 = vld [vmem:[%s2 + $0x110] sm:$0xff]
      %v5854 = vld [vmem:[%s2 + $0x118] sm:$0xff]
      %v5855 = vld [vmem:[%s2 + $0x120] sm:$0xff]
      %v5856 = vld [vmem:[%s2 + $0x128] sm:$0xff]
      %v5857 = vld [vmem:[%s2 + $0x130] sm:$0xff]
      %v5858 = vld [vmem:[%s2 + $0x138] sm:$0xff]
      %v5859 = vld [vmem:[%s2 + $0x140] sm:$0xff]
      %v5860 = vld [vmem:[%s2 + $0x148] sm:$0xff]
      %v5861 = vld [vmem:[%s2 + $0x150] sm:$0xff]
      %v5862 = vld [vmem:[%s2 + $0x158] sm:$0xff]
      %v5863 = vld [vmem:[%s2 + $0x160] sm:$0xff]
      %v5864 = vld [vmem:[%s2 + $0x168] sm:$0xff]
      %v5865 = vld [vmem:[%s2 + $0x170] sm:$0xff]
      %v5866 = vld [vmem:[%s2 + $0x178] sm:$0xff]
      %5883 = vrot.lane.b32.xlu0 %v5851, 64
      %v5884 = vpop.permute.xlu0 %5883
      %5885 = vrot.lane.b32.xlu0 %v5852, 64
      %v5886 = vpop.permute.xlu0 %5885
      %5887 = vrot.lane.b32.xlu0 %v5853, 64
      %v5888 = vpop.permute.xlu0 %5887
      %5889 = vrot.lane.b32.xlu0 %v5854, 64
      %v5890 = vpop.permute.xlu0 %5889
      %5891 = vrot.lane.b32.xlu0 %v5855, 64
      %v5892 = vpop.permute.xlu0 %5891
      %5893 = vrot.lane.b32.xlu0 %v5856, 64
      %v5894 = vpop.permute.xlu0 %5893
      %5895 = vrot.lane.b32.xlu0 %v5857, 64
      %v5896 = vpop.permute.xlu0 %5895
      %5897 = vrot.lane.b32.xlu0 %v5858, 64
      %v5898 = vpop.permute.xlu0 %5897
      %5899 = vrot.lane.b32.xlu0 %v5859, 64
      %v5900 = vpop.permute.xlu0 %5899
      %5901 = vrot.lane.b32.xlu0 %v5860, 64
      %v5902 = vpop.permute.xlu0 %5901
      %5903 = vrot.lane.b32.xlu0 %v5861, 64
      %v5904 = vpop.permute.xlu0 %5903
      %5905 = vrot.lane.b32.xlu0 %v5862, 64
      %v5906 = vpop.permute.xlu0 %5905
      %5907 = vrot.lane.b32.xlu0 %v5863, 64
      %v5908 = vpop.permute.xlu0 %5907
      %5909 = vrot.lane.b32.xlu0 %v5864, 64
      %v5910 = vpop.permute.xlu0 %5909
      %5911 = vrot.lane.b32.xlu0 %v5865, 64
      %v5912 = vpop.permute.xlu0 %5911
      %5913 = vrot.lane.b32.xlu0 %v5866, 64
      %v5914 = vpop.permute.xlu0 %5913
      %v5931 = vmul.f32 %v5675, %v5884
      %v5932 = vmul.f32 %v5676, %v5886
      %v5933 = vmul.f32 %v5677, %v5888
      %v5934 = vmul.f32 %v5678, %v5890
      %v5935 = vmul.f32 %v5679, %v5892
      %v5936 = vmul.f32 %v5680, %v5894
      %v5937 = vmul.f32 %v5681, %v5896
      %v5938 = vmul.f32 %v5682, %v5898
      %v5939 = vmul.f32 %v5683, %v5900
      %v5940 = vmul.f32 %v5684, %v5902
      %v5941 = vmul.f32 %v5685, %v5904
      %v5942 = vmul.f32 %v5686, %v5906
      %v5943 = vmul.f32 %v5687, %v5908
      %v5944 = vmul.f32 %v5688, %v5910
      %v5945 = vmul.f32 %v5689, %v5912
      %v5946 = vmul.f32 %v5690, %v5914
      %5963 = vrot.lane.b32.xlu0 %v5931, 64
      %v5964 = vpop.permute.xlu0 %5963
      %5965 = vrot.lane.b32.xlu0 %v5932, 64
      %v5966 = vpop.permute.xlu0 %5965
      %5967 = vrot.lane.b32.xlu0 %v5933, 64
      %v5968 = vpop.permute.xlu0 %5967
      %5969 = vrot.lane.b32.xlu0 %v5934, 64
      %v5970 = vpop.permute.xlu0 %5969
      %5971 = vrot.lane.b32.xlu0 %v5935, 64
      %v5972 = vpop.permute.xlu0 %5971
      %5973 = vrot.lane.b32.xlu0 %v5936, 64
      %v5974 = vpop.permute.xlu0 %5973
      %5975 = vrot.lane.b32.xlu0 %v5937, 64
      %v5976 = vpop.permute.xlu0 %5975
      %5977 = vrot.lane.b32.xlu0 %v5938, 64
      %v5978 = vpop.permute.xlu0 %5977
      %5979 = vrot.lane.b32.xlu0 %v5939, 64
      %v5980 = vpop.permute.xlu0 %5979
      %5981 = vrot.lane.b32.xlu0 %v5940, 64
      %v5982 = vpop.permute.xlu0 %5981
      %5983 = vrot.lane.b32.xlu0 %v5941, 64
      %v5984 = vpop.permute.xlu0 %5983
      %5985 = vrot.lane.b32.xlu0 %v5942, 64
      %v5986 = vpop.permute.xlu0 %5985
      %5987 = vrot.lane.b32.xlu0 %v5943, 64
      %v5988 = vpop.permute.xlu0 %5987
      %5989 = vrot.lane.b32.xlu0 %v5944, 64
      %v5990 = vpop.permute.xlu0 %5989
      %5991 = vrot.lane.b32.xlu0 %v5945, 64
      %v5992 = vpop.permute.xlu0 %5991
      %5993 = vrot.lane.b32.xlu0 %v5946, 64
      %v5994 = vpop.permute.xlu0 %5993
      %6011 = vst.msk [vmem:[#allocation2 + $0x118] sm:$0xff] %vm873, %v5964
      %6012 = vst.msk [vmem:[#allocation2 + $0x120] sm:$0xff] %vm873, %v5966
      %6013 = vst.msk [vmem:[#allocation2 + $0x128] sm:$0xff] %vm873, %v5968
      %6014 = vst.msk [vmem:[#allocation2 + $0x130] sm:$0xff] %vm873, %v5970
      %6015 = vst.msk [vmem:[#allocation2 + $0x138] sm:$0xff] %vm873, %v5972
      %6016 = vst.msk [vmem:[#allocation2 + $0x140] sm:$0xff] %vm873, %v5974
      %6017 = vst.msk [vmem:[#allocation2 + $0x148] sm:$0xff] %vm873, %v5976
      %6018 = vst.msk [vmem:[#allocation2 + $0x150] sm:$0xff] %vm873, %v5978
      %6019 = vst.msk [vmem:[#allocation2 + $0x158] sm:$0xff] %vm873, %v5980
      %6020 = vst.msk [vmem:[#allocation2 + $0x160] sm:$0xff] %vm873, %v5982
      %6021 = vst.msk [vmem:[#allocation2 + $0x168] sm:$0xff] %vm873, %v5984
      %6022 = vst.msk [vmem:[#allocation2 + $0x170] sm:$0xff] %vm873, %v5986
      %6023 = vst.msk [vmem:[#allocation2 + $0x178] sm:$0xff] %vm873, %v5988
      %6024 = vst.msk [vmem:[#allocation2 + $0x180] sm:$0xff] %vm873, %v5990
      %6025 = vst.msk [vmem:[#allocation2 + $0x188] sm:$0xff] %vm873, %v5992
      %6026 = vst.msk [vmem:[#allocation2 + $0x190] sm:$0xff] %vm873, %v5994
      %p6027 = scmp.lt.s32.totalorder %s20, 1
      %s6028 = scalar_select %p6027, %s20, 1
      %s6029 = smul.addr %s6028, 48
      %s6030 = smul.addr %s6029, 8
      %s6031 = scalar_lea.vmem %s3, %s6030
      %p6032 = scmp.lt.s32.totalorder %s20, 1
      %s6033 = scalar_select %p6032, %s20, 1
      %s6034 = smul.addr %s6033, 48
      %s6035 = smul.addr %s6034, 8
      %s6036 = scalar_lea.vmem %s4, %s6035
      // Predicated region
      $region37: #{conv_lstm_forward.1} parent=31 // pred_check
        %p6037 = pneg %p116
      $region38: #{conv_lstm_forward.1} parent=31 // pred_check_branch
        %6039 = sbr.rel (%p6037) target = $region40
      $region39: #{conv_lstm_forward.1} parent=31 // pred_region
        _
      $region40: #{conv_lstm_forward.1} parent=31 // pred_fallthru
        _
      // Predicated region
      $region41: #{conv_lstm_forward.1} parent=31 // pred_check
        %p6040 = pneg %p142
      $region42: #{conv_lstm_forward.1} parent=31 // pred_check_branch
        %6042 = sbr.rel (%p6040) target = $region44
      $region43: #{conv_lstm_forward.1} parent=31 // pred_region
        _
      $region44: #{conv_lstm_forward.1} parent=31 // pred_fallthru
        _
    $region32: #{conv_lstm_forward.1} parent=5 // pred_fallthru
      _
    %p6043 = scmp.le.s32.totalorder 2, %s11
    // Predicated region
    $region45: #{conv_lstm_forward.1} parent=5 // pred_check
      %p6044 = pneg %p6043
    $region46: #{conv_lstm_forward.1} parent=5 // pred_check_branch
      %6046 = sbr.rel (%p6044) target = $region48
    $region47: #{conv_lstm_forward.1} parent=5 // pred_region
      %s6047 = ssub.s32 %s11, 2
      // Predicated region
      $region49: #{conv_lstm_forward.1} parent=47 // pred_check
        %p6048 = pneg %p122
      $region50: #{conv_lstm_forward.1} parent=47 // pred_check_branch
        %6050 = sbr.rel (%p6048) target = $region52
      $region51: #{conv_lstm_forward.1} parent=47 // pred_region
        %p6051 = scmp.lt.s32.totalorder %s22, 1
        %s6052 = scalar_select %p6051, %s22, 1
        %s6053 = smul.addr %s6052, 48
        %s6054 = smul.addr %s6053, 8
        %s6055 = scalar_lea.vmem %s3, %s6054
      $region52: #{conv_lstm_forward.1} parent=47 // pred_fallthru
        _
      // Predicated region
      $region53: #{conv_lstm_forward.1} parent=47 // pred_check
        %p6056 = pneg %p148
      $region54: #{conv_lstm_forward.1} parent=47 // pred_check_branch
        %6058 = sbr.rel (%p6056) target = $region56
      $region55: #{conv_lstm_forward.1} parent=47 // pred_region
        %p6059 = scmp.lt.s32.totalorder %s22, 1
        %s6060 = scalar_select %p6059, %s22, 1
        %s6061 = smul.addr %s6060, 48
        %s6062 = smul.addr %s6061, 8
        %s6063 = scalar_lea.vmem %s4, %s6062
      $region56: #{conv_lstm_forward.1} parent=47 // pred_fallthru
        _
    $region48: #{conv_lstm_forward.1} parent=5 // pred_fallthru
      _
  $region6: #{conv_lstm_forward.1} parent=0 // loop_footer
    %s15 = sadd.s32 1, %s11
  $region7: #{conv_lstm_forward.1} parent=0 // loop_footer_branch
    %10 = sbr.rel target = $region3
  $region8: #{conv_lstm_forward.1} parent=0 // loop_exit
    _

</llo_original>
